<compile_context>
chip_gen: v7x
topology: tpu7x:2x2x1
jax: 0.10.0
libtpu: 0.0.40
codegen_flags: <defaults>
</compile_context>

<pallas_src>
import functools

import jax
import jax.numpy as jnp
from jax.experimental import pallas as pl
from jax.experimental.pallas import tpu as pltpu


_CONV_KEYS = ('w1d', 'w1b', 's1', 't1', 'w2', 's2', 't2',
              'w3', 's3', 't3', 'wsk', 'ssk', 'tsk')


# ----------------------------------------------------------------------------
# Hardware-derived tiling knobs (host-side, trace-time).
# ----------------------------------------------------------------------------
def _tpu_caps():
    """Returns (tbn_cap, onehot_budget_bytes, vmem_limit_bytes, force_split)."""
    kind = ''
    try:
        kind = jax.devices()[0].device_kind.lower()
    except Exception:
        pass
    vmem_cap = None
    try:
        info = pltpu.get_tpu_info()
        vmem_cap = getattr(info, 'vmem_capacity_bytes', None)
    except Exception:
        vmem_cap = None
    if vmem_cap is None:
        vmem_cap = 64 * 1024 * 1024 if 'v7' in kind else 128 * 1024 * 1024
    vmem_limit = int(vmem_cap) * 3 // 4            # ~25% headroom for pipelining
    is_v7 = ('v7' in kind) or (vmem_cap <= 64 * 1024 * 1024)
    is_v5e = ('v5 lite' in kind) or ('v5e' in kind) or ('v5lite' in kind)
    tbn_cap = 128 if is_v5e else 256               # MXU contraction depth
    onehot_budget = vmem_limit // 8                # one [TBN, TBN] slab + temps
    return tbn_cap, onehot_budget, vmem_limit, is_v7


def _choose_block_graphs(B, N, tbn_cap, onehot_budget, force_split):
    """How many graphs to fuse per grid step (block-diagonal gather)."""
    def legal(tb):                                 # (8,128) rule on [TBN, C] blocks
        return tb == B or (tb * N) % 8 == 0

    def fits(tb):
        tbn = tb * N
        # Per-k live one-hot slab [TBN, TBN]: int32 iota + bool cmp + bf16
        # one-hot ~ 8 bytes/elem (the K-fold slab of the old version is gone).
        return tbn <= tbn_cap and 8 * tbn * tbn <= onehot_budget

    divisors = [d for d in range(B, 0, -1) if B % d == 0]
    if force_split and B >= 2:                     # keep both v7x TensorCores busy
        for tb in divisors:
            if tb * 2 <= B and legal(tb) and fits(tb):
                return tb
    for tb in divisors:
        if legal(tb) and fits(tb):
            return tb
    # TODO(synk): for very large N (> MXU depth) chunk the gather over node
    # tiles (extra grid axis / per-graph batched dot_general) instead of one
    # per-graph one-hot.
    return 1 if legal(1) else B


# ----------------------------------------------------------------------------
# EdgeConv kernel: TB graphs per grid step, neighbour-streamed message MLP.
# ----------------------------------------------------------------------------
def edgeconv_kernel(tbn, kk, fts_ref, idx_ref,
                    w1d_ref, w1b_ref, s1_ref, t1_ref,
                    w2_ref, s2_ref, t2_ref,
                    w3_ref, s3_ref, t3_ref,
                    wsk_ref, ssk_ref, tsk_ref,
                    out_ref):
    x = fts_ref[...]                                  # [TBN, Cin] f32
    xb = x.astype(jnp.bfloat16)                       # bf16 MXU operand

    # EdgeConv layer-1 algebra (project once over TBN rows):
    #   cat([x_i, x_j - x_i]) @ W1 = x_i @ (W1a - W1b) + x_j @ W1b
    a1 = jnp.dot(xb, w1d_ref[...], preferred_element_type=jnp.float32)
    b1 = jnp.dot(xb, w1b_ref[...], preferred_element_type=jnp.float32)
    b1b = b1.astype(jnp.bfloat16)

    s1 = s1_ref[...]; t1 = t1_ref[...]
    s2 = s2_ref[...]; t2 = t2_ref[...]
    s3 = s3_ref[...]; t3 = t3_ref[...]
    w2 = w2_ref[...]; w3 = w3_ref[...]

    gidx = idx_ref[...]                               # [TBN, K] int32 (block-local ids)
    col = jax.lax.broadcasted_iota(jnp.int32, (tbn, tbn), 1)   # hoisted once

    # Stream the message MLP per neighbour and fold into a running max:
    # only one [TBN, TBN] one-hot and [TBN, C] intermediates are live at a time.
    aggr = None
    for k_i in range(kk):
        gk = gidx[:, k_i:k_i + 1]                     # [TBN, 1]
        onehot = (col == gk).astype(jnp.bfloat16)     # exact in bf16
        hj = jnp.dot(onehot, b1b, preferred_element_type=jnp.float32)  # gather x_j
        h = jnp.maximum((hj + a1) * s1 + t1, 0.0)     # BN + ReLU (f32 VPU)
        h = jnp.dot(h.astype(jnp.bfloat16), w2, preferred_element_type=jnp.float32)
        h = jnp.maximum(h * s2 + t2, 0.0)
        h = jnp.dot(h.astype(jnp.bfloat16), w3, preferred_element_type=jnp.float32)
        h = jnp.maximum(h * s3 + t3, 0.0)             # [TBN, C2]
        aggr = h if aggr is None else jnp.maximum(aggr, h)   # 'max' aggregation

    skip = jnp.dot(xb, wsk_ref[...], preferred_element_type=jnp.float32)
    out_ref[...] = jnp.maximum(aggr + (skip * ssk_ref[...] + tsk_ref[...]), 0.0)


def edgeconv(fts, idx, p):
    """fts: [B, N, Cin] f32, idx: [B, N, K] int32 -> [B, N, Cout] f32."""
    B, N, Cin = fts.shape
    K = idx.shape[2]
    Cout = p['w3'].shape[1]
    tbn_cap, onehot_budget, vmem_limit, is_v7 = _tpu_caps()
    TB = _choose_block_graphs(B, N, tbn_cap, onehot_budget, is_v7)
    NB = B // TB
    TBN = TB * N

    # Plain-JAX glue: flatten to [B*N, Cin] (free HBM reshape, 2-D block) and
    # shift per-graph node ids to block-local offsets for the gather.
    fts_flat = fts.reshape(B * N, Cin)
    offs = (jnp.arange(B, dtype=jnp.int32) % TB)[:, None, None] * N
    idx_nm = (idx + offs).reshape(NB, TBN, K)

    def _rep(a):  # weight replicated across the grid
        nd = a.ndim
        return pl.BlockSpec(a.shape, lambda b, nd=nd: (0,) * nd)

    in_specs = ([pl.BlockSpec((TBN, Cin), lambda b: (b, 0)),
                 pl.BlockSpec((None, TBN, K), lambda b: (b, 0, 0))]
                + [_rep(p[name]) for name in _CONV_KEYS])
    out_spec = pl.BlockSpec((TBN, Cout), lambda b: (b, 0))

    out = pl.pallas_call(
        functools.partial(edgeconv_kernel, TBN, K),
        out_shape=jax.ShapeDtypeStruct((B * N, Cout), jnp.float32),
        grid=(NB,),
        in_specs=in_specs,
        out_specs=out_spec,
        compiler_params=pltpu.CompilerParams(
            dimension_semantics=("parallel",),        # independent graph blocks
            vmem_limit_bytes=int(vmem_limit)),
    )(fts_flat, idx_nm, *[p[name] for name in _CONV_KEYS])
    return out.reshape(B, N, Cout)                    # free metadata reshape


# ----------------------------------------------------------------------------
# Head kernel: global mean pool + FC stack + output linear + softmax.
# ----------------------------------------------------------------------------
def head_kernel(num_fc, fts_ref, *refs):
    out_ref = refs[-1]
    wrefs = refs[:-1]
    # TODO(synk): fold the per-graph sum into edgeconv's final write to avoid
    # re-reading [B, N, C] from HBM for the pool.
    x = jnp.mean(fts_ref[...], axis=1)                          # [B, C] mean pool
    for i in range(num_fc):
        w = wrefs[2 * i][...]                                   # bf16
        b = wrefs[2 * i + 1][...]                               # f32
        # Dropout is identity in eval mode.
        x = jnp.maximum(
            jnp.dot(x.astype(jnp.bfloat16), w,
                    preferred_element_type=jnp.float32) + b, 0.0)
    w_out = wrefs[2 * num_fc][...]
    b_out = wrefs[2 * num_fc + 1][...]
    logits = jnp.dot(x.astype(jnp.bfloat16), w_out,
                     preferred_element_type=jnp.float32) + b_out
    m = jnp.max(logits, axis=1, keepdims=True)
    e = jnp.exp(logits - m)
    out_ref[...] = e / jnp.sum(e, axis=1, keepdims=True)        # exact softmax


def head(fts, fc_params, w_out, b_out):
    B, N, C = fts.shape
    out_dim = w_out.shape[1]
    flat = []
    for (w, b) in fc_params:
        flat += [w, b]
    flat += [w_out, b_out]

    def _full(a):
        nd = a.ndim
        return pl.BlockSpec(a.shape, lambda i, nd=nd: (0,) * nd)

    return pl.pallas_call(
        functools.partial(head_kernel, len(fc_params)),
        out_shape=jax.ShapeDtypeStruct((B, out_dim), jnp.float32),
        grid=(1,),
        in_specs=[_full(fts)] + [_full(a) for a in flat],
        out_specs=pl.BlockSpec((B, out_dim), lambda i: (0, 0)),
    )(fts, *flat)


# ----------------------------------------------------------------------------
# Plain-JAX glue: kNN graph construction, BN folding, parameter init.
# ----------------------------------------------------------------------------
def knn_indices(pts, k):
    """pts: [B, N, D] -> [B, N, k] int32 nearest-neighbour ids (no self loops).

    Gram-matrix form (one batched MXU matmul); distances clamped at 0 against
    cancellation; k-step unrolled masked argmin instead of a full top_k sort.
    """
    sq = jnp.sum(pts * pts, axis=-1)                            # [B, N]
    gram = jnp.einsum('bnd,bmd->bnm', pts, pts)                 # [B, N, N]
    d2 = jnp.maximum(sq[:, :, None] + sq[:, None, :] - 2.0 * gram, 0.0)
    N = pts.shape[1]
    d2 = jnp.where(jnp.eye(N, dtype=bool), jnp.inf, d2)         # mask self loops
    cols = jnp.arange(N, dtype=jnp.int32)
    picks = []
    for _ in range(k):                                          # partial selection
        nn = jnp.argmin(d2, axis=-1).astype(jnp.int32)          # [B, N]
        picks.append(nn)
        d2 = jnp.where(cols[None, None, :] == nn[:, :, None], jnp.inf, d2)
    return jnp.stack(picks, axis=-1)                            # [B, N, k]


def fold_bn(gamma, beta, rmean, rvar, eps=1e-5):
    scale = gamma / jnp.sqrt(rvar + eps)
    shift = beta - rmean * scale
    return scale[None, :], shift[None, :]          # [1, C] for lane broadcast


def init_params(key, config):
    def nrm(key, shape, s=0.1):
        return jax.random.normal(key, shape, jnp.float32) * s

    def bn(key, c):
        kg, kb, km, kv = jax.random.split(key, 4)
        gamma = 1.0 + 0.1 * jax.random.normal(kg, (c,), jnp.float32)
        beta = 0.1 * jax.random.normal(kb, (c,), jnp.float32)
        rmean = 0.1 * jax.random.normal(km, (c,), jnp.float32)
        rvar = 1.0 + 0.05 * jnp.abs(jax.random.normal(kv, (c,), jnp.float32))
        return fold_bn(gamma, beta, rmean, rvar)

    params = {}
    c_in = config['input_size']
    key, k0 = jax.random.split(key)
    params['in_scale'], params['in_shift'] = bn(k0, c_in)

    convs = []
    prev = c_in
    for (_, channels) in config['conv_params']:
        c0, c1, c2 = channels
        key, k1, k2, k3, k4, kb1, kb2, kb3, kbs = jax.random.split(key, 9)
        w1 = nrm(k1, (2 * prev, c0))
        w1a, w1b = w1[:prev], w1[prev:]
        p = {'w1d': (w1a - w1b).astype(jnp.bfloat16),   # x_i term: W1a - W1b
             'w1b': w1b.astype(jnp.bfloat16),           # x_j term
             'w2': nrm(k2, (c0, c1)).astype(jnp.bfloat16),
             'w3': nrm(k3, (c1, c2)).astype(jnp.bfloat16),
             'wsk': nrm(k4, (prev, c2)).astype(jnp.bfloat16)}
        p['s1'], p['t1'] = bn(kb1, c0)
        p['s2'], p['t2'] = bn(kb2, c1)
        p['s3'], p['t3'] = bn(kb3, c2)
        p['ssk'], p['tsk'] = bn(kbs, c2)
        convs.append(p)
        prev = c2
    params['convs'] = convs

    fcs = []
    for (_, units) in config['fc_params']:
        key, kw, kb = jax.random.split(key, 3)
        fcs.append((nrm(kw, (prev, units)).astype(jnp.bfloat16),
                    nrm(kb, (1, units))))
        prev = units
    params['fcs'] = fcs

    key, kw, kb = jax.random.split(key, 3)
    params['w_out'] = nrm(kw, (prev, config['output_size'])).astype(jnp.bfloat16)
    params['b_out'] = nrm(kb, (1, config['output_size']))
    return params


def particlenet_forward(x, pos, params, config):
    # Input BatchNorm (eval) folded to an affine -> plain-JAX elementwise glue.
    fts = x * params['in_scale'] + params['in_shift']
    pts = pos
    for layer_p, (k_nn, _) in zip(params['convs'], config['conv_params']):
        idx = knn_indices(pts, k_nn)              # kNN graph (glue)
        fts = edgeconv(fts, idx, layer_p)         # Pallas hot path
        pts = fts
    return head(fts, params['fcs'], params['w_out'], params['b_out'])


# ----------------------------------------------------------------------------
if __name__ == "__main__":
    config = {
        'input_size': 4,
        'conv_params': [(7, (16, 16, 16)), (7, (32, 32, 32))],
        'fc_params': [(0.1, 32)],
        'output_size': 4,
    }
    B, N, POS_DIM = 2, 16, 3

    key = jax.random.PRNGKey(0)
    kx, kp, kw = jax.random.split(key, 3)
    x = jax.random.normal(kx, (B, N, config['input_size']), jnp.float32)
    pos = jax.random.normal(kp, (B, N, POS_DIM), jnp.float32)
    params = init_params(kw, config)

    fwd = jax.jit(lambda x_, pos_, p_: particlenet_forward(x_, pos_, p_, config))
    out = jax.block_until_ready(fwd(x, pos, params))

    assert out.shape == (B, config['output_size'])
    assert bool(jnp.all(jnp.isfinite(out)))
    # rows sum to 1 (exact softmax divide)
    assert bool(jnp.allclose(jnp.sum(out, axis=1), 1.0, atol=1e-4))
    print("KERNEL_OK")
</pallas_src>

<mosaic_0001>
module attributes {stable_mosaic.version = 11 : i64} {
  func.func @edgeconv_kernel(%arg0: i32, %arg1: memref<32x4xf32, #tpu.memory_space<vmem>>, %arg2: memref<1x32x7xi32, #tpu.memory_space<vmem>>, %arg3: memref<4x16xbf16, #tpu.memory_space<vmem>>, %arg4: memref<4x16xbf16, #tpu.memory_space<vmem>>, %arg5: memref<1x16xf32, #tpu.memory_space<vmem>>, %arg6: memref<1x16xf32, #tpu.memory_space<vmem>>, %arg7: memref<16x16xbf16, #tpu.memory_space<vmem>>, %arg8: memref<1x16xf32, #tpu.memory_space<vmem>>, %arg9: memref<1x16xf32, #tpu.memory_space<vmem>>, %arg10: memref<16x16xbf16, #tpu.memory_space<vmem>>, %arg11: memref<1x16xf32, #tpu.memory_space<vmem>>, %arg12: memref<1x16xf32, #tpu.memory_space<vmem>>, %arg13: memref<4x16xbf16, #tpu.memory_space<vmem>>, %arg14: memref<1x16xf32, #tpu.memory_space<vmem>>, %arg15: memref<1x16xf32, #tpu.memory_space<vmem>>, %arg16: memref<32x16xf32, #tpu.memory_space<vmem>>) attributes {dimension_semantics = [#tpu.dimension_semantics<parallel>], iteration_bounds = array<i64: 1>, scalar_prefetch = 0 : i64, scratch_operands = 0 : i64, tpu.core_type = #tpu.core_type<tc>, window_params = [{transform_indices = @transform_0, window_bounds = array<i64: 32, 4>}, {transform_indices = @transform_1, window_bounds = array<i64: 1, 32, 7>}, {pipeline_mode = #tpu.pipeline_mode<synchronous>, transform_indices = @transform_2, window_bounds = array<i64: 4, 16>}, {pipeline_mode = #tpu.pipeline_mode<synchronous>, transform_indices = @transform_3, window_bounds = array<i64: 4, 16>}, {pipeline_mode = #tpu.pipeline_mode<synchronous>, transform_indices = @transform_4, window_bounds = array<i64: 1, 16>}, {pipeline_mode = #tpu.pipeline_mode<synchronous>, transform_indices = @transform_5, window_bounds = array<i64: 1, 16>}, {pipeline_mode = #tpu.pipeline_mode<synchronous>, transform_indices = @transform_6, window_bounds = array<i64: 16, 16>}, {pipeline_mode = #tpu.pipeline_mode<synchronous>, transform_indices = @transform_7, window_bounds = array<i64: 1, 16>}, {pipeline_mode = #tpu.pipeline_mode<synchronous>, transform_indices = @transform_8, window_bounds = array<i64: 1, 16>}, {pipeline_mode = #tpu.pipeline_mode<synchronous>, transform_indices = @transform_9, window_bounds = array<i64: 16, 16>}, {pipeline_mode = #tpu.pipeline_mode<synchronous>, transform_indices = @transform_10, window_bounds = array<i64: 1, 16>}, {pipeline_mode = #tpu.pipeline_mode<synchronous>, transform_indices = @transform_11, window_bounds = array<i64: 1, 16>}, {pipeline_mode = #tpu.pipeline_mode<synchronous>, transform_indices = @transform_12, window_bounds = array<i64: 4, 16>}, {pipeline_mode = #tpu.pipeline_mode<synchronous>, transform_indices = @transform_13, window_bounds = array<i64: 1, 16>}, {pipeline_mode = #tpu.pipeline_mode<synchronous>, transform_indices = @transform_14, window_bounds = array<i64: 1, 16>}, {transform_indices = @transform_15, window_bounds = array<i64: 32, 16>}]} {
    %c0 = arith.constant 0 : index
    %c0_0 = arith.constant 0 : index
    %0 = vector.load %arg1[%c0, %c0_0] : memref<32x4xf32, #tpu.memory_space<vmem>>, vector<32x4xf32>
    %1 = arith.truncf %0 : vector<32x4xf32> to vector<32x4xbf16>
    %c0_1 = arith.constant 0 : index
    %c0_2 = arith.constant 0 : index
    %2 = vector.load %arg3[%c0_1, %c0_2] : memref<4x16xbf16, #tpu.memory_space<vmem>>, vector<4x16xbf16>
    %cst = arith.constant dense<0.000000e+00> : vector<32x16xf32>
    %3 = tpu.matmul %1, %2, %cst {dimension_numbers = #tpu.dot_dimension_numbers<[1], [0], [0], [1], [0, 0, 1, 1], [], []>} : vector<32x4xbf16>, vector<4x16xbf16>, vector<32x16xf32> -> vector<32x16xf32>
    %c0_3 = arith.constant 0 : index
    %c0_4 = arith.constant 0 : index
    %4 = vector.load %arg4[%c0_3, %c0_4] : memref<4x16xbf16, #tpu.memory_space<vmem>>, vector<4x16xbf16>
    %cst_5 = arith.constant dense<0.000000e+00> : vector<32x16xf32>
    %5 = tpu.matmul %1, %4, %cst_5 {dimension_numbers = #tpu.dot_dimension_numbers<[1], [0], [0], [1], [0, 0, 1, 1], [], []>} : vector<32x4xbf16>, vector<4x16xbf16>, vector<32x16xf32> -> vector<32x16xf32>
    %6 = arith.truncf %5 : vector<32x16xf32> to vector<32x16xbf16>
    %c0_6 = arith.constant 0 : index
    %c0_7 = arith.constant 0 : index
    %7 = vector.load %arg5[%c0_6, %c0_7] : memref<1x16xf32, #tpu.memory_space<vmem>>, vector<1x16xf32>
    %c0_8 = arith.constant 0 : index
    %c0_9 = arith.constant 0 : index
    %8 = vector.load %arg6[%c0_8, %c0_9] : memref<1x16xf32, #tpu.memory_space<vmem>>, vector<1x16xf32>
    %c0_10 = arith.constant 0 : index
    %c0_11 = arith.constant 0 : index
    %9 = vector.load %arg8[%c0_10, %c0_11] : memref<1x16xf32, #tpu.memory_space<vmem>>, vector<1x16xf32>
    %c0_12 = arith.constant 0 : index
    %c0_13 = arith.constant 0 : index
    %10 = vector.load %arg9[%c0_12, %c0_13] : memref<1x16xf32, #tpu.memory_space<vmem>>, vector<1x16xf32>
    %c0_14 = arith.constant 0 : index
    %c0_15 = arith.constant 0 : index
    %11 = vector.load %arg11[%c0_14, %c0_15] : memref<1x16xf32, #tpu.memory_space<vmem>>, vector<1x16xf32>
    %c0_16 = arith.constant 0 : index
    %c0_17 = arith.constant 0 : index
    %12 = vector.load %arg12[%c0_16, %c0_17] : memref<1x16xf32, #tpu.memory_space<vmem>>, vector<1x16xf32>
    %c0_18 = arith.constant 0 : index
    %c0_19 = arith.constant 0 : index
    %13 = vector.load %arg7[%c0_18, %c0_19] : memref<16x16xbf16, #tpu.memory_space<vmem>>, vector<16x16xbf16>
    %c0_20 = arith.constant 0 : index
    %c0_21 = arith.constant 0 : index
    %14 = vector.load %arg10[%c0_20, %c0_21] : memref<16x16xbf16, #tpu.memory_space<vmem>>, vector<16x16xbf16>
    %c0_22 = arith.constant 0 : index
    %c0_23 = arith.constant 0 : index
    %c0_24 = arith.constant 0 : index
    %15 = vector.load %arg2[%c0_22, %c0_23, %c0_24] : memref<1x32x7xi32, #tpu.memory_space<vmem>>, vector<1x32x7xi32>
    %16 = vector.shape_cast %15 : vector<1x32x7xi32> to vector<32x7xi32>
    %17 = tpu.iota {dimensions = array<i32: 1>} : vector<32x32xi32>
    %18 = vector.extract_strided_slice %16 {offsets = [0, 0], sizes = [32, 1], strides = [1, 1]} : vector<32x7xi32> to vector<32x1xi32>
    %19 = vector.broadcast %18 : vector<32x1xi32> to vector<32x32xi32>
    %20 = arith.cmpi eq, %17, %19 : vector<32x32xi32>
    %21 = arith.extui %20 : vector<32x32xi1> to vector<32x32xi32>
    %22 = arith.sitofp %21 : vector<32x32xi32> to vector<32x32xf32>
    %23 = arith.truncf %22 : vector<32x32xf32> to vector<32x32xbf16>
    %cst_25 = arith.constant dense<0.000000e+00> : vector<32x16xf32>
    %24 = tpu.matmul %23, %6, %cst_25 {dimension_numbers = #tpu.dot_dimension_numbers<[1], [0], [0], [1], [0, 0, 1, 1], [], []>} : vector<32x32xbf16>, vector<32x16xbf16>, vector<32x16xf32> -> vector<32x16xf32>
    %25 = arith.addf %24, %3 : vector<32x16xf32>
    %26 = vector.broadcast %7 : vector<1x16xf32> to vector<32x16xf32>
    %27 = arith.mulf %25, %26 : vector<32x16xf32>
    %28 = vector.broadcast %8 : vector<1x16xf32> to vector<32x16xf32>
    %29 = arith.addf %27, %28 : vector<32x16xf32>
    %cst_26 = arith.constant 0.000000e+00 : f32
    %30 = vector.broadcast %cst_26 : f32 to vector<32x16xf32>
    %31 = arith.maximumf %29, %30 : vector<32x16xf32>
    %32 = arith.truncf %31 : vector<32x16xf32> to vector<32x16xbf16>
    %cst_27 = arith.constant dense<0.000000e+00> : vector<32x16xf32>
    %33 = tpu.matmul %32, %13, %cst_27 {dimension_numbers = #tpu.dot_dimension_numbers<[1], [0], [0], [1], [0, 0, 1, 1], [], []>} : vector<32x16xbf16>, vector<16x16xbf16>, vector<32x16xf32> -> vector<32x16xf32>
    %34 = vector.broadcast %9 : vector<1x16xf32> to vector<32x16xf32>
    %35 = arith.mulf %33, %34 : vector<32x16xf32>
    %36 = vector.broadcast %10 : vector<1x16xf32> to vector<32x16xf32>
    %37 = arith.addf %35, %36 : vector<32x16xf32>
    %cst_28 = arith.constant 0.000000e+00 : f32
    %38 = vector.broadcast %cst_28 : f32 to vector<32x16xf32>
    %39 = arith.maximumf %37, %38 : vector<32x16xf32>
    %40 = arith.truncf %39 : vector<32x16xf32> to vector<32x16xbf16>
    %cst_29 = arith.constant dense<0.000000e+00> : vector<32x16xf32>
    %41 = tpu.matmul %40, %14, %cst_29 {dimension_numbers = #tpu.dot_dimension_numbers<[1], [0], [0], [1], [0, 0, 1, 1], [], []>} : vector<32x16xbf16>, vector<16x16xbf16>, vector<32x16xf32> -> vector<32x16xf32>
    %42 = vector.broadcast %11 : vector<1x16xf32> to vector<32x16xf32>
    %43 = arith.mulf %41, %42 : vector<32x16xf32>
    %44 = vector.broadcast %12 : vector<1x16xf32> to vector<32x16xf32>
    %45 = arith.addf %43, %44 : vector<32x16xf32>
    %cst_30 = arith.constant 0.000000e+00 : f32
    %46 = vector.broadcast %cst_30 : f32 to vector<32x16xf32>
    %47 = arith.maximumf %45, %46 : vector<32x16xf32>
    %48 = vector.extract_strided_slice %16 {offsets = [0, 1], sizes = [32, 1], strides = [1, 1]} : vector<32x7xi32> to vector<32x1xi32>
    %49 = vector.broadcast %48 : vector<32x1xi32> to vector<32x32xi32>
    %50 = arith.cmpi eq, %17, %49 : vector<32x32xi32>
    %51 = arith.extui %50 : vector<32x32xi1> to vector<32x32xi32>
    %52 = arith.sitofp %51 : vector<32x32xi32> to vector<32x32xf32>
    %53 = arith.truncf %52 : vector<32x32xf32> to vector<32x32xbf16>
    %cst_31 = arith.constant dense<0.000000e+00> : vector<32x16xf32>
    %54 = tpu.matmul %53, %6, %cst_31 {dimension_numbers = #tpu.dot_dimension_numbers<[1], [0], [0], [1], [0, 0, 1, 1], [], []>} : vector<32x32xbf16>, vector<32x16xbf16>, vector<32x16xf32> -> vector<32x16xf32>
    %55 = arith.addf %54, %3 : vector<32x16xf32>
    %56 = vector.broadcast %7 : vector<1x16xf32> to vector<32x16xf32>
    %57 = arith.mulf %55, %56 : vector<32x16xf32>
    %58 = vector.broadcast %8 : vector<1x16xf32> to vector<32x16xf32>
    %59 = arith.addf %57, %58 : vector<32x16xf32>
    %cst_32 = arith.constant 0.000000e+00 : f32
    %60 = vector.broadcast %cst_32 : f32 to vector<32x16xf32>
    %61 = arith.maximumf %59, %60 : vector<32x16xf32>
    %62 = arith.truncf %61 : vector<32x16xf32> to vector<32x16xbf16>
    %cst_33 = arith.constant dense<0.000000e+00> : vector<32x16xf32>
    %63 = tpu.matmul %62, %13, %cst_33 {dimension_numbers = #tpu.dot_dimension_numbers<[1], [0], [0], [1], [0, 0, 1, 1], [], []>} : vector<32x16xbf16>, vector<16x16xbf16>, vector<32x16xf32> -> vector<32x16xf32>
    %64 = vector.broadcast %9 : vector<1x16xf32> to vector<32x16xf32>
    %65 = arith.mulf %63, %64 : vector<32x16xf32>
    %66 = vector.broadcast %10 : vector<1x16xf32> to vector<32x16xf32>
    %67 = arith.addf %65, %66 : vector<32x16xf32>
    %cst_34 = arith.constant 0.000000e+00 : f32
    %68 = vector.broadcast %cst_34 : f32 to vector<32x16xf32>
    %69 = arith.maximumf %67, %68 : vector<32x16xf32>
    %70 = arith.truncf %69 : vector<32x16xf32> to vector<32x16xbf16>
    %cst_35 = arith.constant dense<0.000000e+00> : vector<32x16xf32>
    %71 = tpu.matmul %70, %14, %cst_35 {dimension_numbers = #tpu.dot_dimension_numbers<[1], [0], [0], [1], [0, 0, 1, 1], [], []>} : vector<32x16xbf16>, vector<16x16xbf16>, vector<32x16xf32> -> vector<32x16xf32>
    %72 = vector.broadcast %11 : vector<1x16xf32> to vector<32x16xf32>
    %73 = arith.mulf %71, %72 : vector<32x16xf32>
    %74 = vector.broadcast %12 : vector<1x16xf32> to vector<32x16xf32>
    %75 = arith.addf %73, %74 : vector<32x16xf32>
    %cst_36 = arith.constant 0.000000e+00 : f32
    %76 = vector.broadcast %cst_36 : f32 to vector<32x16xf32>
    %77 = arith.maximumf %75, %76 : vector<32x16xf32>
    %78 = arith.maximumf %47, %77 : vector<32x16xf32>
    %79 = vector.extract_strided_slice %16 {offsets = [0, 2], sizes = [32, 1], strides = [1, 1]} : vector<32x7xi32> to vector<32x1xi32>
    %80 = vector.broadcast %79 : vector<32x1xi32> to vector<32x32xi32>
    %81 = arith.cmpi eq, %17, %80 : vector<32x32xi32>
    %82 = arith.extui %81 : vector<32x32xi1> to vector<32x32xi32>
    %83 = arith.sitofp %82 : vector<32x32xi32> to vector<32x32xf32>
    %84 = arith.truncf %83 : vector<32x32xf32> to vector<32x32xbf16>
    %cst_37 = arith.constant dense<0.000000e+00> : vector<32x16xf32>
    %85 = tpu.matmul %84, %6, %cst_37 {dimension_numbers = #tpu.dot_dimension_numbers<[1], [0], [0], [1], [0, 0, 1, 1], [], []>} : vector<32x32xbf16>, vector<32x16xbf16>, vector<32x16xf32> -> vector<32x16xf32>
    %86 = arith.addf %85, %3 : vector<32x16xf32>
    %87 = vector.broadcast %7 : vector<1x16xf32> to vector<32x16xf32>
    %88 = arith.mulf %86, %87 : vector<32x16xf32>
    %89 = vector.broadcast %8 : vector<1x16xf32> to vector<32x16xf32>
    %90 = arith.addf %88, %89 : vector<32x16xf32>
    %cst_38 = arith.constant 0.000000e+00 : f32
    %91 = vector.broadcast %cst_38 : f32 to vector<32x16xf32>
    %92 = arith.maximumf %90, %91 : vector<32x16xf32>
    %93 = arith.truncf %92 : vector<32x16xf32> to vector<32x16xbf16>
    %cst_39 = arith.constant dense<0.000000e+00> : vector<32x16xf32>
    %94 = tpu.matmul %93, %13, %cst_39 {dimension_numbers = #tpu.dot_dimension_numbers<[1], [0], [0], [1], [0, 0, 1, 1], [], []>} : vector<32x16xbf16>, vector<16x16xbf16>, vector<32x16xf32> -> vector<32x16xf32>
    %95 = vector.broadcast %9 : vector<1x16xf32> to vector<32x16xf32>
    %96 = arith.mulf %94, %95 : vector<32x16xf32>
    %97 = vector.broadcast %10 : vector<1x16xf32> to vector<32x16xf32>
    %98 = arith.addf %96, %97 : vector<32x16xf32>
    %cst_40 = arith.constant 0.000000e+00 : f32
    %99 = vector.broadcast %cst_40 : f32 to vector<32x16xf32>
    %100 = arith.maximumf %98, %99 : vector<32x16xf32>
    %101 = arith.truncf %100 : vector<32x16xf32> to vector<32x16xbf16>
    %cst_41 = arith.constant dense<0.000000e+00> : vector<32x16xf32>
    %102 = tpu.matmul %101, %14, %cst_41 {dimension_numbers = #tpu.dot_dimension_numbers<[1], [0], [0], [1], [0, 0, 1, 1], [], []>} : vector<32x16xbf16>, vector<16x16xbf16>, vector<32x16xf32> -> vector<32x16xf32>
    %103 = vector.broadcast %11 : vector<1x16xf32> to vector<32x16xf32>
    %104 = arith.mulf %102, %103 : vector<32x16xf32>
    %105 = vector.broadcast %12 : vector<1x16xf32> to vector<32x16xf32>
    %106 = arith.addf %104, %105 : vector<32x16xf32>
    %cst_42 = arith.constant 0.000000e+00 : f32
    %107 = vector.broadcast %cst_42 : f32 to vector<32x16xf32>
    %108 = arith.maximumf %106, %107 : vector<32x16xf32>
    %109 = arith.maximumf %78, %108 : vector<32x16xf32>
    %110 = vector.extract_strided_slice %16 {offsets = [0, 3], sizes = [32, 1], strides = [1, 1]} : vector<32x7xi32> to vector<32x1xi32>
    %111 = vector.broadcast %110 : vector<32x1xi32> to vector<32x32xi32>
    %112 = arith.cmpi eq, %17, %111 : vector<32x32xi32>
    %113 = arith.extui %112 : vector<32x32xi1> to vector<32x32xi32>
    %114 = arith.sitofp %113 : vector<32x32xi32> to vector<32x32xf32>
    %115 = arith.truncf %114 : vector<32x32xf32> to vector<32x32xbf16>
    %cst_43 = arith.constant dense<0.000000e+00> : vector<32x16xf32>
    %116 = tpu.matmul %115, %6, %cst_43 {dimension_numbers = #tpu.dot_dimension_numbers<[1], [0], [0], [1], [0, 0, 1, 1], [], []>} : vector<32x32xbf16>, vector<32x16xbf16>, vector<32x16xf32> -> vector<32x16xf32>
    %117 = arith.addf %116, %3 : vector<32x16xf32>
    %118 = vector.broadcast %7 : vector<1x16xf32> to vector<32x16xf32>
    %119 = arith.mulf %117, %118 : vector<32x16xf32>
    %120 = vector.broadcast %8 : vector<1x16xf32> to vector<32x16xf32>
    %121 = arith.addf %119, %120 : vector<32x16xf32>
    %cst_44 = arith.constant 0.000000e+00 : f32
    %122 = vector.broadcast %cst_44 : f32 to vector<32x16xf32>
    %123 = arith.maximumf %121, %122 : vector<32x16xf32>
    %124 = arith.truncf %123 : vector<32x16xf32> to vector<32x16xbf16>
    %cst_45 = arith.constant dense<0.000000e+00> : vector<32x16xf32>
    %125 = tpu.matmul %124, %13, %cst_45 {dimension_numbers = #tpu.dot_dimension_numbers<[1], [0], [0], [1], [0, 0, 1, 1], [], []>} : vector<32x16xbf16>, vector<16x16xbf16>, vector<32x16xf32> -> vector<32x16xf32>
    %126 = vector.broadcast %9 : vector<1x16xf32> to vector<32x16xf32>
    %127 = arith.mulf %125, %126 : vector<32x16xf32>
    %128 = vector.broadcast %10 : vector<1x16xf32> to vector<32x16xf32>
    %129 = arith.addf %127, %128 : vector<32x16xf32>
    %cst_46 = arith.constant 0.000000e+00 : f32
    %130 = vector.broadcast %cst_46 : f32 to vector<32x16xf32>
    %131 = arith.maximumf %129, %130 : vector<32x16xf32>
    %132 = arith.truncf %131 : vector<32x16xf32> to vector<32x16xbf16>
    %cst_47 = arith.constant dense<0.000000e+00> : vector<32x16xf32>
    %133 = tpu.matmul %132, %14, %cst_47 {dimension_numbers = #tpu.dot_dimension_numbers<[1], [0], [0], [1], [0, 0, 1, 1], [], []>} : vector<32x16xbf16>, vector<16x16xbf16>, vector<32x16xf32> -> vector<32x16xf32>
    %134 = vector.broadcast %11 : vector<1x16xf32> to vector<32x16xf32>
    %135 = arith.mulf %133, %134 : vector<32x16xf32>
    %136 = vector.broadcast %12 : vector<1x16xf32> to vector<32x16xf32>
    %137 = arith.addf %135, %136 : vector<32x16xf32>
    %cst_48 = arith.constant 0.000000e+00 : f32
    %138 = vector.broadcast %cst_48 : f32 to vector<32x16xf32>
    %139 = arith.maximumf %137, %138 : vector<32x16xf32>
    %140 = arith.maximumf %109, %139 : vector<32x16xf32>
    %141 = vector.extract_strided_slice %16 {offsets = [0, 4], sizes = [32, 1], strides = [1, 1]} : vector<32x7xi32> to vector<32x1xi32>
    %142 = vector.broadcast %141 : vector<32x1xi32> to vector<32x32xi32>
    %143 = arith.cmpi eq, %17, %142 : vector<32x32xi32>
    %144 = arith.extui %143 : vector<32x32xi1> to vector<32x32xi32>
    %145 = arith.sitofp %144 : vector<32x32xi32> to vector<32x32xf32>
    %146 = arith.truncf %145 : vector<32x32xf32> to vector<32x32xbf16>
    %cst_49 = arith.constant dense<0.000000e+00> : vector<32x16xf32>
    %147 = tpu.matmul %146, %6, %cst_49 {dimension_numbers = #tpu.dot_dimension_numbers<[1], [0], [0], [1], [0, 0, 1, 1], [], []>} : vector<32x32xbf16>, vector<32x16xbf16>, vector<32x16xf32> -> vector<32x16xf32>
    %148 = arith.addf %147, %3 : vector<32x16xf32>
    %149 = vector.broadcast %7 : vector<1x16xf32> to vector<32x16xf32>
    %150 = arith.mulf %148, %149 : vector<32x16xf32>
    %151 = vector.broadcast %8 : vector<1x16xf32> to vector<32x16xf32>
    %152 = arith.addf %150, %151 : vector<32x16xf32>
    %cst_50 = arith.constant 0.000000e+00 : f32
    %153 = vector.broadcast %cst_50 : f32 to vector<32x16xf32>
    %154 = arith.maximumf %152, %153 : vector<32x16xf32>
    %155 = arith.truncf %154 : vector<32x16xf32> to vector<32x16xbf16>
    %cst_51 = arith.constant dense<0.000000e+00> : vector<32x16xf32>
    %156 = tpu.matmul %155, %13, %cst_51 {dimension_numbers = #tpu.dot_dimension_numbers<[1], [0], [0], [1], [0, 0, 1, 1], [], []>} : vector<32x16xbf16>, vector<16x16xbf16>, vector<32x16xf32> -> vector<32x16xf32>
    %157 = vector.broadcast %9 : vector<1x16xf32> to vector<32x16xf32>
    %158 = arith.mulf %156, %157 : vector<32x16xf32>
    %159 = vector.broadcast %10 : vector<1x16xf32> to vector<32x16xf32>
    %160 = arith.addf %158, %159 : vector<32x16xf32>
    %cst_52 = arith.constant 0.000000e+00 : f32
    %161 = vector.broadcast %cst_52 : f32 to vector<32x16xf32>
    %162 = arith.maximumf %160, %161 : vector<32x16xf32>
    %163 = arith.truncf %162 : vector<32x16xf32> to vector<32x16xbf16>
    %cst_53 = arith.constant dense<0.000000e+00> : vector<32x16xf32>
    %164 = tpu.matmul %163, %14, %cst_53 {dimension_numbers = #tpu.dot_dimension_numbers<[1], [0], [0], [1], [0, 0, 1, 1], [], []>} : vector<32x16xbf16>, vector<16x16xbf16>, vector<32x16xf32> -> vector<32x16xf32>
    %165 = vector.broadcast %11 : vector<1x16xf32> to vector<32x16xf32>
    %166 = arith.mulf %164, %165 : vector<32x16xf32>
    %167 = vector.broadcast %12 : vector<1x16xf32> to vector<32x16xf32>
    %168 = arith.addf %166, %167 : vector<32x16xf32>
    %cst_54 = arith.constant 0.000000e+00 : f32
    %169 = vector.broadcast %cst_54 : f32 to vector<32x16xf32>
    %170 = arith.maximumf %168, %169 : vector<32x16xf32>
    %171 = arith.maximumf %140, %170 : vector<32x16xf32>
    %172 = vector.extract_strided_slice %16 {offsets = [0, 5], sizes = [32, 1], strides = [1, 1]} : vector<32x7xi32> to vector<32x1xi32>
    %173 = vector.broadcast %172 : vector<32x1xi32> to vector<32x32xi32>
    %174 = arith.cmpi eq, %17, %173 : vector<32x32xi32>
    %175 = arith.extui %174 : vector<32x32xi1> to vector<32x32xi32>
    %176 = arith.sitofp %175 : vector<32x32xi32> to vector<32x32xf32>
    %177 = arith.truncf %176 : vector<32x32xf32> to vector<32x32xbf16>
    %cst_55 = arith.constant dense<0.000000e+00> : vector<32x16xf32>
    %178 = tpu.matmul %177, %6, %cst_55 {dimension_numbers = #tpu.dot_dimension_numbers<[1], [0], [0], [1], [0, 0, 1, 1], [], []>} : vector<32x32xbf16>, vector<32x16xbf16>, vector<32x16xf32> -> vector<32x16xf32>
    %179 = arith.addf %178, %3 : vector<32x16xf32>
    %180 = vector.broadcast %7 : vector<1x16xf32> to vector<32x16xf32>
    %181 = arith.mulf %179, %180 : vector<32x16xf32>
    %182 = vector.broadcast %8 : vector<1x16xf32> to vector<32x16xf32>
    %183 = arith.addf %181, %182 : vector<32x16xf32>
    %cst_56 = arith.constant 0.000000e+00 : f32
    %184 = vector.broadcast %cst_56 : f32 to vector<32x16xf32>
    %185 = arith.maximumf %183, %184 : vector<32x16xf32>
    %186 = arith.truncf %185 : vector<32x16xf32> to vector<32x16xbf16>
    %cst_57 = arith.constant dense<0.000000e+00> : vector<32x16xf32>
    %187 = tpu.matmul %186, %13, %cst_57 {dimension_numbers = #tpu.dot_dimension_numbers<[1], [0], [0], [1], [0, 0, 1, 1], [], []>} : vector<32x16xbf16>, vector<16x16xbf16>, vector<32x16xf32> -> vector<32x16xf32>
    %188 = vector.broadcast %9 : vector<1x16xf32> to vector<32x16xf32>
    %189 = arith.mulf %187, %188 : vector<32x16xf32>
    %190 = vector.broadcast %10 : vector<1x16xf32> to vector<32x16xf32>
    %191 = arith.addf %189, %190 : vector<32x16xf32>
    %cst_58 = arith.constant 0.000000e+00 : f32
    %192 = vector.broadcast %cst_58 : f32 to vector<32x16xf32>
    %193 = arith.maximumf %191, %192 : vector<32x16xf32>
    %194 = arith.truncf %193 : vector<32x16xf32> to vector<32x16xbf16>
    %cst_59 = arith.constant dense<0.000000e+00> : vector<32x16xf32>
    %195 = tpu.matmul %194, %14, %cst_59 {dimension_numbers = #tpu.dot_dimension_numbers<[1], [0], [0], [1], [0, 0, 1, 1], [], []>} : vector<32x16xbf16>, vector<16x16xbf16>, vector<32x16xf32> -> vector<32x16xf32>
    %196 = vector.broadcast %11 : vector<1x16xf32> to vector<32x16xf32>
    %197 = arith.mulf %195, %196 : vector<32x16xf32>
    %198 = vector.broadcast %12 : vector<1x16xf32> to vector<32x16xf32>
    %199 = arith.addf %197, %198 : vector<32x16xf32>
    %cst_60 = arith.constant 0.000000e+00 : f32
    %200 = vector.broadcast %cst_60 : f32 to vector<32x16xf32>
    %201 = arith.maximumf %199, %200 : vector<32x16xf32>
    %202 = arith.maximumf %171, %201 : vector<32x16xf32>
    %203 = vector.extract_strided_slice %16 {offsets = [0, 6], sizes = [32, 1], strides = [1, 1]} : vector<32x7xi32> to vector<32x1xi32>
    %204 = vector.broadcast %203 : vector<32x1xi32> to vector<32x32xi32>
    %205 = arith.cmpi eq, %17, %204 : vector<32x32xi32>
    %206 = arith.extui %205 : vector<32x32xi1> to vector<32x32xi32>
    %207 = arith.sitofp %206 : vector<32x32xi32> to vector<32x32xf32>
    %208 = arith.truncf %207 : vector<32x32xf32> to vector<32x32xbf16>
    %cst_61 = arith.constant dense<0.000000e+00> : vector<32x16xf32>
    %209 = tpu.matmul %208, %6, %cst_61 {dimension_numbers = #tpu.dot_dimension_numbers<[1], [0], [0], [1], [0, 0, 1, 1], [], []>} : vector<32x32xbf16>, vector<32x16xbf16>, vector<32x16xf32> -> vector<32x16xf32>
    %210 = arith.addf %209, %3 : vector<32x16xf32>
    %211 = vector.broadcast %7 : vector<1x16xf32> to vector<32x16xf32>
    %212 = arith.mulf %210, %211 : vector<32x16xf32>
    %213 = vector.broadcast %8 : vector<1x16xf32> to vector<32x16xf32>
    %214 = arith.addf %212, %213 : vector<32x16xf32>
    %cst_62 = arith.constant 0.000000e+00 : f32
    %215 = vector.broadcast %cst_62 : f32 to vector<32x16xf32>
    %216 = arith.maximumf %214, %215 : vector<32x16xf32>
    %217 = arith.truncf %216 : vector<32x16xf32> to vector<32x16xbf16>
    %cst_63 = arith.constant dense<0.000000e+00> : vector<32x16xf32>
    %218 = tpu.matmul %217, %13, %cst_63 {dimension_numbers = #tpu.dot_dimension_numbers<[1], [0], [0], [1], [0, 0, 1, 1], [], []>} : vector<32x16xbf16>, vector<16x16xbf16>, vector<32x16xf32> -> vector<32x16xf32>
    %219 = vector.broadcast %9 : vector<1x16xf32> to vector<32x16xf32>
    %220 = arith.mulf %218, %219 : vector<32x16xf32>
    %221 = vector.broadcast %10 : vector<1x16xf32> to vector<32x16xf32>
    %222 = arith.addf %220, %221 : vector<32x16xf32>
    %cst_64 = arith.constant 0.000000e+00 : f32
    %223 = vector.broadcast %cst_64 : f32 to vector<32x16xf32>
    %224 = arith.maximumf %222, %223 : vector<32x16xf32>
    %225 = arith.truncf %224 : vector<32x16xf32> to vector<32x16xbf16>
    %cst_65 = arith.constant dense<0.000000e+00> : vector<32x16xf32>
    %226 = tpu.matmul %225, %14, %cst_65 {dimension_numbers = #tpu.dot_dimension_numbers<[1], [0], [0], [1], [0, 0, 1, 1], [], []>} : vector<32x16xbf16>, vector<16x16xbf16>, vector<32x16xf32> -> vector<32x16xf32>
    %227 = vector.broadcast %11 : vector<1x16xf32> to vector<32x16xf32>
    %228 = arith.mulf %226, %227 : vector<32x16xf32>
    %229 = vector.broadcast %12 : vector<1x16xf32> to vector<32x16xf32>
    %230 = arith.addf %228, %229 : vector<32x16xf32>
    %cst_66 = arith.constant 0.000000e+00 : f32
    %231 = vector.broadcast %cst_66 : f32 to vector<32x16xf32>
    %232 = arith.maximumf %230, %231 : vector<32x16xf32>
    %233 = arith.maximumf %202, %232 : vector<32x16xf32>
    %c0_67 = arith.constant 0 : index
    %c0_68 = arith.constant 0 : index
    %234 = vector.load %arg13[%c0_67, %c0_68] : memref<4x16xbf16, #tpu.memory_space<vmem>>, vector<4x16xbf16>
    %cst_69 = arith.constant dense<0.000000e+00> : vector<32x16xf32>
    %235 = tpu.matmul %1, %234, %cst_69 {dimension_numbers = #tpu.dot_dimension_numbers<[1], [0], [0], [1], [0, 0, 1, 1], [], []>} : vector<32x4xbf16>, vector<4x16xbf16>, vector<32x16xf32> -> vector<32x16xf32>
    %c0_70 = arith.constant 0 : index
    %c0_71 = arith.constant 0 : index
    %236 = vector.load %arg14[%c0_70, %c0_71] : memref<1x16xf32, #tpu.memory_space<vmem>>, vector<1x16xf32>
    %237 = vector.broadcast %236 : vector<1x16xf32> to vector<32x16xf32>
    %238 = arith.mulf %235, %237 : vector<32x16xf32>
    %c0_72 = arith.constant 0 : index
    %c0_73 = arith.constant 0 : index
    %239 = vector.load %arg15[%c0_72, %c0_73] : memref<1x16xf32, #tpu.memory_space<vmem>>, vector<1x16xf32>
    %240 = vector.broadcast %239 : vector<1x16xf32> to vector<32x16xf32>
    %241 = arith.addf %238, %240 : vector<32x16xf32>
    %242 = arith.addf %233, %241 : vector<32x16xf32>
    %cst_74 = arith.constant 0.000000e+00 : f32
    %243 = vector.broadcast %cst_74 : f32 to vector<32x16xf32>
    %244 = arith.maximumf %242, %243 : vector<32x16xf32>
    %c0_75 = arith.constant 0 : index
    %c0_76 = arith.constant 0 : index
    %245 = vector.load %arg16[%c0_75, %c0_76] : memref<32x16xf32, #tpu.memory_space<vmem>>, vector<32x16xf32>
    tpu.vector_store %arg16[%c0_75, %c0_76], %244 {strides = array<i32>} : memref<32x16xf32, #tpu.memory_space<vmem>>, vector<32x16xf32>,
    return
  }
  func.func @transform_0(%arg0: i32) -> (i32, i32) {
    %c0_i32 = arith.constant 0 : i32
    %c0_i32_0 = arith.constant 0 : i32
    return %arg0, %c0_i32 : i32, i32
  }
  func.func @transform_1(%arg0: i32) -> (i32, i32, i32) {
    %c0_i32 = arith.constant 0 : i32
    %c0_i32_0 = arith.constant 0 : i32
    %c0_i32_1 = arith.constant 0 : i32
    return %arg0, %c0_i32, %c0_i32_0 : i32, i32, i32
  }
  func.func @transform_2(%arg0: i32) -> (i32, i32) {
    %c0_i32 = arith.constant 0 : i32
    %c0_i32_0 = arith.constant 0 : i32
    %c0_i32_1 = arith.constant 0 : i32
    return %c0_i32, %c0_i32_0 : i32, i32
  }
  func.func @transform_3(%arg0: i32) -> (i32, i32) {
    %c0_i32 = arith.constant 0 : i32
    %c0_i32_0 = arith.constant 0 : i32
    %c0_i32_1 = arith.constant 0 : i32
    return %c0_i32, %c0_i32_0 : i32, i32
  }
  func.func @transform_4(%arg0: i32) -> (i32, i32) {
    %c0_i32 = arith.constant 0 : i32
    %c0_i32_0 = arith.constant 0 : i32
    %c0_i32_1 = arith.constant 0 : i32
    return %c0_i32, %c0_i32_0 : i32, i32
  }
  func.func @transform_5(%arg0: i32) -> (i32, i32) {
    %c0_i32 = arith.constant 0 : i32
    %c0_i32_0 = arith.constant 0 : i32
    %c0_i32_1 = arith.constant 0 : i32
    return %c0_i32, %c0_i32_0 : i32, i32
  }
  func.func @transform_6(%arg0: i32) -> (i32, i32) {
    %c0_i32 = arith.constant 0 : i32
    %c0_i32_0 = arith.constant 0 : i32
    %c0_i32_1 = arith.constant 0 : i32
    return %c0_i32, %c0_i32_0 : i32, i32
  }
  func.func @transform_7(%arg0: i32) -> (i32, i32) {
    %c0_i32 = arith.constant 0 : i32
    %c0_i32_0 = arith.constant 0 : i32
    %c0_i32_1 = arith.constant 0 : i32
    return %c0_i32, %c0_i32_0 : i32, i32
  }
  func.func @transform_8(%arg0: i32) -> (i32, i32) {
    %c0_i32 = arith.constant 0 : i32
    %c0_i32_0 = arith.constant 0 : i32
    %c0_i32_1 = arith.constant 0 : i32
    return %c0_i32, %c0_i32_0 : i32, i32
  }
  func.func @transform_9(%arg0: i32) -> (i32, i32) {
    %c0_i32 = arith.constant 0 : i32
    %c0_i32_0 = arith.constant 0 : i32
    %c0_i32_1 = arith.constant 0 : i32
    return %c0_i32, %c0_i32_0 : i32, i32
  }
  func.func @transform_10(%arg0: i32) -> (i32, i32) {
    %c0_i32 = arith.constant 0 : i32
    %c0_i32_0 = arith.constant 0 : i32
    %c0_i32_1 = arith.constant 0 : i32
    return %c0_i32, %c0_i32_0 : i32, i32
  }
  func.func @transform_11(%arg0: i32) -> (i32, i32) {
    %c0_i32 = arith.constant 0 : i32
    %c0_i32_0 = arith.constant 0 : i32
    %c0_i32_1 = arith.constant 0 : i32
    return %c0_i32, %c0_i32_0 : i32, i32
  }
  func.func @transform_12(%arg0: i32) -> (i32, i32) {
    %c0_i32 = arith.constant 0 : i32
    %c0_i32_0 = arith.constant 0 : i32
    %c0_i32_1 = arith.constant 0 : i32
    return %c0_i32, %c0_i32_0 : i32, i32
  }
  func.func @transform_13(%arg0: i32) -> (i32, i32) {
    %c0_i32 = arith.constant 0 : i32
    %c0_i32_0 = arith.constant 0 : i32
    %c0_i32_1 = arith.constant 0 : i32
    return %c0_i32, %c0_i32_0 : i32, i32
  }
  func.func @transform_14(%arg0: i32) -> (i32, i32) {
    %c0_i32 = arith.constant 0 : i32
    %c0_i32_0 = arith.constant 0 : i32
    %c0_i32_1 = arith.constant 0 : i32
    return %c0_i32, %c0_i32_0 : i32, i32
  }
  func.func @transform_15(%arg0: i32) -> (i32, i32) {
    %c0_i32 = arith.constant 0 : i32
    %c0_i32_0 = arith.constant 0 : i32
    return %arg0, %c0_i32 : i32, i32
  }
}

module attributes {stable_mosaic.version = 11 : i64} {
  func.func @head_kernel(%arg0: i32, %arg1: memref<2x16x32xf32, #tpu.memory_space<vmem>>, %arg2: memref<32x32xbf16, #tpu.memory_space<vmem>>, %arg3: memref<1x32xf32, #tpu.memory_space<vmem>>, %arg4: memref<32x4xbf16, #tpu.memory_space<vmem>>, %arg5: memref<1x4xf32, #tpu.memory_space<vmem>>, %arg6: memref<2x4xf32, #tpu.memory_space<vmem>>) attributes {dimension_semantics = [#tpu.dimension_semantics<arbitrary>], iteration_bounds = array<i64: 1>, scalar_prefetch = 0 : i64, scratch_operands = 0 : i64, tpu.core_type = #tpu.core_type<tc>, window_params = [{pipeline_mode = #tpu.pipeline_mode<synchronous>, transform_indices = @transform_0, window_bounds = array<i64: 2, 16, 32>}, {pipeline_mode = #tpu.pipeline_mode<synchronous>, transform_indices = @transform_1, window_bounds = array<i64: 32, 32>}, {pipeline_mode = #tpu.pipeline_mode<synchronous>, transform_indices = @transform_2, window_bounds = array<i64: 1, 32>}, {pipeline_mode = #tpu.pipeline_mode<synchronous>, transform_indices = @transform_3, window_bounds = array<i64: 32, 4>}, {pipeline_mode = #tpu.pipeline_mode<synchronous>, transform_indices = @transform_4, window_bounds = array<i64: 1, 4>}, {pipeline_mode = #tpu.pipeline_mode<synchronous>, transform_indices = @transform_5, window_bounds = array<i64: 2, 4>}]} {
    %c0 = arith.constant 0 : index
    %c0_0 = arith.constant 0 : index
    %c0_1 = arith.constant 0 : index
    %0 = vector.load %arg1[%c0, %c0_0, %c0_1] : memref<2x16x32xf32, #tpu.memory_space<vmem>>, vector<2x16x32xf32>
    %cst = arith.constant dense<0.000000e+00> : vector<2x32xf32>
    %1 = vector.multi_reduction <add>, %0, %cst [1] : vector<2x16x32xf32> to vector<2x32xf32>
    %cst_2 = arith.constant 1.600000e+01 : f32
    %2 = vector.broadcast %cst_2 : f32 to vector<2x32xf32>
    %3 = arith.divf %1, %2 : vector<2x32xf32>
    %c0_3 = arith.constant 0 : index
    %c0_4 = arith.constant 0 : index
    %4 = vector.load %arg2[%c0_3, %c0_4] : memref<32x32xbf16, #tpu.memory_space<vmem>>, vector<32x32xbf16>
    %c0_5 = arith.constant 0 : index
    %c0_6 = arith.constant 0 : index
    %5 = vector.load %arg3[%c0_5, %c0_6] : memref<1x32xf32, #tpu.memory_space<vmem>>, vector<1x32xf32>
    %6 = arith.truncf %3 : vector<2x32xf32> to vector<2x32xbf16>
    %cst_7 = arith.constant dense<0.000000e+00> : vector<2x32xf32>
    %7 = tpu.matmul %6, %4, %cst_7 {dimension_numbers = #tpu.dot_dimension_numbers<[1], [0], [0], [1], [0, 0, 1, 1], [], []>} : vector<2x32xbf16>, vector<32x32xbf16>, vector<2x32xf32> -> vector<2x32xf32>
    %8 = vector.broadcast %5 : vector<1x32xf32> to vector<2x32xf32>
    %9 = arith.addf %7, %8 : vector<2x32xf32>
    %cst_8 = arith.constant 0.000000e+00 : f32
    %10 = vector.broadcast %cst_8 : f32 to vector<2x32xf32>
    %11 = arith.maximumf %9, %10 : vector<2x32xf32>
    %c0_9 = arith.constant 0 : index
    %c0_10 = arith.constant 0 : index
    %12 = vector.load %arg4[%c0_9, %c0_10] : memref<32x4xbf16, #tpu.memory_space<vmem>>, vector<32x4xbf16>
    %c0_11 = arith.constant 0 : index
    %c0_12 = arith.constant 0 : index
    %13 = vector.load %arg5[%c0_11, %c0_12] : memref<1x4xf32, #tpu.memory_space<vmem>>, vector<1x4xf32>
    %14 = arith.truncf %11 : vector<2x32xf32> to vector<2x32xbf16>
    %cst_13 = arith.constant dense<0.000000e+00> : vector<2x4xf32>
    %15 = tpu.matmul %14, %12, %cst_13 {dimension_numbers = #tpu.dot_dimension_numbers<[1], [0], [0], [1], [0, 0, 1, 1], [], []>} : vector<2x32xbf16>, vector<32x4xbf16>, vector<2x4xf32> -> vector<2x4xf32>
    %16 = vector.broadcast %13 : vector<1x4xf32> to vector<2x4xf32>
    %17 = arith.addf %15, %16 : vector<2x4xf32>
    %cst_14 = arith.constant dense<0xFF800000> : vector<2xf32>
    %18 = vector.multi_reduction <maximumf>, %17, %cst_14 [1] : vector<2x4xf32> to vector<2xf32>
    %19 = vector.shape_cast %18 : vector<2xf32> to vector<2x1xf32>
    %20 = vector.broadcast %19 : vector<2x1xf32> to vector<2x4xf32>
    %21 = arith.subf %17, %20 : vector<2x4xf32>
    %22 = math.exp %21 : vector<2x4xf32>
    %cst_15 = arith.constant dense<0.000000e+00> : vector<2xf32>
    %23 = vector.multi_reduction <add>, %22, %cst_15 [1] : vector<2x4xf32> to vector<2xf32>
    %24 = vector.shape_cast %23 : vector<2xf32> to vector<2x1xf32>
    %25 = vector.broadcast %24 : vector<2x1xf32> to vector<2x4xf32>
    %26 = arith.divf %22, %25 : vector<2x4xf32>
    %c0_16 = arith.constant 0 : index
    %c0_17 = arith.constant 0 : index
    %27 = vector.load %arg6[%c0_16, %c0_17] : memref<2x4xf32, #tpu.memory_space<vmem>>, vector<2x4xf32>
    tpu.vector_store %arg6[%c0_16, %c0_17], %26 {strides = array<i32>} : memref<2x4xf32, #tpu.memory_space<vmem>>, vector<2x4xf32>,
    return
  }
  func.func @transform_0(%arg0: i32) -> (i32, i32, i32) {
    %c0_i32 = arith.constant 0 : i32
    %c0_i32_0 = arith.constant 0 : i32
    %c0_i32_1 = arith.constant 0 : i32
    %c0_i32_2 = arith.constant 0 : i32
    return %c0_i32, %c0_i32_0, %c0_i32_1 : i32, i32, i32
  }
  func.func @transform_1(%arg0: i32) -> (i32, i32) {
    %c0_i32 = arith.constant 0 : i32
    %c0_i32_0 = arith.constant 0 : i32
    %c0_i32_1 = arith.constant 0 : i32
    return %c0_i32, %c0_i32_0 : i32, i32
  }
  func.func @transform_2(%arg0: i32) -> (i32, i32) {
    %c0_i32 = arith.constant 0 : i32
    %c0_i32_0 = arith.constant 0 : i32
    %c0_i32_1 = arith.constant 0 : i32
    return %c0_i32, %c0_i32_0 : i32, i32
  }
  func.func @transform_3(%arg0: i32) -> (i32, i32) {
    %c0_i32 = arith.constant 0 : i32
    %c0_i32_0 = arith.constant 0 : i32
    %c0_i32_1 = arith.constant 0 : i32
    return %c0_i32, %c0_i32_0 : i32, i32
  }
  func.func @transform_4(%arg0: i32) -> (i32, i32) {
    %c0_i32 = arith.constant 0 : i32
    %c0_i32_0 = arith.constant 0 : i32
    %c0_i32_1 = arith.constant 0 : i32
    return %c0_i32, %c0_i32_0 : i32, i32
  }
  func.func @transform_5(%arg0: i32) -> (i32, i32) {
    %c0_i32 = arith.constant 0 : i32
    %c0_i32_0 = arith.constant 0 : i32
    %c0_i32_1 = arith.constant 0 : i32
    return %c0_i32, %c0_i32_0 : i32, i32
  }
}

module attributes {stable_mosaic.version = 11 : i64} {
  func.func @edgeconv_kernel(%arg0: i32, %arg1: memref<32x16xf32, #tpu.memory_space<vmem>>, %arg2: memref<1x32x7xi32, #tpu.memory_space<vmem>>, %arg3: memref<16x32xbf16, #tpu.memory_space<vmem>>, %arg4: memref<16x32xbf16, #tpu.memory_space<vmem>>, %arg5: memref<1x32xf32, #tpu.memory_space<vmem>>, %arg6: memref<1x32xf32, #tpu.memory_space<vmem>>, %arg7: memref<32x32xbf16, #tpu.memory_space<vmem>>, %arg8: memref<1x32xf32, #tpu.memory_space<vmem>>, %arg9: memref<1x32xf32, #tpu.memory_space<vmem>>, %arg10: memref<32x32xbf16, #tpu.memory_space<vmem>>, %arg11: memref<1x32xf32, #tpu.memory_space<vmem>>, %arg12: memref<1x32xf32, #tpu.memory_space<vmem>>, %arg13: memref<16x32xbf16, #tpu.memory_space<vmem>>, %arg14: memref<1x32xf32, #tpu.memory_space<vmem>>, %arg15: memref<1x32xf32, #tpu.memory_space<vmem>>, %arg16: memref<32x32xf32, #tpu.memory_space<vmem>>) attributes {dimension_semantics = [#tpu.dimension_semantics<parallel>], iteration_bounds = array<i64: 1>, scalar_prefetch = 0 : i64, scratch_operands = 0 : i64, tpu.core_type = #tpu.core_type<tc>, window_params = [{transform_indices = @transform_0, window_bounds = array<i64: 32, 16>}, {transform_indices = @transform_1, window_bounds = array<i64: 1, 32, 7>}, {pipeline_mode = #tpu.pipeline_mode<synchronous>, transform_indices = @transform_2, window_bounds = array<i64: 16, 32>}, {pipeline_mode = #tpu.pipeline_mode<synchronous>, transform_indices = @transform_3, window_bounds = array<i64: 16, 32>}, {pipeline_mode = #tpu.pipeline_mode<synchronous>, transform_indices = @transform_4, window_bounds = array<i64: 1, 32>}, {pipeline_mode = #tpu.pipeline_mode<synchronous>, transform_indices = @transform_5, window_bounds = array<i64: 1, 32>}, {pipeline_mode = #tpu.pipeline_mode<synchronous>, transform_indices = @transform_6, window_bounds = array<i64: 32, 32>}, {pipeline_mode = #tpu.pipeline_mode<synchronous>, transform_indices = @transform_7, window_bounds = array<i64: 1, 32>}, {pipeline_mode = #tpu.pipeline_mode<synchronous>, transform_indices = @transform_8, window_bounds = array<i64: 1, 32>}, {pipeline_mode = #tpu.pipeline_mode<synchronous>, transform_indices = @transform_9, window_bounds = array<i64: 32, 32>}, {pipeline_mode = #tpu.pipeline_mode<synchronous>, transform_indices = @transform_10, window_bounds = array<i64: 1, 32>}, {pipeline_mode = #tpu.pipeline_mode<synchronous>, transform_indices = @transform_11, window_bounds = array<i64: 1, 32>}, {pipeline_mode = #tpu.pipeline_mode<synchronous>, transform_indices = @transform_12, window_bounds = array<i64: 16, 32>}, {pipeline_mode = #tpu.pipeline_mode<synchronous>, transform_indices = @transform_13, window_bounds = array<i64: 1, 32>}, {pipeline_mode = #tpu.pipeline_mode<synchronous>, transform_indices = @transform_14, window_bounds = array<i64: 1, 32>}, {transform_indices = @transform_15, window_bounds = array<i64: 32, 32>}]} {
    %c0 = arith.constant 0 : index
    %c0_0 = arith.constant 0 : index
    %0 = vector.load %arg1[%c0, %c0_0] : memref<32x16xf32, #tpu.memory_space<vmem>>, vector<32x16xf32>
    %1 = arith.truncf %0 : vector<32x16xf32> to vector<32x16xbf16>
    %c0_1 = arith.constant 0 : index
    %c0_2 = arith.constant 0 : index
    %2 = vector.load %arg3[%c0_1, %c0_2] : memref<16x32xbf16, #tpu.memory_space<vmem>>, vector<16x32xbf16>
    %cst = arith.constant dense<0.000000e+00> : vector<32x32xf32>
    %3 = tpu.matmul %1, %2, %cst {dimension_numbers = #tpu.dot_dimension_numbers<[1], [0], [0], [1], [0, 0, 1, 1], [], []>} : vector<32x16xbf16>, vector<16x32xbf16>, vector<32x32xf32> -> vector<32x32xf32>
    %c0_3 = arith.constant 0 : index
    %c0_4 = arith.constant 0 : index
    %4 = vector.load %arg4[%c0_3, %c0_4] : memref<16x32xbf16, #tpu.memory_space<vmem>>, vector<16x32xbf16>
    %cst_5 = arith.constant dense<0.000000e+00> : vector<32x32xf32>
    %5 = tpu.matmul %1, %4, %cst_5 {dimension_numbers = #tpu.dot_dimension_numbers<[1], [0], [0], [1], [0, 0, 1, 1], [], []>} : vector<32x16xbf16>, vector<16x32xbf16>, vector<32x32xf32> -> vector<32x32xf32>
    %6 = arith.truncf %5 : vector<32x32xf32> to vector<32x32xbf16>
    %c0_6 = arith.constant 0 : index
    %c0_7 = arith.constant 0 : index
    %7 = vector.load %arg5[%c0_6, %c0_7] : memref<1x32xf32, #tpu.memory_space<vmem>>, vector<1x32xf32>
    %c0_8 = arith.constant 0 : index
    %c0_9 = arith.constant 0 : index
    %8 = vector.load %arg6[%c0_8, %c0_9] : memref<1x32xf32, #tpu.memory_space<vmem>>, vector<1x32xf32>
    %c0_10 = arith.constant 0 : index
    %c0_11 = arith.constant 0 : index
    %9 = vector.load %arg8[%c0_10, %c0_11] : memref<1x32xf32, #tpu.memory_space<vmem>>, vector<1x32xf32>
    %c0_12 = arith.constant 0 : index
    %c0_13 = arith.constant 0 : index
    %10 = vector.load %arg9[%c0_12, %c0_13] : memref<1x32xf32, #tpu.memory_space<vmem>>, vector<1x32xf32>
    %c0_14 = arith.constant 0 : index
    %c0_15 = arith.constant 0 : index
    %11 = vector.load %arg11[%c0_14, %c0_15] : memref<1x32xf32, #tpu.memory_space<vmem>>, vector<1x32xf32>
    %c0_16 = arith.constant 0 : index
    %c0_17 = arith.constant 0 : index
    %12 = vector.load %arg12[%c0_16, %c0_17] : memref<1x32xf32, #tpu.memory_space<vmem>>, vector<1x32xf32>
    %c0_18 = arith.constant 0 : index
    %c0_19 = arith.constant 0 : index
    %13 = vector.load %arg7[%c0_18, %c0_19] : memref<32x32xbf16, #tpu.memory_space<vmem>>, vector<32x32xbf16>
    %c0_20 = arith.constant 0 : index
    %c0_21 = arith.constant 0 : index
    %14 = vector.load %arg10[%c0_20, %c0_21] : memref<32x32xbf16, #tpu.memory_space<vmem>>, vector<32x32xbf16>
    %c0_22 = arith.constant 0 : index
    %c0_23 = arith.constant 0 : index
    %c0_24 = arith.constant 0 : index
    %15 = vector.load %arg2[%c0_22, %c0_23, %c0_24] : memref<1x32x7xi32, #tpu.memory_space<vmem>>, vector<1x32x7xi32>
    %16 = vector.shape_cast %15 : vector<1x32x7xi32> to vector<32x7xi32>
    %17 = tpu.iota {dimensions = array<i32: 1>} : vector<32x32xi32>
    %18 = vector.extract_strided_slice %16 {offsets = [0, 0], sizes = [32, 1], strides = [1, 1]} : vector<32x7xi32> to vector<32x1xi32>
    %19 = vector.broadcast %18 : vector<32x1xi32> to vector<32x32xi32>
    %20 = arith.cmpi eq, %17, %19 : vector<32x32xi32>
    %21 = arith.extui %20 : vector<32x32xi1> to vector<32x32xi32>
    %22 = arith.sitofp %21 : vector<32x32xi32> to vector<32x32xf32>
    %23 = arith.truncf %22 : vector<32x32xf32> to vector<32x32xbf16>
    %cst_25 = arith.constant dense<0.000000e+00> : vector<32x32xf32>
    %24 = tpu.matmul %23, %6, %cst_25 {dimension_numbers = #tpu.dot_dimension_numbers<[1], [0], [0], [1], [0, 0, 1, 1], [], []>} : vector<32x32xbf16>, vector<32x32xbf16>, vector<32x32xf32> -> vector<32x32xf32>
    %25 = arith.addf %24, %3 : vector<32x32xf32>
    %26 = vector.broadcast %7 : vector<1x32xf32> to vector<32x32xf32>
    %27 = arith.mulf %25, %26 : vector<32x32xf32>
    %28 = vector.broadcast %8 : vector<1x32xf32> to vector<32x32xf32>
    %29 = arith.addf %27, %28 : vector<32x32xf32>
    %cst_26 = arith.constant 0.000000e+00 : f32
    %30 = vector.broadcast %cst_26 : f32 to vector<32x32xf32>
    %31 = arith.maximumf %29, %30 : vector<32x32xf32>
    %32 = arith.truncf %31 : vector<32x32xf32> to vector<32x32xbf16>
    %cst_27 = arith.constant dense<0.000000e+00> : vector<32x32xf32>
    %33 = tpu.matmul %32, %13, %cst_27 {dimension_numbers = #tpu.dot_dimension_numbers<[1], [0], [0], [1], [0, 0, 1, 1], [], []>} : vector<32x32xbf16>, vector<32x32xbf16>, vector<32x32xf32> -> vector<32x32xf32>
    %34 = vector.broadcast %9 : vector<1x32xf32> to vector<32x32xf32>
    %35 = arith.mulf %33, %34 : vector<32x32xf32>
    %36 = vector.broadcast %10 : vector<1x32xf32> to vector<32x32xf32>
    %37 = arith.addf %35, %36 : vector<32x32xf32>
    %cst_28 = arith.constant 0.000000e+00 : f32
    %38 = vector.broadcast %cst_28 : f32 to vector<32x32xf32>
    %39 = arith.maximumf %37, %38 : vector<32x32xf32>
    %40 = arith.truncf %39 : vector<32x32xf32> to vector<32x32xbf16>
    %cst_29 = arith.constant dense<0.000000e+00> : vector<32x32xf32>
    %41 = tpu.matmul %40, %14, %cst_29 {dimension_numbers = #tpu.dot_dimension_numbers<[1], [0], [0], [1], [0, 0, 1, 1], [], []>} : vector<32x32xbf16>, vector<32x32xbf16>, vector<32x32xf32> -> vector<32x32xf32>
    %42 = vector.broadcast %11 : vector<1x32xf32> to vector<32x32xf32>
    %43 = arith.mulf %41, %42 : vector<32x32xf32>
    %44 = vector.broadcast %12 : vector<1x32xf32> to vector<32x32xf32>
    %45 = arith.addf %43, %44 : vector<32x32xf32>
    %cst_30 = arith.constant 0.000000e+00 : f32
    %46 = vector.broadcast %cst_30 : f32 to vector<32x32xf32>
    %47 = arith.maximumf %45, %46 : vector<32x32xf32>
    %48 = vector.extract_strided_slice %16 {offsets = [0, 1], sizes = [32, 1], strides = [1, 1]} : vector<32x7xi32> to vector<32x1xi32>
    %49 = vector.broadcast %48 : vector<32x1xi32> to vector<32x32xi32>
    %50 = arith.cmpi eq, %17, %49 : vector<32x32xi32>
    %51 = arith.extui %50 : vector<32x32xi1> to vector<32x32xi32>
    %52 = arith.sitofp %51 : vector<32x32xi32> to vector<32x32xf32>
    %53 = arith.truncf %52 : vector<32x32xf32> to vector<32x32xbf16>
    %cst_31 = arith.constant dense<0.000000e+00> : vector<32x32xf32>
    %54 = tpu.matmul %53, %6, %cst_31 {dimension_numbers = #tpu.dot_dimension_numbers<[1], [0], [0], [1], [0, 0, 1, 1], [], []>} : vector<32x32xbf16>, vector<32x32xbf16>, vector<32x32xf32> -> vector<32x32xf32>
    %55 = arith.addf %54, %3 : vector<32x32xf32>
    %56 = vector.broadcast %7 : vector<1x32xf32> to vector<32x32xf32>
    %57 = arith.mulf %55, %56 : vector<32x32xf32>
    %58 = vector.broadcast %8 : vector<1x32xf32> to vector<32x32xf32>
    %59 = arith.addf %57, %58 : vector<32x32xf32>
    %cst_32 = arith.constant 0.000000e+00 : f32
    %60 = vector.broadcast %cst_32 : f32 to vector<32x32xf32>
    %61 = arith.maximumf %59, %60 : vector<32x32xf32>
    %62 = arith.truncf %61 : vector<32x32xf32> to vector<32x32xbf16>
    %cst_33 = arith.constant dense<0.000000e+00> : vector<32x32xf32>
    %63 = tpu.matmul %62, %13, %cst_33 {dimension_numbers = #tpu.dot_dimension_numbers<[1], [0], [0], [1], [0, 0, 1, 1], [], []>} : vector<32x32xbf16>, vector<32x32xbf16>, vector<32x32xf32> -> vector<32x32xf32>
    %64 = vector.broadcast %9 : vector<1x32xf32> to vector<32x32xf32>
    %65 = arith.mulf %63, %64 : vector<32x32xf32>
    %66 = vector.broadcast %10 : vector<1x32xf32> to vector<32x32xf32>
    %67 = arith.addf %65, %66 : vector<32x32xf32>
    %cst_34 = arith.constant 0.000000e+00 : f32
    %68 = vector.broadcast %cst_34 : f32 to vector<32x32xf32>
    %69 = arith.maximumf %67, %68 : vector<32x32xf32>
    %70 = arith.truncf %69 : vector<32x32xf32> to vector<32x32xbf16>
    %cst_35 = arith.constant dense<0.000000e+00> : vector<32x32xf32>
    %71 = tpu.matmul %70, %14, %cst_35 {dimension_numbers = #tpu.dot_dimension_numbers<[1], [0], [0], [1], [0, 0, 1, 1], [], []>} : vector<32x32xbf16>, vector<32x32xbf16>, vector<32x32xf32> -> vector<32x32xf32>
    %72 = vector.broadcast %11 : vector<1x32xf32> to vector<32x32xf32>
    %73 = arith.mulf %71, %72 : vector<32x32xf32>
    %74 = vector.broadcast %12 : vector<1x32xf32> to vector<32x32xf32>
    %75 = arith.addf %73, %74 : vector<32x32xf32>
    %cst_36 = arith.constant 0.000000e+00 : f32
    %76 = vector.broadcast %cst_36 : f32 to vector<32x32xf32>
    %77 = arith.maximumf %75, %76 : vector<32x32xf32>
    %78 = arith.maximumf %47, %77 : vector<32x32xf32>
    %79 = vector.extract_strided_slice %16 {offsets = [0, 2], sizes = [32, 1], strides = [1, 1]} : vector<32x7xi32> to vector<32x1xi32>
    %80 = vector.broadcast %79 : vector<32x1xi32> to vector<32x32xi32>
    %81 = arith.cmpi eq, %17, %80 : vector<32x32xi32>
    %82 = arith.extui %81 : vector<32x32xi1> to vector<32x32xi32>
    %83 = arith.sitofp %82 : vector<32x32xi32> to vector<32x32xf32>
    %84 = arith.truncf %83 : vector<32x32xf32> to vector<32x32xbf16>
    %cst_37 = arith.constant dense<0.000000e+00> : vector<32x32xf32>
    %85 = tpu.matmul %84, %6, %cst_37 {dimension_numbers = #tpu.dot_dimension_numbers<[1], [0], [0], [1], [0, 0, 1, 1], [], []>} : vector<32x32xbf16>, vector<32x32xbf16>, vector<32x32xf32> -> vector<32x32xf32>
    %86 = arith.addf %85, %3 : vector<32x32xf32>
    %87 = vector.broadcast %7 : vector<1x32xf32> to vector<32x32xf32>
    %88 = arith.mulf %86, %87 : vector<32x32xf32>
    %89 = vector.broadcast %8 : vector<1x32xf32> to vector<32x32xf32>
    %90 = arith.addf %88, %89 : vector<32x32xf32>
    %cst_38 = arith.constant 0.000000e+00 : f32
    %91 = vector.broadcast %cst_38 : f32 to vector<32x32xf32>
    %92 = arith.maximumf %90, %91 : vector<32x32xf32>
    %93 = arith.truncf %92 : vector<32x32xf32> to vector<32x32xbf16>
    %cst_39 = arith.constant dense<0.000000e+00> : vector<32x32xf32>
    %94 = tpu.matmul %93, %13, %cst_39 {dimension_numbers = #tpu.dot_dimension_numbers<[1], [0], [0], [1], [0, 0, 1, 1], [], []>} : vector<32x32xbf16>, vector<32x32xbf16>, vector<32x32xf32> -> vector<32x32xf32>
    %95 = vector.broadcast %9 : vector<1x32xf32> to vector<32x32xf32>
    %96 = arith.mulf %94, %95 : vector<32x32xf32>
    %97 = vector.broadcast %10 : vector<1x32xf32> to vector<32x32xf32>
    %98 = arith.addf %96, %97 : vector<32x32xf32>
    %cst_40 = arith.constant 0.000000e+00 : f32
    %99 = vector.broadcast %cst_40 : f32 to vector<32x32xf32>
    %100 = arith.maximumf %98, %99 : vector<32x32xf32>
    %101 = arith.truncf %100 : vector<32x32xf32> to vector<32x32xbf16>
    %cst_41 = arith.constant dense<0.000000e+00> : vector<32x32xf32>
    %102 = tpu.matmul %101, %14, %cst_41 {dimension_numbers = #tpu.dot_dimension_numbers<[1], [0], [0], [1], [0, 0, 1, 1], [], []>} : vector<32x32xbf16>, vector<32x32xbf16>, vector<32x32xf32> -> vector<32x32xf32>
    %103 = vector.broadcast %11 : vector<1x32xf32> to vector<32x32xf32>
    %104 = arith.mulf %102, %103 : vector<32x32xf32>
    %105 = vector.broadcast %12 : vector<1x32xf32> to vector<32x32xf32>
    %106 = arith.addf %104, %105 : vector<32x32xf32>
    %cst_42 = arith.constant 0.000000e+00 : f32
    %107 = vector.broadcast %cst_42 : f32 to vector<32x32xf32>
    %108 = arith.maximumf %106, %107 : vector<32x32xf32>
    %109 = arith.maximumf %78, %108 : vector<32x32xf32>
    %110 = vector.extract_strided_slice %16 {offsets = [0, 3], sizes = [32, 1], strides = [1, 1]} : vector<32x7xi32> to vector<32x1xi32>
    %111 = vector.broadcast %110 : vector<32x1xi32> to vector<32x32xi32>
    %112 = arith.cmpi eq, %17, %111 : vector<32x32xi32>
    %113 = arith.extui %112 : vector<32x32xi1> to vector<32x32xi32>
    %114 = arith.sitofp %113 : vector<32x32xi32> to vector<32x32xf32>
    %115 = arith.truncf %114 : vector<32x32xf32> to vector<32x32xbf16>
    %cst_43 = arith.constant dense<0.000000e+00> : vector<32x32xf32>
    %116 = tpu.matmul %115, %6, %cst_43 {dimension_numbers = #tpu.dot_dimension_numbers<[1], [0], [0], [1], [0, 0, 1, 1], [], []>} : vector<32x32xbf16>, vector<32x32xbf16>, vector<32x32xf32> -> vector<32x32xf32>
    %117 = arith.addf %116, %3 : vector<32x32xf32>
    %118 = vector.broadcast %7 : vector<1x32xf32> to vector<32x32xf32>
    %119 = arith.mulf %117, %118 : vector<32x32xf32>
    %120 = vector.broadcast %8 : vector<1x32xf32> to vector<32x32xf32>
    %121 = arith.addf %119, %120 : vector<32x32xf32>
    %cst_44 = arith.constant 0.000000e+00 : f32
    %122 = vector.broadcast %cst_44 : f32 to vector<32x32xf32>
    %123 = arith.maximumf %121, %122 : vector<32x32xf32>
    %124 = arith.truncf %123 : vector<32x32xf32> to vector<32x32xbf16>
    %cst_45 = arith.constant dense<0.000000e+00> : vector<32x32xf32>
    %125 = tpu.matmul %124, %13, %cst_45 {dimension_numbers = #tpu.dot_dimension_numbers<[1], [0], [0], [1], [0, 0, 1, 1], [], []>} : vector<32x32xbf16>, vector<32x32xbf16>, vector<32x32xf32> -> vector<32x32xf32>
    %126 = vector.broadcast %9 : vector<1x32xf32> to vector<32x32xf32>
    %127 = arith.mulf %125, %126 : vector<32x32xf32>
    %128 = vector.broadcast %10 : vector<1x32xf32> to vector<32x32xf32>
    %129 = arith.addf %127, %128 : vector<32x32xf32>
    %cst_46 = arith.constant 0.000000e+00 : f32
    %130 = vector.broadcast %cst_46 : f32 to vector<32x32xf32>
    %131 = arith.maximumf %129, %130 : vector<32x32xf32>
    %132 = arith.truncf %131 : vector<32x32xf32> to vector<32x32xbf16>
    %cst_47 = arith.constant dense<0.000000e+00> : vector<32x32xf32>
    %133 = tpu.matmul %132, %14, %cst_47 {dimension_numbers = #tpu.dot_dimension_numbers<[1], [0], [0], [1], [0, 0, 1, 1], [], []>} : vector<32x32xbf16>, vector<32x32xbf16>, vector<32x32xf32> -> vector<32x32xf32>
    %134 = vector.broadcast %11 : vector<1x32xf32> to vector<32x32xf32>
    %135 = arith.mulf %133, %134 : vector<32x32xf32>
    %136 = vector.broadcast %12 : vector<1x32xf32> to vector<32x32xf32>
    %137 = arith.addf %135, %136 : vector<32x32xf32>
    %cst_48 = arith.constant 0.000000e+00 : f32
    %138 = vector.broadcast %cst_48 : f32 to vector<32x32xf32>
    %139 = arith.maximumf %137, %138 : vector<32x32xf32>
    %140 = arith.maximumf %109, %139 : vector<32x32xf32>
    %141 = vector.extract_strided_slice %16 {offsets = [0, 4], sizes = [32, 1], strides = [1, 1]} : vector<32x7xi32> to vector<32x1xi32>
    %142 = vector.broadcast %141 : vector<32x1xi32> to vector<32x32xi32>
    %143 = arith.cmpi eq, %17, %142 : vector<32x32xi32>
    %144 = arith.extui %143 : vector<32x32xi1> to vector<32x32xi32>
    %145 = arith.sitofp %144 : vector<32x32xi32> to vector<32x32xf32>
    %146 = arith.truncf %145 : vector<32x32xf32> to vector<32x32xbf16>
    %cst_49 = arith.constant dense<0.000000e+00> : vector<32x32xf32>
    %147 = tpu.matmul %146, %6, %cst_49 {dimension_numbers = #tpu.dot_dimension_numbers<[1], [0], [0], [1], [0, 0, 1, 1], [], []>} : vector<32x32xbf16>, vector<32x32xbf16>, vector<32x32xf32> -> vector<32x32xf32>
    %148 = arith.addf %147, %3 : vector<32x32xf32>
    %149 = vector.broadcast %7 : vector<1x32xf32> to vector<32x32xf32>
    %150 = arith.mulf %148, %149 : vector<32x32xf32>
    %151 = vector.broadcast %8 : vector<1x32xf32> to vector<32x32xf32>
    %152 = arith.addf %150, %151 : vector<32x32xf32>
    %cst_50 = arith.constant 0.000000e+00 : f32
    %153 = vector.broadcast %cst_50 : f32 to vector<32x32xf32>
    %154 = arith.maximumf %152, %153 : vector<32x32xf32>
    %155 = arith.truncf %154 : vector<32x32xf32> to vector<32x32xbf16>
    %cst_51 = arith.constant dense<0.000000e+00> : vector<32x32xf32>
    %156 = tpu.matmul %155, %13, %cst_51 {dimension_numbers = #tpu.dot_dimension_numbers<[1], [0], [0], [1], [0, 0, 1, 1], [], []>} : vector<32x32xbf16>, vector<32x32xbf16>, vector<32x32xf32> -> vector<32x32xf32>
    %157 = vector.broadcast %9 : vector<1x32xf32> to vector<32x32xf32>
    %158 = arith.mulf %156, %157 : vector<32x32xf32>
    %159 = vector.broadcast %10 : vector<1x32xf32> to vector<32x32xf32>
    %160 = arith.addf %158, %159 : vector<32x32xf32>
    %cst_52 = arith.constant 0.000000e+00 : f32
    %161 = vector.broadcast %cst_52 : f32 to vector<32x32xf32>
    %162 = arith.maximumf %160, %161 : vector<32x32xf32>
    %163 = arith.truncf %162 : vector<32x32xf32> to vector<32x32xbf16>
    %cst_53 = arith.constant dense<0.000000e+00> : vector<32x32xf32>
    %164 = tpu.matmul %163, %14, %cst_53 {dimension_numbers = #tpu.dot_dimension_numbers<[1], [0], [0], [1], [0, 0, 1, 1], [], []>} : vector<32x32xbf16>, vector<32x32xbf16>, vector<32x32xf32> -> vector<32x32xf32>
    %165 = vector.broadcast %11 : vector<1x32xf32> to vector<32x32xf32>
    %166 = arith.mulf %164, %165 : vector<32x32xf32>
    %167 = vector.broadcast %12 : vector<1x32xf32> to vector<32x32xf32>
    %168 = arith.addf %166, %167 : vector<32x32xf32>
    %cst_54 = arith.constant 0.000000e+00 : f32
    %169 = vector.broadcast %cst_54 : f32 to vector<32x32xf32>
    %170 = arith.maximumf %168, %169 : vector<32x32xf32>
    %171 = arith.maximumf %140, %170 : vector<32x32xf32>
    %172 = vector.extract_strided_slice %16 {offsets = [0, 5], sizes = [32, 1], strides = [1, 1]} : vector<32x7xi32> to vector<32x1xi32>
    %173 = vector.broadcast %172 : vector<32x1xi32> to vector<32x32xi32>
    %174 = arith.cmpi eq, %17, %173 : vector<32x32xi32>
    %175 = arith.extui %174 : vector<32x32xi1> to vector<32x32xi32>
    %176 = arith.sitofp %175 : vector<32x32xi32> to vector<32x32xf32>
    %177 = arith.truncf %176 : vector<32x32xf32> to vector<32x32xbf16>
    %cst_55 = arith.constant dense<0.000000e+00> : vector<32x32xf32>
    %178 = tpu.matmul %177, %6, %cst_55 {dimension_numbers = #tpu.dot_dimension_numbers<[1], [0], [0], [1], [0, 0, 1, 1], [], []>} : vector<32x32xbf16>, vector<32x32xbf16>, vector<32x32xf32> -> vector<32x32xf32>
    %179 = arith.addf %178, %3 : vector<32x32xf32>
    %180 = vector.broadcast %7 : vector<1x32xf32> to vector<32x32xf32>
    %181 = arith.mulf %179, %180 : vector<32x32xf32>
    %182 = vector.broadcast %8 : vector<1x32xf32> to vector<32x32xf32>
    %183 = arith.addf %181, %182 : vector<32x32xf32>
    %cst_56 = arith.constant 0.000000e+00 : f32
    %184 = vector.broadcast %cst_56 : f32 to vector<32x32xf32>
    %185 = arith.maximumf %183, %184 : vector<32x32xf32>
    %186 = arith.truncf %185 : vector<32x32xf32> to vector<32x32xbf16>
    %cst_57 = arith.constant dense<0.000000e+00> : vector<32x32xf32>
    %187 = tpu.matmul %186, %13, %cst_57 {dimension_numbers = #tpu.dot_dimension_numbers<[1], [0], [0], [1], [0, 0, 1, 1], [], []>} : vector<32x32xbf16>, vector<32x32xbf16>, vector<32x32xf32> -> vector<32x32xf32>
    %188 = vector.broadcast %9 : vector<1x32xf32> to vector<32x32xf32>
    %189 = arith.mulf %187, %188 : vector<32x32xf32>
    %190 = vector.broadcast %10 : vector<1x32xf32> to vector<32x32xf32>
    %191 = arith.addf %189, %190 : vector<32x32xf32>
    %cst_58 = arith.constant 0.000000e+00 : f32
    %192 = vector.broadcast %cst_58 : f32 to vector<32x32xf32>
    %193 = arith.maximumf %191, %192 : vector<32x32xf32>
    %194 = arith.truncf %193 : vector<32x32xf32> to vector<32x32xbf16>
    %cst_59 = arith.constant dense<0.000000e+00> : vector<32x32xf32>
    %195 = tpu.matmul %194, %14, %cst_59 {dimension_numbers = #tpu.dot_dimension_numbers<[1], [0], [0], [1], [0, 0, 1, 1], [], []>} : vector<32x32xbf16>, vector<32x32xbf16>, vector<32x32xf32> -> vector<32x32xf32>
    %196 = vector.broadcast %11 : vector<1x32xf32> to vector<32x32xf32>
    %197 = arith.mulf %195, %196 : vector<32x32xf32>
    %198 = vector.broadcast %12 : vector<1x32xf32> to vector<32x32xf32>
    %199 = arith.addf %197, %198 : vector<32x32xf32>
    %cst_60 = arith.constant 0.000000e+00 : f32
    %200 = vector.broadcast %cst_60 : f32 to vector<32x32xf32>
    %201 = arith.maximumf %199, %200 : vector<32x32xf32>
    %202 = arith.maximumf %171, %201 : vector<32x32xf32>
    %203 = vector.extract_strided_slice %16 {offsets = [0, 6], sizes = [32, 1], strides = [1, 1]} : vector<32x7xi32> to vector<32x1xi32>
    %204 = vector.broadcast %203 : vector<32x1xi32> to vector<32x32xi32>
    %205 = arith.cmpi eq, %17, %204 : vector<32x32xi32>
    %206 = arith.extui %205 : vector<32x32xi1> to vector<32x32xi32>
    %207 = arith.sitofp %206 : vector<32x32xi32> to vector<32x32xf32>
    %208 = arith.truncf %207 : vector<32x32xf32> to vector<32x32xbf16>
    %cst_61 = arith.constant dense<0.000000e+00> : vector<32x32xf32>
    %209 = tpu.matmul %208, %6, %cst_61 {dimension_numbers = #tpu.dot_dimension_numbers<[1], [0], [0], [1], [0, 0, 1, 1], [], []>} : vector<32x32xbf16>, vector<32x32xbf16>, vector<32x32xf32> -> vector<32x32xf32>
    %210 = arith.addf %209, %3 : vector<32x32xf32>
    %211 = vector.broadcast %7 : vector<1x32xf32> to vector<32x32xf32>
    %212 = arith.mulf %210, %211 : vector<32x32xf32>
    %213 = vector.broadcast %8 : vector<1x32xf32> to vector<32x32xf32>
    %214 = arith.addf %212, %213 : vector<32x32xf32>
    %cst_62 = arith.constant 0.000000e+00 : f32
    %215 = vector.broadcast %cst_62 : f32 to vector<32x32xf32>
    %216 = arith.maximumf %214, %215 : vector<32x32xf32>
    %217 = arith.truncf %216 : vector<32x32xf32> to vector<32x32xbf16>
    %cst_63 = arith.constant dense<0.000000e+00> : vector<32x32xf32>
    %218 = tpu.matmul %217, %13, %cst_63 {dimension_numbers = #tpu.dot_dimension_numbers<[1], [0], [0], [1], [0, 0, 1, 1], [], []>} : vector<32x32xbf16>, vector<32x32xbf16>, vector<32x32xf32> -> vector<32x32xf32>
    %219 = vector.broadcast %9 : vector<1x32xf32> to vector<32x32xf32>
    %220 = arith.mulf %218, %219 : vector<32x32xf32>
    %221 = vector.broadcast %10 : vector<1x32xf32> to vector<32x32xf32>
    %222 = arith.addf %220, %221 : vector<32x32xf32>
    %cst_64 = arith.constant 0.000000e+00 : f32
    %223 = vector.broadcast %cst_64 : f32 to vector<32x32xf32>
    %224 = arith.maximumf %222, %223 : vector<32x32xf32>
    %225 = arith.truncf %224 : vector<32x32xf32> to vector<32x32xbf16>
    %cst_65 = arith.constant dense<0.000000e+00> : vector<32x32xf32>
    %226 = tpu.matmul %225, %14, %cst_65 {dimension_numbers = #tpu.dot_dimension_numbers<[1], [0], [0], [1], [0, 0, 1, 1], [], []>} : vector<32x32xbf16>, vector<32x32xbf16>, vector<32x32xf32> -> vector<32x32xf32>
    %227 = vector.broadcast %11 : vector<1x32xf32> to vector<32x32xf32>
    %228 = arith.mulf %226, %227 : vector<32x32xf32>
    %229 = vector.broadcast %12 : vector<1x32xf32> to vector<32x32xf32>
    %230 = arith.addf %228, %229 : vector<32x32xf32>
    %cst_66 = arith.constant 0.000000e+00 : f32
    %231 = vector.broadcast %cst_66 : f32 to vector<32x32xf32>
    %232 = arith.maximumf %230, %231 : vector<32x32xf32>
    %233 = arith.maximumf %202, %232 : vector<32x32xf32>
    %c0_67 = arith.constant 0 : index
    %c0_68 = arith.constant 0 : index
    %234 = vector.load %arg13[%c0_67, %c0_68] : memref<16x32xbf16, #tpu.memory_space<vmem>>, vector<16x32xbf16>
    %cst_69 = arith.constant dense<0.000000e+00> : vector<32x32xf32>
    %235 = tpu.matmul %1, %234, %cst_69 {dimension_numbers = #tpu.dot_dimension_numbers<[1], [0], [0], [1], [0, 0, 1, 1], [], []>} : vector<32x16xbf16>, vector<16x32xbf16>, vector<32x32xf32> -> vector<32x32xf32>
    %c0_70 = arith.constant 0 : index
    %c0_71 = arith.constant 0 : index
    %236 = vector.load %arg14[%c0_70, %c0_71] : memref<1x32xf32, #tpu.memory_space<vmem>>, vector<1x32xf32>
    %237 = vector.broadcast %236 : vector<1x32xf32> to vector<32x32xf32>
    %238 = arith.mulf %235, %237 : vector<32x32xf32>
    %c0_72 = arith.constant 0 : index
    %c0_73 = arith.constant 0 : index
    %239 = vector.load %arg15[%c0_72, %c0_73] : memref<1x32xf32, #tpu.memory_space<vmem>>, vector<1x32xf32>
    %240 = vector.broadcast %239 : vector<1x32xf32> to vector<32x32xf32>
    %241 = arith.addf %238, %240 : vector<32x32xf32>
    %242 = arith.addf %233, %241 : vector<32x32xf32>
    %cst_74 = arith.constant 0.000000e+00 : f32
    %243 = vector.broadcast %cst_74 : f32 to vector<32x32xf32>
    %244 = arith.maximumf %242, %243 : vector<32x32xf32>
    %c0_75 = arith.constant 0 : index
    %c0_76 = arith.constant 0 : index
    %245 = vector.load %arg16[%c0_75, %c0_76] : memref<32x32xf32, #tpu.memory_space<vmem>>, vector<32x32xf32>
    tpu.vector_store %arg16[%c0_75, %c0_76], %244 {strides = array<i32>} : memref<32x32xf32, #tpu.memory_space<vmem>>, vector<32x32xf32>,
    return
  }
  func.func @transform_0(%arg0: i32) -> (i32, i32) {
    %c0_i32 = arith.constant 0 : i32
    %c0_i32_0 = arith.constant 0 : i32
    return %arg0, %c0_i32 : i32, i32
  }
  func.func @transform_1(%arg0: i32) -> (i32, i32, i32) {
    %c0_i32 = arith.constant 0 : i32
    %c0_i32_0 = arith.constant 0 : i32
    %c0_i32_1 = arith.constant 0 : i32
    return %arg0, %c0_i32, %c0_i32_0 : i32, i32, i32
  }
  func.func @transform_2(%arg0: i32) -> (i32, i32) {
    %c0_i32 = arith.constant 0 : i32
    %c0_i32_0 = arith.constant 0 : i32
    %c0_i32_1 = arith.constant 0 : i32
    return %c0_i32, %c0_i32_0 : i32, i32
  }
  func.func @transform_3(%arg0: i32) -> (i32, i32) {
    %c0_i32 = arith.constant 0 : i32
    %c0_i32_0 = arith.constant 0 : i32
    %c0_i32_1 = arith.constant 0 : i32
    return %c0_i32, %c0_i32_0 : i32, i32
  }
  func.func @transform_4(%arg0: i32) -> (i32, i32) {
    %c0_i32 = arith.constant 0 : i32
    %c0_i32_0 = arith.constant 0 : i32
    %c0_i32_1 = arith.constant 0 : i32
    return %c0_i32, %c0_i32_0 : i32, i32
  }
  func.func @transform_5(%arg0: i32) -> (i32, i32) {
    %c0_i32 = arith.constant 0 : i32
    %c0_i32_0 = arith.constant 0 : i32
    %c0_i32_1 = arith.constant 0 : i32
    return %c0_i32, %c0_i32_0 : i32, i32
  }
  func.func @transform_6(%arg0: i32) -> (i32, i32) {
    %c0_i32 = arith.constant 0 : i32
    %c0_i32_0 = arith.constant 0 : i32
    %c0_i32_1 = arith.constant 0 : i32
    return %c0_i32, %c0_i32_0 : i32, i32
  }
  func.func @transform_7(%arg0: i32) -> (i32, i32) {
    %c0_i32 = arith.constant 0 : i32
    %c0_i32_0 = arith.constant 0 : i32
    %c0_i32_1 = arith.constant 0 : i32
    return %c0_i32, %c0_i32_0 : i32, i32
  }
  func.func @transform_8(%arg0: i32) -> (i32, i32) {
    %c0_i32 = arith.constant 0 : i32
    %c0_i32_0 = arith.constant 0 : i32
    %c0_i32_1 = arith.constant 0 : i32
    return %c0_i32, %c0_i32_0 : i32, i32
  }
  func.func @transform_9(%arg0: i32) -> (i32, i32) {
    %c0_i32 = arith.constant 0 : i32
    %c0_i32_0 = arith.constant 0 : i32
    %c0_i32_1 = arith.constant 0 : i32
    return %c0_i32, %c0_i32_0 : i32, i32
  }
  func.func @transform_10(%arg0: i32) -> (i32, i32) {
    %c0_i32 = arith.constant 0 : i32
    %c0_i32_0 = arith.constant 0 : i32
    %c0_i32_1 = arith.constant 0 : i32
    return %c0_i32, %c0_i32_0 : i32, i32
  }
  func.func @transform_11(%arg0: i32) -> (i32, i32) {
    %c0_i32 = arith.constant 0 : i32
    %c0_i32_0 = arith.constant 0 : i32
    %c0_i32_1 = arith.constant 0 : i32
    return %c0_i32, %c0_i32_0 : i32, i32
  }
  func.func @transform_12(%arg0: i32) -> (i32, i32) {
    %c0_i32 = arith.constant 0 : i32
    %c0_i32_0 = arith.constant 0 : i32
    %c0_i32_1 = arith.constant 0 : i32
    return %c0_i32, %c0_i32_0 : i32, i32
  }
  func.func @transform_13(%arg0: i32) -> (i32, i32) {
    %c0_i32 = arith.constant 0 : i32
    %c0_i32_0 = arith.constant 0 : i32
    %c0_i32_1 = arith.constant 0 : i32
    return %c0_i32, %c0_i32_0 : i32, i32
  }
  func.func @transform_14(%arg0: i32) -> (i32, i32) {
    %c0_i32 = arith.constant 0 : i32
    %c0_i32_0 = arith.constant 0 : i32
    %c0_i32_1 = arith.constant 0 : i32
    return %c0_i32, %c0_i32_0 : i32, i32
  }
  func.func @transform_15(%arg0: i32) -> (i32, i32) {
    %c0_i32 = arith.constant 0 : i32
    %c0_i32_0 = arith.constant 0 : i32
    return %arg0, %c0_i32 : i32, i32
  }
}

</mosaic_0001>

<llo_original>
// kernel: _lambda_.5
$region0: #{_lambda_.5}
  #allocation0 [shape = 'u32[]', space=smem, size = 0x4, offset = 0x4, fixed_abs, tag = 'smem constant byte address 0x4 - core index']
  #allocation1 [shape = 'u32[144,128]{1,0:T(1,128)}', space=vmem, size = 0x12000, scoped, tag = 'internal scratch']
  %s0 = inlined_call_operand.hbm [shape: f32[2,16,32], index: 0, kind: input, shape index: {}]
  %s1 = inlined_call_operand.vmem [shape: bf16[32,32], index: 1, kind: input, shape index: {}]
  %s2 = inlined_call_operand.vmem [shape: f32[1,32], index: 2, kind: input, shape index: {}]
  %s3 = inlined_call_operand.vmem [shape: bf16[32,4], index: 3, kind: input, shape index: {}]
  %s4 = inlined_call_operand.vmem [shape: f32[1,4], index: 4, kind: input, shape index: {}]
  %s5 = inlined_call_operand.hbm [shape: f32[2,4], index: 5, kind: output, shape index: {}]
  %s6 = sld [smem:[#allocation0]]
  $region34: #{_lambda_.5} parent=0
    _
  %s8 = ssub.s32 1, %s6
  %s9 = scalar_select 0, %s8, %s6
  $region1: #{_lambda_.5} parent=0
    #allocation2 [shape = 'u8[16384]{0}', space=vmem, size = 0x4000, scoped, tag = 'input window, operand 0, single buffered']
    #allocation3 [shape = 's32[1]{0}', space=sflag, size = 0x4, scoped, tag = 'scoped memory for _lambda_.5']
    #allocation4 [shape = 's32[1]{0}', space=sflag, size = 0x4, scoped, tag = 'scoped memory for _lambda_.5']
    #allocation5 [shape = 'u8[1024]{0}', space=vmem, size = 0x400, scoped, tag = 'output window, operand 0, single buffered']
    %10 = vsyncpa [#allocation3], 0
    %11 = vsyncpa [#allocation4], 0
    // Predicated region
    $region2: #{_lambda_.5} parent=1 // pred_check
      _
    $region3: #{_lambda_.5} parent=1 // pred_check_branch
      %13 = sbr.rel (0) target = $region5
    $region4: #{_lambda_.5} parent=1 // pred_region
      %s15 = ssub.s32 512, 512
      %16 = vsyncadd [#allocation3], %s15
      %s17 = sshll.u32 [#allocation2], 4
      %s18 = int_to_ptr.vmem [resolvable:$true] %s17
      %23 = dma.hbm_to_vmem [thread:$0]  %s0, 512, %s18, [#allocation3], 128, 128, 8
    $region5: #{_lambda_.5} parent=1 // pred_fallthru
      _
    // Predicated region
    $region6: #{_lambda_.5} parent=1 // pred_check
      _
    $region7: #{_lambda_.5} parent=1 // pred_check_branch
      %25 = sbr.rel (0) target = $region9
    $region8: #{_lambda_.5} parent=1 // pred_region
      _
    $region9: #{_lambda_.5} parent=1 // pred_fallthru
      _
    // Predicated region
    $region10: #{_lambda_.5} parent=1 // pred_check
      _
    $region11: #{_lambda_.5} parent=1 // pred_check_branch
      %27 = sbr.rel (0) target = $region13
    $region12: #{_lambda_.5} parent=1 // pred_region
      _
    $region13: #{_lambda_.5} parent=1 // pred_fallthru
      _
    // Predicated region
    $region14: #{_lambda_.5} parent=1 // pred_check
      _
    $region15: #{_lambda_.5} parent=1 // pred_check_branch
      %29 = sbr.rel (0) target = $region17
    $region16: #{_lambda_.5} parent=1 // pred_region
      _
    $region17: #{_lambda_.5} parent=1 // pred_fallthru
      _
    // Predicated region
    $region18: #{_lambda_.5} parent=1 // pred_check
      _
    $region19: #{_lambda_.5} parent=1 // pred_check_branch
      %31 = sbr.rel (0) target = $region21
    $region20: #{_lambda_.5} parent=1 // pred_region
      _
    $region21: #{_lambda_.5} parent=1 // pred_fallthru
      _
    // Predicated region
    $region22: #{_lambda_.5} parent=1 // pred_check
      _
    $region23: #{_lambda_.5} parent=1 // pred_check_branch
      %33 = sbr.rel (0) target = $region25
    $region24: #{_lambda_.5} parent=1 // pred_region
      %34 = dma.done [#allocation3], 512
    $region25: #{_lambda_.5} parent=1 // pred_fallthru
      _
    %v36 = vld [vmem:[#allocation2] sm:$0xff]
    %v37 = vld [vmem:[#allocation2 + $0x8] sm:$0xff]
    %v38 = vld [vmem:[#allocation2 + $0x10] sm:$0xff]
    %v39 = vld [vmem:[#allocation2 + $0x18] sm:$0xff]
    %vm40 = vcmask 261120
    %v41 = vsel %vm40, %v36, 0.0
    %v42 = vsel %vm40, %v37, 0.0
    %v43 = vadd.f32 %v41, %v42
    %v44 = vrot.slane %v43, 4
    %v45 = vadd.f32 %v43, %v44
    %v46 = vrot.slane %v45, 2
    %v47 = vadd.f32 %v45, %v46
    %v48 = vrot.slane %v47, 1
    %v49 = vadd.f32 %v47, %v48
    %v50 = vsel %vm40, %v38, 0.0
    %v51 = vsel %vm40, %v39, 0.0
    %v52 = vadd.f32 %v50, %v51
    %v53 = vrot.slane %v52, 4
    %v54 = vadd.f32 %v52, %v53
    %v55 = vrot.slane %v54, 2
    %v56 = vadd.f32 %v54, %v55
    %v57 = vrot.slane %v56, 1
    %v58 = vadd.f32 %v56, %v57
    %v59 = vrcp.pop 16.0
    %v60 = vmul.f32 %v49, %v59
    %v61 = vmul.f32 %v58, %v59
    %v62 = vld [vmem:[%s1] sm:$0xf]
    %v63 = vld [vmem:[%s1 + $0x4] sm:$0xf]
    %v64 = vld [vmem:[%s1 + $0x8] sm:$0xf]
    %v65 = vld [vmem:[%s1 + $0xc] sm:$0xf]
    %v66 = vld [vmem:[%s2] sm:$0x1]
    %v67 = vpack.c.bf16 %v60, %v60
    %v68 = vpack.c.bf16 %v61, %v61
    %v70 = vlaneseq
    %v71 = vshrl.u32 %v70, 7
    %v72 = vsub.s32 0, %v71
    %v73 = vrot.slane %v66, %v72
    %v77 = vunpack.c.l.b16 %v67
    %v78 = vunpack.c.l.b16 %v68
    %vm79 = vcmask 1041409
    %v80 = vsel %vm79, %v78, %v77
    %v81 = vpack.c.b16 %v80, %v80
    %v86 = vunpack.c.l.b16 %v62
    %v87 = vunpack.c.l.b16 %v63
    %v88 = vunpack.c.l.b16 %v64
    %v89 = vunpack.c.l.b16 %v65
    %v90 = vpack.c.b16 %v87, %v86
    %v91 = vpack.c.b16 %v89, %v88
    %v95 = vsel %vm40, %v81, 0
    %97 = vmatprep.subr.bf16.mxu0 0
    %98 = vmatpush1.bf16.msra.mxu0 %v90
    %99 = vmatprep.subr.bf16.mxu0 0
    %100 = vmatpush1.bf16.msra.mxu0 %v91
    %101 = vmatprep.subr.bf16.mxu0 0
    %102 = vmatpush1.bf16.msra.mxu0 0
    %103 = vmatprep.subr.bf16.mxu0 0
    %104 = vmatpush1.bf16.msra.mxu0 0
    %105 = vmatprep.subr.bf16.mxu0 0
    %106 = vmatpush1.bf16.msra.mxu0 0
    %107 = vmatprep.subr.bf16.mxu0 0
    %108 = vmatpush1.bf16.msra.mxu0 0
    %109 = vmatprep.subr.bf16.mxu0 0
    %110 = vmatpush1.bf16.msra.mxu0 0
    %111 = vmatprep.subr.bf16.mxu0 0
    %112 = vmatpush1.bf16.msra.mxu0 0
    %113 = vmatprep.subr.bf16.mxu0 0
    %114 = vmatpush1.bf16.msra.mxu0 0
    %115 = vmatprep.subr.bf16.mxu0 0
    %116 = vmatpush1.bf16.msra.mxu0 0
    %117 = vmatprep.subr.bf16.mxu0 0
    %118 = vmatpush1.bf16.msra.mxu0 0
    %119 = vmatprep.subr.bf16.mxu0 0
    %120 = vmatpush1.bf16.msra.mxu0 0
    %121 = vmatprep.subr.bf16.mxu0 0
    %122 = vmatpush1.bf16.msra.mxu0 0
    %123 = vmatprep.subr.bf16.mxu0 0
    %124 = vmatpush1.bf16.msra.mxu0 0
    %125 = vmatprep.subr.bf16.mxu0 0
    %126 = vmatpush1.bf16.msra.mxu0 0
    %127 = vmatprep.subr.bf16.mxu0 0
    %128 = vmatpush1.bf16.msra.mxu0 0
    %129 = vmatprep.mubr.bf16.mxu0 0
    %130 = vmatmul.mubr.bf16.gmra.mrb[0].mxu0 %v95
    %v131 = vpop.f32.mrb[0].mxu0
    %v132 = vadd.f32 %v73, %v131
    %v133 = vpop.f32.mrb[0].mxu0
    %v134 = vpop.f32.mrb[0].mxu0
    %v135 = vpop.f32.mrb[0].mxu0
    %136 = vdwg.mxu0
    %v137 = vmax.f32 %v132, 0.0
    %v138 = vld [vmem:[%s3] sm:$0xf]
    %v139 = vld [vmem:[%s3 + $0x4] sm:$0xf]
    %v140 = vld [vmem:[%s3 + $0x8] sm:$0xf]
    %v141 = vld [vmem:[%s3 + $0xc] sm:$0xf]
    %v142 = vld [vmem:[%s4] sm:$0x1]
    %v143 = vpack.c.bf16 %v137, %v137
    %v145 = vlaneseq
    %v146 = vshrl.u32 %v145, 7
    %v147 = vsub.s32 0, %v146
    %v148 = vrot.slane %v142, %v147
    %v154 = vunpack.c.l.b16 %v138
    %v155 = vunpack.c.l.b16 %v139
    %v156 = vunpack.c.l.b16 %v140
    %v157 = vunpack.c.l.b16 %v141
    %v158 = vpack.c.b16 %v155, %v154
    %v159 = vpack.c.b16 %v157, %v156
    %v163 = vsel %vm40, %v143, 0
    %165 = vmatprep.subr.bf16.mxu0 0
    %166 = vmatpush1.bf16.msra.mxu0 %v158
    %167 = vmatprep.subr.bf16.mxu0 0
    %168 = vmatpush1.bf16.msra.mxu0 %v159
    %169 = vmatprep.subr.bf16.mxu0 0
    %170 = vmatpush1.bf16.msra.mxu0 0
    %171 = vmatprep.subr.bf16.mxu0 0
    %172 = vmatpush1.bf16.msra.mxu0 0
    %173 = vmatprep.subr.bf16.mxu0 0
    %174 = vmatpush1.bf16.msra.mxu0 0
    %175 = vmatprep.subr.bf16.mxu0 0
    %176 = vmatpush1.bf16.msra.mxu0 0
    %177 = vmatprep.subr.bf16.mxu0 0
    %178 = vmatpush1.bf16.msra.mxu0 0
    %179 = vmatprep.subr.bf16.mxu0 0
    %180 = vmatpush1.bf16.msra.mxu0 0
    %181 = vmatprep.subr.bf16.mxu0 0
    %182 = vmatpush1.bf16.msra.mxu0 0
    %183 = vmatprep.subr.bf16.mxu0 0
    %184 = vmatpush1.bf16.msra.mxu0 0
    %185 = vmatprep.subr.bf16.mxu0 0
    %186 = vmatpush1.bf16.msra.mxu0 0
    %187 = vmatprep.subr.bf16.mxu0 0
    %188 = vmatpush1.bf16.msra.mxu0 0
    %189 = vmatprep.subr.bf16.mxu0 0
    %190 = vmatpush1.bf16.msra.mxu0 0
    %191 = vmatprep.subr.bf16.mxu0 0
    %192 = vmatpush1.bf16.msra.mxu0 0
    %193 = vmatprep.subr.bf16.mxu0 0
    %194 = vmatpush1.bf16.msra.mxu0 0
    %195 = vmatprep.subr.bf16.mxu0 0
    %196 = vmatpush1.bf16.msra.mxu0 0
    %197 = vmatprep.mubr.bf16.mxu0 0
    %198 = vmatmul.mubr.bf16.gmra.mrb[0].mxu0 %v163
    %v199 = vpop.f32.mrb[0].mxu0
    %v200 = vadd.f32 %v148, %v199
    %v201 = vpop.f32.mrb[0].mxu0
    %v202 = vpop.f32.mrb[0].mxu0
    %v203 = vpop.f32.mrb[0].mxu0
    %204 = vdwg.mxu0
    %vm205 = vcmask 25600
    %v206 = vsel %vm205, %v200, -inf
    %207 = vmax.xlane.f32.xlu0 %v206
    %v208 = vpop.xlane.xlu0 %207
    %v209 = vsub.f32 %v200, %v208
    %v210 = vmul.f32 %v209, 1.442695
    %v211 = vpow.pop %v210
    %v212 = vsel %vm205, %v211, 0.0
    %213 = vadd.xlane.f32.xlu0 %v212
    %v214 = vpop.xlane.xlu0 %213
    %v215 = vrcp.pop %v214
    %v216 = vmul.f32 %v211, %v215
    %217 = vst.msk [vmem:[#allocation5] sm:$0x3] %vm205, %v216
    // Predicated region
    $region26: #{_lambda_.5} parent=1 // pred_check
      _
    $region27: #{_lambda_.5} parent=1 // pred_check_branch
      %219 = sbr.rel (0) target = $region29
    $region28: #{_lambda_.5} parent=1 // pred_region
      %s221 = ssub.s32 32, 32
      %222 = vsyncadd [#allocation4], %s221
      %s224 = sshll.u32 [#allocation5], 4
      %s225 = int_to_ptr.vmem [resolvable:$true] %s224
      %227 = dma.vmem_to_hbm [thread:$0]  %s225, 32, %s5, [#allocation4]
    $region29: #{_lambda_.5} parent=1 // pred_fallthru
      _
    // Predicated region
    $region30: #{_lambda_.5} parent=1 // pred_check
      _
    $region31: #{_lambda_.5} parent=1 // pred_check_branch
      %229 = sbr.rel (0) target = $region33
    $region32: #{_lambda_.5} parent=1 // pred_region
      %230 = dma.done [#allocation4], 32
    $region33: #{_lambda_.5} parent=1 // pred_fallthru
      _
    %231 = vsyncpa [#allocation3], 1
    %232 = vsyncpa [#allocation4], 1

// kernel: _lambda_.4
$region0: #{_lambda_.4}
  #allocation0 [shape = 'u32[]', space=smem, size = 0x4, offset = 0x4, fixed_abs, tag = 'smem constant byte address 0x4 - core index']
  #allocation1 [shape = 'u32[144,128]{1,0:T(1,128)}', space=vmem, size = 0x12000, scoped, tag = 'internal scratch']
  %s0 = inlined_call_operand.hbm [shape: f32[32,16], index: 0, kind: input, shape index: {}]
  %s1 = inlined_call_operand.hbm [shape: s32[1,32,7], index: 1, kind: input, shape index: {}]
  %s2 = inlined_call_operand.hbm [shape: bf16[16,32], index: 2, kind: input, shape index: {}]
  %s3 = inlined_call_operand.hbm [shape: bf16[16,32], index: 3, kind: input, shape index: {}]
  %s4 = inlined_call_operand.hbm [shape: f32[1,32], index: 4, kind: input, shape index: {}]
  %s5 = inlined_call_operand.hbm [shape: f32[1,32], index: 5, kind: input, shape index: {}]
  %s6 = inlined_call_operand.hbm [shape: bf16[32,32], index: 6, kind: input, shape index: {}]
  %s7 = inlined_call_operand.hbm [shape: f32[1,32], index: 7, kind: input, shape index: {}]
  %s8 = inlined_call_operand.hbm [shape: f32[1,32], index: 8, kind: input, shape index: {}]
  %s9 = inlined_call_operand.hbm [shape: bf16[32,32], index: 9, kind: input, shape index: {}]
  %s10 = inlined_call_operand.hbm [shape: f32[1,32], index: 10, kind: input, shape index: {}]
  %s11 = inlined_call_operand.hbm [shape: f32[1,32], index: 11, kind: input, shape index: {}]
  %s12 = inlined_call_operand.hbm [shape: bf16[16,32], index: 12, kind: input, shape index: {}]
  %s13 = inlined_call_operand.hbm [shape: f32[1,32], index: 13, kind: input, shape index: {}]
  %s14 = inlined_call_operand.hbm [shape: f32[1,32], index: 14, kind: input, shape index: {}]
  %s15 = inlined_call_operand.hbm [shape: f32[32,32], index: 15, kind: output, shape index: {}]
  %s16 = sld [smem:[#allocation0]]
  $region130: #{_lambda_.4} parent=0
    _
  %s18 = ssub.s32 1, %s16
  %s19 = scalar_select 0, %s18, %s16
  $region1: #{_lambda_.4} parent=0
    #allocation2 [shape = 'u8[16384]{0}', space=vmem, size = 0x4000, scoped, tag = 'input window, operand 0, single buffered']
    #allocation3 [shape = 's32[1]{0}', space=sflag, size = 0x4, scoped, tag = 'scoped memory for _lambda_.4']
    #allocation4 [shape = 's32[1]{0}', space=sflag, size = 0x4, scoped, tag = 'scoped memory for _lambda_.4']
    #allocation5 [shape = 'u8[16384]{0}', space=vmem, size = 0x4000, scoped, tag = 'input window, operand 1, single buffered']
    #allocation6 [shape = 's32[1]{0}', space=sflag, size = 0x4, scoped, tag = 'scoped memory for _lambda_.4']
    #allocation7 [shape = 'u8[4096]{0}', space=vmem, size = 0x1000, scoped, tag = 'input window, operand 2, single buffered']
    #allocation8 [shape = 'u8[4096]{0}', space=vmem, size = 0x1000, scoped, tag = 'input window, operand 3, single buffered']
    #allocation9 [shape = 's32[1]{0}', space=sflag, size = 0x4, scoped, tag = 'scoped memory for _lambda_.4']
    #allocation10 [shape = 'u8[512]{0}', space=vmem, size = 0x400, scoped, tag = 'input window, operand 4, single buffered']
    #allocation11 [shape = 'u8[512]{0}', space=vmem, size = 0x400, scoped, tag = 'input window, operand 5, single buffered']
    #allocation12 [shape = 's32[1]{0}', space=sflag, size = 0x4, scoped, tag = 'scoped memory for _lambda_.4']
    #allocation13 [shape = 'u8[8192]{0}', space=vmem, size = 0x2000, scoped, tag = 'input window, operand 6, single buffered']
    #allocation14 [shape = 'u8[512]{0}', space=vmem, size = 0x400, scoped, tag = 'input window, operand 7, single buffered']
    #allocation15 [shape = 's32[1]{0}', space=sflag, size = 0x4, scoped, tag = 'scoped memory for _lambda_.4']
    #allocation16 [shape = 'u8[512]{0}', space=vmem, size = 0x400, scoped, tag = 'input window, operand 8, single buffered']
    #allocation17 [shape = 'u8[8192]{0}', space=vmem, size = 0x2000, scoped, tag = 'input window, operand 9, single buffered']
    #allocation18 [shape = 's32[1]{0}', space=sflag, size = 0x4, scoped, tag = 'scoped memory for _lambda_.4']
    #allocation19 [shape = 'u8[512]{0}', space=vmem, size = 0x400, scoped, tag = 'input window, operand 10, single buffered']
    #allocation20 [shape = 'u8[512]{0}', space=vmem, size = 0x400, scoped, tag = 'input window, operand 11, single buffered']
    #allocation21 [shape = 's32[1]{0}', space=sflag, size = 0x4, scoped, tag = 'scoped memory for _lambda_.4']
    #allocation22 [shape = 'u8[4096]{0}', space=vmem, size = 0x1000, scoped, tag = 'input window, operand 12, single buffered']
    #allocation23 [shape = 'u8[512]{0}', space=vmem, size = 0x400, scoped, tag = 'input window, operand 13, single buffered']
    #allocation24 [shape = 's32[1]{0}', space=sflag, size = 0x4, scoped, tag = 'scoped memory for _lambda_.4']
    #allocation25 [shape = 'u8[512]{0}', space=vmem, size = 0x400, scoped, tag = 'input window, operand 14, single buffered']
    #allocation26 [shape = 'u8[16384]{0}', space=vmem, size = 0x4000, scoped, tag = 'output window, operand 0, single buffered']
    %20 = vsyncpa [#allocation3], 0
    %21 = vsyncpa [#allocation6], 0
    %22 = vsyncpa [#allocation9], 0
    %23 = vsyncpa [#allocation12], 0
    %24 = vsyncpa [#allocation15], 0
    %25 = vsyncpa [#allocation18], 0
    %26 = vsyncpa [#allocation21], 0
    %27 = vsyncpa [#allocation24], 0
    %28 = vsyncpa [#allocation4], 0
    // Predicated region
    $region2: #{_lambda_.4} parent=1 // pred_check
      _
    $region3: #{_lambda_.4} parent=1 // pred_check_branch
      %30 = sbr.rel (0) target = $region5
    $region4: #{_lambda_.4} parent=1 // pred_region
      %s32 = ssub.s32 512, 512
      %33 = vsyncadd [#allocation3], %s32
      %s34 = sshll.u32 [#allocation2], 4
      %s35 = int_to_ptr.vmem [resolvable:$true] %s34
      %40 = dma.hbm_to_vmem [thread:$0]  %s0, 512, %s35, [#allocation3], 128, 128, 8
    $region5: #{_lambda_.4} parent=1 // pred_fallthru
      _
    // Predicated region
    $region6: #{_lambda_.4} parent=1 // pred_check
      _
    $region7: #{_lambda_.4} parent=1 // pred_check_branch
      %42 = sbr.rel (0) target = $region9
    $region8: #{_lambda_.4} parent=1 // pred_region
      %s44 = ssub.s32 512, 512
      %45 = vsyncadd [#allocation6], %s44
      %s46 = sshll.u32 [#allocation5], 4
      %s47 = int_to_ptr.vmem [resolvable:$true] %s46
      %52 = dma.hbm_to_vmem [thread:$0]  %s1, 512, %s47, [#allocation6], 128, 128, 8
    $region9: #{_lambda_.4} parent=1 // pred_fallthru
      _
    // Predicated region
    $region10: #{_lambda_.4} parent=1 // pred_check
      _
    $region11: #{_lambda_.4} parent=1 // pred_check_branch
      %54 = sbr.rel (0) target = $region13
    $region12: #{_lambda_.4} parent=1 // pred_region
      %s56 = ssub.s32 128, 128
      %57 = vsyncadd [#allocation6], %s56
      %s58 = sshll.u32 [#allocation7], 4
      %s59 = int_to_ptr.vmem [resolvable:$true] %s58
      %64 = dma.hbm_to_vmem [thread:$0]  %s2, 128, %s59, [#allocation6], 64, 64, 4
    $region13: #{_lambda_.4} parent=1 // pred_fallthru
      _
    // Predicated region
    $region14: #{_lambda_.4} parent=1 // pred_check
      _
    $region15: #{_lambda_.4} parent=1 // pred_check_branch
      %66 = sbr.rel (0) target = $region17
    $region16: #{_lambda_.4} parent=1 // pred_region
      %s68 = ssub.s32 128, 128
      %69 = vsyncadd [#allocation9], %s68
      %s70 = sshll.u32 [#allocation8], 4
      %s71 = int_to_ptr.vmem [resolvable:$true] %s70
      %76 = dma.hbm_to_vmem [thread:$0]  %s3, 128, %s71, [#allocation9], 64, 64, 4
    $region17: #{_lambda_.4} parent=1 // pred_fallthru
      _
    // Predicated region
    $region18: #{_lambda_.4} parent=1 // pred_check
      _
    $region19: #{_lambda_.4} parent=1 // pred_check_branch
      %78 = sbr.rel (0) target = $region21
    $region20: #{_lambda_.4} parent=1 // pred_region
      %s80 = ssub.s32 16, 16
      %81 = vsyncadd [#allocation9], %s80
      %s83 = sshll.u32 [#allocation10], 4
      %s84 = int_to_ptr.vmem [resolvable:$true] %s83
      %86 = dma.hbm_to_vmem [thread:$0]  %s4, 16, %s84, [#allocation9]
    $region21: #{_lambda_.4} parent=1 // pred_fallthru
      _
    // Predicated region
    $region22: #{_lambda_.4} parent=1 // pred_check
      _
    $region23: #{_lambda_.4} parent=1 // pred_check_branch
      %88 = sbr.rel (0) target = $region25
    $region24: #{_lambda_.4} parent=1 // pred_region
      %s90 = ssub.s32 16, 16
      %91 = vsyncadd [#allocation12], %s90
      %s93 = sshll.u32 [#allocation11], 4
      %s94 = int_to_ptr.vmem [resolvable:$true] %s93
      %96 = dma.hbm_to_vmem [thread:$0]  %s5, 16, %s94, [#allocation12]
    $region25: #{_lambda_.4} parent=1 // pred_fallthru
      _
    // Predicated region
    $region26: #{_lambda_.4} parent=1 // pred_check
      _
    $region27: #{_lambda_.4} parent=1 // pred_check_branch
      %98 = sbr.rel (0) target = $region29
    $region28: #{_lambda_.4} parent=1 // pred_region
      %s100 = ssub.s32 256, 256
      %101 = vsyncadd [#allocation12], %s100
      %s102 = sshll.u32 [#allocation13], 4
      %s103 = int_to_ptr.vmem [resolvable:$true] %s102
      %108 = dma.hbm_to_vmem [thread:$0]  %s6, 256, %s103, [#allocation12], 64, 64, 4
    $region29: #{_lambda_.4} parent=1 // pred_fallthru
      _
    // Predicated region
    $region30: #{_lambda_.4} parent=1 // pred_check
      _
    $region31: #{_lambda_.4} parent=1 // pred_check_branch
      %110 = sbr.rel (0) target = $region33
    $region32: #{_lambda_.4} parent=1 // pred_region
      %s112 = ssub.s32 16, 16
      %113 = vsyncadd [#allocation15], %s112
      %s115 = sshll.u32 [#allocation14], 4
      %s116 = int_to_ptr.vmem [resolvable:$true] %s115
      %118 = dma.hbm_to_vmem [thread:$0]  %s7, 16, %s116, [#allocation15]
    $region33: #{_lambda_.4} parent=1 // pred_fallthru
      _
    // Predicated region
    $region34: #{_lambda_.4} parent=1 // pred_check
      _
    $region35: #{_lambda_.4} parent=1 // pred_check_branch
      %120 = sbr.rel (0) target = $region37
    $region36: #{_lambda_.4} parent=1 // pred_region
      %s122 = ssub.s32 16, 16
      %123 = vsyncadd [#allocation15], %s122
      %s125 = sshll.u32 [#allocation16], 4
      %s126 = int_to_ptr.vmem [resolvable:$true] %s125
      %128 = dma.hbm_to_vmem [thread:$0]  %s8, 16, %s126, [#allocation15]
    $region37: #{_lambda_.4} parent=1 // pred_fallthru
      _
    // Predicated region
    $region38: #{_lambda_.4} parent=1 // pred_check
      _
    $region39: #{_lambda_.4} parent=1 // pred_check_branch
      %130 = sbr.rel (0) target = $region41
    $region40: #{_lambda_.4} parent=1 // pred_region
      %s132 = ssub.s32 256, 256
      %133 = vsyncadd [#allocation18], %s132
      %s134 = sshll.u32 [#allocation17], 4
      %s135 = int_to_ptr.vmem [resolvable:$true] %s134
      %140 = dma.hbm_to_vmem [thread:$0]  %s9, 256, %s135, [#allocation18], 64, 64, 4
    $region41: #{_lambda_.4} parent=1 // pred_fallthru
      _
    // Predicated region
    $region42: #{_lambda_.4} parent=1 // pred_check
      _
    $region43: #{_lambda_.4} parent=1 // pred_check_branch
      %142 = sbr.rel (0) target = $region45
    $region44: #{_lambda_.4} parent=1 // pred_region
      %s144 = ssub.s32 16, 16
      %145 = vsyncadd [#allocation18], %s144
      %s147 = sshll.u32 [#allocation19], 4
      %s148 = int_to_ptr.vmem [resolvable:$true] %s147
      %150 = dma.hbm_to_vmem [thread:$0]  %s10, 16, %s148, [#allocation18]
    $region45: #{_lambda_.4} parent=1 // pred_fallthru
      _
    // Predicated region
    $region46: #{_lambda_.4} parent=1 // pred_check
      _
    $region47: #{_lambda_.4} parent=1 // pred_check_branch
      %152 = sbr.rel (0) target = $region49
    $region48: #{_lambda_.4} parent=1 // pred_region
      %s154 = ssub.s32 16, 16
      %155 = vsyncadd [#allocation21], %s154
      %s157 = sshll.u32 [#allocation20], 4
      %s158 = int_to_ptr.vmem [resolvable:$true] %s157
      %160 = dma.hbm_to_vmem [thread:$0]  %s11, 16, %s158, [#allocation21]
    $region49: #{_lambda_.4} parent=1 // pred_fallthru
      _
    // Predicated region
    $region50: #{_lambda_.4} parent=1 // pred_check
      _
    $region51: #{_lambda_.4} parent=1 // pred_check_branch
      %162 = sbr.rel (0) target = $region53
    $region52: #{_lambda_.4} parent=1 // pred_region
      %s164 = ssub.s32 128, 128
      %165 = vsyncadd [#allocation21], %s164
      %s166 = sshll.u32 [#allocation22], 4
      %s167 = int_to_ptr.vmem [resolvable:$true] %s166
      %172 = dma.hbm_to_vmem [thread:$0]  %s12, 128, %s167, [#allocation21], 64, 64, 4
    $region53: #{_lambda_.4} parent=1 // pred_fallthru
      _
    // Predicated region
    $region54: #{_lambda_.4} parent=1 // pred_check
      _
    $region55: #{_lambda_.4} parent=1 // pred_check_branch
      %174 = sbr.rel (0) target = $region57
    $region56: #{_lambda_.4} parent=1 // pred_region
      %s176 = ssub.s32 16, 16
      %177 = vsyncadd [#allocation24], %s176
      %s179 = sshll.u32 [#allocation23], 4
      %s180 = int_to_ptr.vmem [resolvable:$true] %s179
      %182 = dma.hbm_to_vmem [thread:$0]  %s13, 16, %s180, [#allocation24]
    $region57: #{_lambda_.4} parent=1 // pred_fallthru
      _
    // Predicated region
    $region58: #{_lambda_.4} parent=1 // pred_check
      _
    $region59: #{_lambda_.4} parent=1 // pred_check_branch
      %184 = sbr.rel (0) target = $region61
    $region60: #{_lambda_.4} parent=1 // pred_region
      %s186 = ssub.s32 16, 16
      %187 = vsyncadd [#allocation24], %s186
      %s189 = sshll.u32 [#allocation25], 4
      %s190 = int_to_ptr.vmem [resolvable:$true] %s189
      %192 = dma.hbm_to_vmem [thread:$0]  %s14, 16, %s190, [#allocation24]
    $region61: #{_lambda_.4} parent=1 // pred_fallthru
      _
    // Predicated region
    $region62: #{_lambda_.4} parent=1 // pred_check
      _
    $region63: #{_lambda_.4} parent=1 // pred_check_branch
      %194 = sbr.rel (0) target = $region65
    $region64: #{_lambda_.4} parent=1 // pred_region
      %195 = dma.done [#allocation3], 512
    $region65: #{_lambda_.4} parent=1 // pred_fallthru
      _
    // Predicated region
    $region66: #{_lambda_.4} parent=1 // pred_check
      _
    $region67: #{_lambda_.4} parent=1 // pred_check_branch
      %197 = sbr.rel (0) target = $region69
    $region68: #{_lambda_.4} parent=1 // pred_region
      %198 = dma.done [#allocation6], 512
    $region69: #{_lambda_.4} parent=1 // pred_fallthru
      _
    // Predicated region
    $region70: #{_lambda_.4} parent=1 // pred_check
      _
    $region71: #{_lambda_.4} parent=1 // pred_check_branch
      %200 = sbr.rel (0) target = $region73
    $region72: #{_lambda_.4} parent=1 // pred_region
      %201 = dma.done [#allocation6], 128
    $region73: #{_lambda_.4} parent=1 // pred_fallthru
      _
    // Predicated region
    $region74: #{_lambda_.4} parent=1 // pred_check
      _
    $region75: #{_lambda_.4} parent=1 // pred_check_branch
      %203 = sbr.rel (0) target = $region77
    $region76: #{_lambda_.4} parent=1 // pred_region
      %204 = dma.done [#allocation9], 128
    $region77: #{_lambda_.4} parent=1 // pred_fallthru
      _
    // Predicated region
    $region78: #{_lambda_.4} parent=1 // pred_check
      _
    $region79: #{_lambda_.4} parent=1 // pred_check_branch
      %206 = sbr.rel (0) target = $region81
    $region80: #{_lambda_.4} parent=1 // pred_region
      %207 = dma.done [#allocation9], 16
    $region81: #{_lambda_.4} parent=1 // pred_fallthru
      _
    // Predicated region
    $region82: #{_lambda_.4} parent=1 // pred_check
      _
    $region83: #{_lambda_.4} parent=1 // pred_check_branch
      %209 = sbr.rel (0) target = $region85
    $region84: #{_lambda_.4} parent=1 // pred_region
      %210 = dma.done [#allocation12], 16
    $region85: #{_lambda_.4} parent=1 // pred_fallthru
      _
    // Predicated region
    $region86: #{_lambda_.4} parent=1 // pred_check
      _
    $region87: #{_lambda_.4} parent=1 // pred_check_branch
      %212 = sbr.rel (0) target = $region89
    $region88: #{_lambda_.4} parent=1 // pred_region
      %213 = dma.done [#allocation12], 256
    $region89: #{_lambda_.4} parent=1 // pred_fallthru
      _
    // Predicated region
    $region90: #{_lambda_.4} parent=1 // pred_check
      _
    $region91: #{_lambda_.4} parent=1 // pred_check_branch
      %215 = sbr.rel (0) target = $region93
    $region92: #{_lambda_.4} parent=1 // pred_region
      %216 = dma.done [#allocation15], 16
    $region93: #{_lambda_.4} parent=1 // pred_fallthru
      _
    // Predicated region
    $region94: #{_lambda_.4} parent=1 // pred_check
      _
    $region95: #{_lambda_.4} parent=1 // pred_check_branch
      %218 = sbr.rel (0) target = $region97
    $region96: #{_lambda_.4} parent=1 // pred_region
      %219 = dma.done [#allocation15], 16
    $region97: #{_lambda_.4} parent=1 // pred_fallthru
      _
    // Predicated region
    $region98: #{_lambda_.4} parent=1 // pred_check
      _
    $region99: #{_lambda_.4} parent=1 // pred_check_branch
      %221 = sbr.rel (0) target = $region101
    $region100: #{_lambda_.4} parent=1 // pred_region
      %222 = dma.done [#allocation18], 256
    $region101: #{_lambda_.4} parent=1 // pred_fallthru
      _
    // Predicated region
    $region102: #{_lambda_.4} parent=1 // pred_check
      _
    $region103: #{_lambda_.4} parent=1 // pred_check_branch
      %224 = sbr.rel (0) target = $region105
    $region104: #{_lambda_.4} parent=1 // pred_region
      %225 = dma.done [#allocation18], 16
    $region105: #{_lambda_.4} parent=1 // pred_fallthru
      _
    // Predicated region
    $region106: #{_lambda_.4} parent=1 // pred_check
      _
    $region107: #{_lambda_.4} parent=1 // pred_check_branch
      %227 = sbr.rel (0) target = $region109
    $region108: #{_lambda_.4} parent=1 // pred_region
      %228 = dma.done [#allocation21], 16
    $region109: #{_lambda_.4} parent=1 // pred_fallthru
      _
    // Predicated region
    $region110: #{_lambda_.4} parent=1 // pred_check
      _
    $region111: #{_lambda_.4} parent=1 // pred_check_branch
      %230 = sbr.rel (0) target = $region113
    $region112: #{_lambda_.4} parent=1 // pred_region
      %231 = dma.done [#allocation21], 128
    $region113: #{_lambda_.4} parent=1 // pred_fallthru
      _
    // Predicated region
    $region114: #{_lambda_.4} parent=1 // pred_check
      _
    $region115: #{_lambda_.4} parent=1 // pred_check_branch
      %233 = sbr.rel (0) target = $region117
    $region116: #{_lambda_.4} parent=1 // pred_region
      %234 = dma.done [#allocation24], 16
    $region117: #{_lambda_.4} parent=1 // pred_fallthru
      _
    // Predicated region
    $region118: #{_lambda_.4} parent=1 // pred_check
      _
    $region119: #{_lambda_.4} parent=1 // pred_check_branch
      %236 = sbr.rel (0) target = $region121
    $region120: #{_lambda_.4} parent=1 // pred_region
      %237 = dma.done [#allocation24], 16
    $region121: #{_lambda_.4} parent=1 // pred_fallthru
      _
    %v239 = vld [vmem:[#allocation2] sm:$0xff]
    %v240 = vld [vmem:[#allocation2 + $0x8] sm:$0xff]
    %v241 = vld [vmem:[#allocation2 + $0x10] sm:$0xff]
    %v242 = vld [vmem:[#allocation2 + $0x18] sm:$0xff]
    %v243 = vpack.c.bf16 %v240, %v239
    %v244 = vpack.c.bf16 %v242, %v241
    %v245 = vld [vmem:[#allocation7] sm:$0xf]
    %v246 = vld [vmem:[#allocation7 + $0x4] sm:$0xf]
    %v249 = vunpack.c.l.b16 %v245
    %v250 = vunpack.c.l.b16 %v246
    %v251 = vpack.c.b16 %v250, %v249
    %vm253 = vcmask 130048
    %v255 = vsel %vm253, %v243, 0
    %v258 = vsel %vm253, %v244, 0
    %260 = vmatprep.subr.bf16.mxu0 0
    %261 = vmatpush1.bf16.msra.mxu0 %v251
    %262 = vmatprep.subr.bf16.mxu0 0
    %263 = vmatpush1.bf16.msra.mxu0 0
    %264 = vmatprep.subr.bf16.mxu0 0
    %265 = vmatpush1.bf16.msra.mxu0 0
    %266 = vmatprep.subr.bf16.mxu0 0
    %267 = vmatpush1.bf16.msra.mxu0 0
    %268 = vmatprep.subr.bf16.mxu0 0
    %269 = vmatpush1.bf16.msra.mxu0 0
    %270 = vmatprep.subr.bf16.mxu0 0
    %271 = vmatpush1.bf16.msra.mxu0 0
    %272 = vmatprep.subr.bf16.mxu0 0
    %273 = vmatpush1.bf16.msra.mxu0 0
    %274 = vmatprep.subr.bf16.mxu0 0
    %275 = vmatpush1.bf16.msra.mxu0 0
    %276 = vmatprep.subr.bf16.mxu0 0
    %277 = vmatpush1.bf16.msra.mxu0 0
    %278 = vmatprep.subr.bf16.mxu0 0
    %279 = vmatpush1.bf16.msra.mxu0 0
    %280 = vmatprep.subr.bf16.mxu0 0
    %281 = vmatpush1.bf16.msra.mxu0 0
    %282 = vmatprep.subr.bf16.mxu0 0
    %283 = vmatpush1.bf16.msra.mxu0 0
    %284 = vmatprep.subr.bf16.mxu0 0
    %285 = vmatpush1.bf16.msra.mxu0 0
    %286 = vmatprep.subr.bf16.mxu0 0
    %287 = vmatpush1.bf16.msra.mxu0 0
    %288 = vmatprep.subr.bf16.mxu0 0
    %289 = vmatpush1.bf16.msra.mxu0 0
    %290 = vmatprep.subr.bf16.mxu0 0
    %291 = vmatpush1.bf16.msra.mxu0 0
    %292 = vmatprep.mubr.bf16.mxu0 0
    %293 = vmatmul.mubr.bf16.gmra.mrb[0].mxu0 %v255
    %v294 = vpop.f32.mrb[0].mxu0
    %v295 = vadd.f32 0.0, %v294
    %v296 = vpop.f32.mrb[0].mxu0
    %v297 = vpop.f32.mrb[0].mxu0
    %v298 = vadd.f32 0.0, %v297
    %v299 = vpop.f32.mrb[0].mxu0
    %300 = vmatprep.mubr.bf16.mxu0 0
    %301 = vmatmul.mubr.bf16.gmra.mrb[0].mxu0 %v258
    %v302 = vpop.f32.mrb[0].mxu0
    %v303 = vadd.f32 0.0, %v302
    %v304 = vpop.f32.mrb[0].mxu0
    %v305 = vpop.f32.mrb[0].mxu0
    %v306 = vadd.f32 0.0, %v305
    %v307 = vpop.f32.mrb[0].mxu0
    %308 = vdwg.mxu0
    %v309 = vld [vmem:[#allocation8] sm:$0xf]
    %v310 = vld [vmem:[#allocation8 + $0x4] sm:$0xf]
    %v313 = vunpack.c.l.b16 %v309
    %v314 = vunpack.c.l.b16 %v310
    %v315 = vpack.c.b16 %v314, %v313
    %317 = vmatprep.subr.bf16.mxu0 0
    %318 = vmatpush1.bf16.msra.mxu0 %v315
    %319 = vmatprep.subr.bf16.mxu0 0
    %320 = vmatpush1.bf16.msra.mxu0 0
    %321 = vmatprep.subr.bf16.mxu0 0
    %322 = vmatpush1.bf16.msra.mxu0 0
    %323 = vmatprep.subr.bf16.mxu0 0
    %324 = vmatpush1.bf16.msra.mxu0 0
    %325 = vmatprep.subr.bf16.mxu0 0
    %326 = vmatpush1.bf16.msra.mxu0 0
    %327 = vmatprep.subr.bf16.mxu0 0
    %328 = vmatpush1.bf16.msra.mxu0 0
    %329 = vmatprep.subr.bf16.mxu0 0
    %330 = vmatpush1.bf16.msra.mxu0 0
    %331 = vmatprep.subr.bf16.mxu0 0
    %332 = vmatpush1.bf16.msra.mxu0 0
    %333 = vmatprep.subr.bf16.mxu0 0
    %334 = vmatpush1.bf16.msra.mxu0 0
    %335 = vmatprep.subr.bf16.mxu0 0
    %336 = vmatpush1.bf16.msra.mxu0 0
    %337 = vmatprep.subr.bf16.mxu0 0
    %338 = vmatpush1.bf16.msra.mxu0 0
    %339 = vmatprep.subr.bf16.mxu0 0
    %340 = vmatpush1.bf16.msra.mxu0 0
    %341 = vmatprep.subr.bf16.mxu0 0
    %342 = vmatpush1.bf16.msra.mxu0 0
    %343 = vmatprep.subr.bf16.mxu0 0
    %344 = vmatpush1.bf16.msra.mxu0 0
    %345 = vmatprep.subr.bf16.mxu0 0
    %346 = vmatpush1.bf16.msra.mxu0 0
    %347 = vmatprep.subr.bf16.mxu0 0
    %348 = vmatpush1.bf16.msra.mxu0 0
    %349 = vmatprep.mubr.bf16.mxu0 0
    %350 = vmatmul.mubr.bf16.gmra.mrb[0].mxu0 %v255
    %v351 = vpop.f32.mrb[0].mxu0
    %v352 = vadd.f32 0.0, %v351
    %v353 = vpop.f32.mrb[0].mxu0
    %v354 = vpop.f32.mrb[0].mxu0
    %v355 = vadd.f32 0.0, %v354
    %v356 = vpop.f32.mrb[0].mxu0
    %357 = vmatprep.mubr.bf16.mxu0 0
    %358 = vmatmul.mubr.bf16.gmra.mrb[0].mxu0 %v258
    %v359 = vpop.f32.mrb[0].mxu0
    %v360 = vadd.f32 0.0, %v359
    %v361 = vpop.f32.mrb[0].mxu0
    %v362 = vpop.f32.mrb[0].mxu0
    %v363 = vadd.f32 0.0, %v362
    %v364 = vpop.f32.mrb[0].mxu0
    %365 = vdwg.mxu0
    %v366 = vpack.c.bf16 %v355, %v352
    %v367 = vpack.c.bf16 %v363, %v360
    %v368 = vld [vmem:[#allocation10] sm:$0x1]
    %v369 = vld [vmem:[#allocation11] sm:$0x1]
    %v370 = vld [vmem:[#allocation14] sm:$0x1]
    %v371 = vld [vmem:[#allocation16] sm:$0x1]
    %v372 = vld [vmem:[#allocation19] sm:$0x1]
    %v373 = vld [vmem:[#allocation20] sm:$0x1]
    %v374 = vld [vmem:[#allocation13] sm:$0xf]
    %v375 = vld [vmem:[#allocation13 + $0x4] sm:$0xf]
    %v376 = vld [vmem:[#allocation13 + $0x8] sm:$0xf]
    %v377 = vld [vmem:[#allocation13 + $0xc] sm:$0xf]
    %v378 = vld [vmem:[#allocation17] sm:$0xf]
    %v379 = vld [vmem:[#allocation17 + $0x4] sm:$0xf]
    %v380 = vld [vmem:[#allocation17 + $0x8] sm:$0xf]
    %v381 = vld [vmem:[#allocation17 + $0xc] sm:$0xf]
    %v382 = vld [vmem:[#allocation5] sm:$0xff]
    %v383 = vld [vmem:[#allocation5 + $0x8] sm:$0xff]
    %v384 = vld [vmem:[#allocation5 + $0x10] sm:$0xff]
    %v385 = vld [vmem:[#allocation5 + $0x18] sm:$0xff]
    %v386 = vlaneseq
    %v387 = vand.u32 %v386, 127
    %388 = vset.pattern.permute.xlu0 0
    %389 = vperm.xlu0 %388, %v382
    %v390 = vpop.permute.xlu0 %389
    %391 = vset.pattern.permute.xlu0 0
    %392 = vperm.xlu0 %391, %v383
    %v393 = vpop.permute.xlu0 %392
    %394 = vset.pattern.permute.xlu0 0
    %395 = vperm.xlu0 %394, %v384
    %v396 = vpop.permute.xlu0 %395
    %397 = vset.pattern.permute.xlu0 0
    %398 = vperm.xlu0 %397, %v385
    %v399 = vpop.permute.xlu0 %398
    %vm400 = vcmp.eq.s32.totalorder %v387, %v390
    %vm401 = vcmp.eq.s32.totalorder %v387, %v393
    %vm402 = vcmp.eq.s32.totalorder %v387, %v396
    %vm403 = vcmp.eq.s32.totalorder %v387, %v399
    %v404 = vsel %vm400, 1, 0
    %v405 = vsel %vm401, 1, 0
    %v406 = vsel %vm402, 1, 0
    %v407 = vsel %vm403, 1, 0
    %v408 = vcvt.s32.f32 %v404
    %v409 = vcvt.s32.f32 %v405
    %v410 = vcvt.s32.f32 %v406
    %v411 = vcvt.s32.f32 %v407
    %v412 = vpack.c.bf16 %v409, %v408
    %v413 = vpack.c.bf16 %v411, %v410
    %vm414 = vcmask 261120
    %v416 = vsel %vm414, %v412, 0
    %v419 = vsel %vm414, %v413, 0
    %421 = vmatprep.subr.bf16.mxu0 0
    %422 = vmatpush1.bf16.msra.mxu0 %v366
    %423 = vmatprep.subr.bf16.mxu0 0
    %424 = vmatpush1.bf16.msra.mxu0 %v367
    %425 = vmatprep.subr.bf16.mxu0 0
    %426 = vmatpush1.bf16.msra.mxu0 0
    %427 = vmatprep.subr.bf16.mxu0 0
    %428 = vmatpush1.bf16.msra.mxu0 0
    %429 = vmatprep.subr.bf16.mxu0 0
    %430 = vmatpush1.bf16.msra.mxu0 0
    %431 = vmatprep.subr.bf16.mxu0 0
    %432 = vmatpush1.bf16.msra.mxu0 0
    %433 = vmatprep.subr.bf16.mxu0 0
    %434 = vmatpush1.bf16.msra.mxu0 0
    %435 = vmatprep.subr.bf16.mxu0 0
    %436 = vmatpush1.bf16.msra.mxu0 0
    %437 = vmatprep.subr.bf16.mxu0 0
    %438 = vmatpush1.bf16.msra.mxu0 0
    %439 = vmatprep.subr.bf16.mxu0 0
    %440 = vmatpush1.bf16.msra.mxu0 0
    %441 = vmatprep.subr.bf16.mxu0 0
    %442 = vmatpush1.bf16.msra.mxu0 0
    %443 = vmatprep.subr.bf16.mxu0 0
    %444 = vmatpush1.bf16.msra.mxu0 0
    %445 = vmatprep.subr.bf16.mxu0 0
    %446 = vmatpush1.bf16.msra.mxu0 0
    %447 = vmatprep.subr.bf16.mxu0 0
    %448 = vmatpush1.bf16.msra.mxu0 0
    %449 = vmatprep.subr.bf16.mxu0 0
    %450 = vmatpush1.bf16.msra.mxu0 0
    %451 = vmatprep.subr.bf16.mxu0 0
    %452 = vmatpush1.bf16.msra.mxu0 0
    %453 = vmatprep.mubr.bf16.mxu0 0
    %454 = vmatmul.mubr.bf16.gmra.mrb[0].mxu0 %v416
    %v455 = vpop.f32.mrb[0].mxu0
    %v456 = vadd.f32 %v295, %v455
    %v457 = vpop.f32.mrb[0].mxu0
    %v458 = vpop.f32.mrb[0].mxu0
    %v459 = vadd.f32 %v298, %v458
    %v460 = vpop.f32.mrb[0].mxu0
    %461 = vmatprep.mubr.bf16.mxu0 0
    %462 = vmatmul.mubr.bf16.gmra.mrb[0].mxu0 %v419
    %v463 = vpop.f32.mrb[0].mxu0
    %v464 = vadd.f32 %v303, %v463
    %v465 = vpop.f32.mrb[0].mxu0
    %v466 = vpop.f32.mrb[0].mxu0
    %v467 = vadd.f32 %v306, %v466
    %v468 = vpop.f32.mrb[0].mxu0
    %469 = vdwg.mxu0
    %v471 = vlaneseq
    %v472 = vshrl.u32 %v471, 7
    %v473 = vsub.s32 0, %v472
    %v474 = vrot.slane %v368, %v473
    %v476 = vmul.f32 %v456, %v474
    %v477 = vmul.f32 %v459, %v474
    %v478 = vmul.f32 %v464, %v474
    %v479 = vmul.f32 %v467, %v474
    %v481 = vlaneseq
    %v482 = vshrl.u32 %v481, 7
    %v483 = vsub.s32 0, %v482
    %v484 = vrot.slane %v369, %v483
    %v486 = vadd.f32 %v476, %v484
    %v487 = vadd.f32 %v477, %v484
    %v488 = vadd.f32 %v478, %v484
    %v489 = vadd.f32 %v479, %v484
    %v490 = vmax.f32 %v486, 0.0
    %v491 = vmax.f32 %v487, 0.0
    %v492 = vmax.f32 %v488, 0.0
    %v493 = vmax.f32 %v489, 0.0
    %v494 = vpack.c.bf16 %v491, %v490
    %v495 = vpack.c.bf16 %v493, %v492
    %v500 = vunpack.c.l.b16 %v374
    %v501 = vunpack.c.l.b16 %v375
    %v502 = vunpack.c.l.b16 %v376
    %v503 = vunpack.c.l.b16 %v377
    %v504 = vpack.c.b16 %v501, %v500
    %v505 = vpack.c.b16 %v503, %v502
    %v509 = vsel %vm414, %v494, 0
    %v512 = vsel %vm414, %v495, 0
    %514 = vmatprep.subr.bf16.mxu0 0
    %515 = vmatpush1.bf16.msra.mxu0 %v504
    %516 = vmatprep.subr.bf16.mxu0 0
    %517 = vmatpush1.bf16.msra.mxu0 %v505
    %518 = vmatprep.subr.bf16.mxu0 0
    %519 = vmatpush1.bf16.msra.mxu0 0
    %520 = vmatprep.subr.bf16.mxu0 0
    %521 = vmatpush1.bf16.msra.mxu0 0
    %522 = vmatprep.subr.bf16.mxu0 0
    %523 = vmatpush1.bf16.msra.mxu0 0
    %524 = vmatprep.subr.bf16.mxu0 0
    %525 = vmatpush1.bf16.msra.mxu0 0
    %526 = vmatprep.subr.bf16.mxu0 0
    %527 = vmatpush1.bf16.msra.mxu0 0
    %528 = vmatprep.subr.bf16.mxu0 0
    %529 = vmatpush1.bf16.msra.mxu0 0
    %530 = vmatprep.subr.bf16.mxu0 0
    %531 = vmatpush1.bf16.msra.mxu0 0
    %532 = vmatprep.subr.bf16.mxu0 0
    %533 = vmatpush1.bf16.msra.mxu0 0
    %534 = vmatprep.subr.bf16.mxu0 0
    %535 = vmatpush1.bf16.msra.mxu0 0
    %536 = vmatprep.subr.bf16.mxu0 0
    %537 = vmatpush1.bf16.msra.mxu0 0
    %538 = vmatprep.subr.bf16.mxu0 0
    %539 = vmatpush1.bf16.msra.mxu0 0
    %540 = vmatprep.subr.bf16.mxu0 0
    %541 = vmatpush1.bf16.msra.mxu0 0
    %542 = vmatprep.subr.bf16.mxu0 0
    %543 = vmatpush1.bf16.msra.mxu0 0
    %544 = vmatprep.subr.bf16.mxu0 0
    %545 = vmatpush1.bf16.msra.mxu0 0
    %546 = vmatprep.mubr.bf16.mxu0 0
    %547 = vmatmul.mubr.bf16.gmra.mrb[0].mxu0 %v509
    %v548 = vpop.f32.mrb[0].mxu0
    %v549 = vadd.f32 0.0, %v548
    %v550 = vpop.f32.mrb[0].mxu0
    %v551 = vpop.f32.mrb[0].mxu0
    %v552 = vadd.f32 0.0, %v551
    %v553 = vpop.f32.mrb[0].mxu0
    %554 = vmatprep.mubr.bf16.mxu0 0
    %555 = vmatmul.mubr.bf16.gmra.mrb[0].mxu0 %v512
    %v556 = vpop.f32.mrb[0].mxu0
    %v557 = vadd.f32 0.0, %v556
    %v558 = vpop.f32.mrb[0].mxu0
    %v559 = vpop.f32.mrb[0].mxu0
    %v560 = vadd.f32 0.0, %v559
    %v561 = vpop.f32.mrb[0].mxu0
    %562 = vdwg.mxu0
    %v564 = vlaneseq
    %v565 = vshrl.u32 %v564, 7
    %v566 = vsub.s32 0, %v565
    %v567 = vrot.slane %v370, %v566
    %v569 = vmul.f32 %v549, %v567
    %v570 = vmul.f32 %v552, %v567
    %v571 = vmul.f32 %v557, %v567
    %v572 = vmul.f32 %v560, %v567
    %v574 = vlaneseq
    %v575 = vshrl.u32 %v574, 7
    %v576 = vsub.s32 0, %v575
    %v577 = vrot.slane %v371, %v576
    %v579 = vadd.f32 %v569, %v577
    %v580 = vadd.f32 %v570, %v577
    %v581 = vadd.f32 %v571, %v577
    %v582 = vadd.f32 %v572, %v577
    %v583 = vmax.f32 %v579, 0.0
    %v584 = vmax.f32 %v580, 0.0
    %v585 = vmax.f32 %v581, 0.0
    %v586 = vmax.f32 %v582, 0.0
    %v587 = vpack.c.bf16 %v584, %v583
    %v588 = vpack.c.bf16 %v586, %v585
    %v593 = vunpack.c.l.b16 %v378
    %v594 = vunpack.c.l.b16 %v379
    %v595 = vunpack.c.l.b16 %v380
    %v596 = vunpack.c.l.b16 %v381
    %v597 = vpack.c.b16 %v594, %v593
    %v598 = vpack.c.b16 %v596, %v595
    %v602 = vsel %vm414, %v587, 0
    %v605 = vsel %vm414, %v588, 0
    %607 = vmatprep.subr.bf16.mxu0 0
    %608 = vmatpush1.bf16.msra.mxu0 %v597
    %609 = vmatprep.subr.bf16.mxu0 0
    %610 = vmatpush1.bf16.msra.mxu0 %v598
    %611 = vmatprep.subr.bf16.mxu0 0
    %612 = vmatpush1.bf16.msra.mxu0 0
    %613 = vmatprep.subr.bf16.mxu0 0
    %614 = vmatpush1.bf16.msra.mxu0 0
    %615 = vmatprep.subr.bf16.mxu0 0
    %616 = vmatpush1.bf16.msra.mxu0 0
    %617 = vmatprep.subr.bf16.mxu0 0
    %618 = vmatpush1.bf16.msra.mxu0 0
    %619 = vmatprep.subr.bf16.mxu0 0
    %620 = vmatpush1.bf16.msra.mxu0 0
    %621 = vmatprep.subr.bf16.mxu0 0
    %622 = vmatpush1.bf16.msra.mxu0 0
    %623 = vmatprep.subr.bf16.mxu0 0
    %624 = vmatpush1.bf16.msra.mxu0 0
    %625 = vmatprep.subr.bf16.mxu0 0
    %626 = vmatpush1.bf16.msra.mxu0 0
    %627 = vmatprep.subr.bf16.mxu0 0
    %628 = vmatpush1.bf16.msra.mxu0 0
    %629 = vmatprep.subr.bf16.mxu0 0
    %630 = vmatpush1.bf16.msra.mxu0 0
    %631 = vmatprep.subr.bf16.mxu0 0
    %632 = vmatpush1.bf16.msra.mxu0 0
    %633 = vmatprep.subr.bf16.mxu0 0
    %634 = vmatpush1.bf16.msra.mxu0 0
    %635 = vmatprep.subr.bf16.mxu0 0
    %636 = vmatpush1.bf16.msra.mxu0 0
    %637 = vmatprep.subr.bf16.mxu0 0
    %638 = vmatpush1.bf16.msra.mxu0 0
    %639 = vmatprep.mubr.bf16.mxu0 0
    %640 = vmatmul.mubr.bf16.gmra.mrb[0].mxu0 %v602
    %v641 = vpop.f32.mrb[0].mxu0
    %v642 = vadd.f32 0.0, %v641
    %v643 = vpop.f32.mrb[0].mxu0
    %v644 = vpop.f32.mrb[0].mxu0
    %v645 = vadd.f32 0.0, %v644
    %v646 = vpop.f32.mrb[0].mxu0
    %647 = vmatprep.mubr.bf16.mxu0 0
    %648 = vmatmul.mubr.bf16.gmra.mrb[0].mxu0 %v605
    %v649 = vpop.f32.mrb[0].mxu0
    %v650 = vadd.f32 0.0, %v649
    %v651 = vpop.f32.mrb[0].mxu0
    %v652 = vpop.f32.mrb[0].mxu0
    %v653 = vadd.f32 0.0, %v652
    %v654 = vpop.f32.mrb[0].mxu0
    %655 = vdwg.mxu0
    %v657 = vlaneseq
    %v658 = vshrl.u32 %v657, 7
    %v659 = vsub.s32 0, %v658
    %v660 = vrot.slane %v372, %v659
    %v662 = vmul.f32 %v642, %v660
    %v663 = vmul.f32 %v645, %v660
    %v664 = vmul.f32 %v650, %v660
    %v665 = vmul.f32 %v653, %v660
    %v667 = vlaneseq
    %v668 = vshrl.u32 %v667, 7
    %v669 = vsub.s32 0, %v668
    %v670 = vrot.slane %v373, %v669
    %v672 = vadd.f32 %v662, %v670
    %v673 = vadd.f32 %v663, %v670
    %v674 = vadd.f32 %v664, %v670
    %v675 = vadd.f32 %v665, %v670
    %v676 = vmax.f32 %v672, 0.0
    %v677 = vmax.f32 %v673, 0.0
    %v678 = vmax.f32 %v674, 0.0
    %v679 = vmax.f32 %v675, 0.0
    %680 = vset.pattern.permute.xlu0 1
    %681 = vperm.xlu0 %680, %v382
    %v682 = vpop.permute.xlu0 %681
    %683 = vset.pattern.permute.xlu0 1
    %684 = vperm.xlu0 %683, %v383
    %v685 = vpop.permute.xlu0 %684
    %686 = vset.pattern.permute.xlu0 1
    %687 = vperm.xlu0 %686, %v384
    %v688 = vpop.permute.xlu0 %687
    %689 = vset.pattern.permute.xlu0 1
    %690 = vperm.xlu0 %689, %v385
    %v691 = vpop.permute.xlu0 %690
    %vm692 = vcmp.eq.s32.totalorder %v387, %v682
    %vm693 = vcmp.eq.s32.totalorder %v387, %v685
    %vm694 = vcmp.eq.s32.totalorder %v387, %v688
    %vm695 = vcmp.eq.s32.totalorder %v387, %v691
    %v696 = vsel %vm692, 1, 0
    %v697 = vsel %vm693, 1, 0
    %v698 = vsel %vm694, 1, 0
    %v699 = vsel %vm695, 1, 0
    %v700 = vcvt.s32.f32 %v696
    %v701 = vcvt.s32.f32 %v697
    %v702 = vcvt.s32.f32 %v698
    %v703 = vcvt.s32.f32 %v699
    %v704 = vpack.c.bf16 %v701, %v700
    %v705 = vpack.c.bf16 %v703, %v702
    %v707 = vsel %vm414, %v704, 0
    %v710 = vsel %vm414, %v705, 0
    %712 = vmatprep.subr.bf16.mxu0 0
    %713 = vmatpush1.bf16.msra.mxu0 %v366
    %714 = vmatprep.subr.bf16.mxu0 0
    %715 = vmatpush1.bf16.msra.mxu0 %v367
    %716 = vmatprep.subr.bf16.mxu0 0
    %717 = vmatpush1.bf16.msra.mxu0 0
    %718 = vmatprep.subr.bf16.mxu0 0
    %719 = vmatpush1.bf16.msra.mxu0 0
    %720 = vmatprep.subr.bf16.mxu0 0
    %721 = vmatpush1.bf16.msra.mxu0 0
    %722 = vmatprep.subr.bf16.mxu0 0
    %723 = vmatpush1.bf16.msra.mxu0 0
    %724 = vmatprep.subr.bf16.mxu0 0
    %725 = vmatpush1.bf16.msra.mxu0 0
    %726 = vmatprep.subr.bf16.mxu0 0
    %727 = vmatpush1.bf16.msra.mxu0 0
    %728 = vmatprep.subr.bf16.mxu0 0
    %729 = vmatpush1.bf16.msra.mxu0 0
    %730 = vmatprep.subr.bf16.mxu0 0
    %731 = vmatpush1.bf16.msra.mxu0 0
    %732 = vmatprep.subr.bf16.mxu0 0
    %733 = vmatpush1.bf16.msra.mxu0 0
    %734 = vmatprep.subr.bf16.mxu0 0
    %735 = vmatpush1.bf16.msra.mxu0 0
    %736 = vmatprep.subr.bf16.mxu0 0
    %737 = vmatpush1.bf16.msra.mxu0 0
    %738 = vmatprep.subr.bf16.mxu0 0
    %739 = vmatpush1.bf16.msra.mxu0 0
    %740 = vmatprep.subr.bf16.mxu0 0
    %741 = vmatpush1.bf16.msra.mxu0 0
    %742 = vmatprep.subr.bf16.mxu0 0
    %743 = vmatpush1.bf16.msra.mxu0 0
    %744 = vmatprep.mubr.bf16.mxu0 0
    %745 = vmatmul.mubr.bf16.gmra.mrb[0].mxu0 %v707
    %v746 = vpop.f32.mrb[0].mxu0
    %v747 = vadd.f32 %v295, %v746
    %v748 = vpop.f32.mrb[0].mxu0
    %v749 = vpop.f32.mrb[0].mxu0
    %v750 = vadd.f32 %v298, %v749
    %v751 = vpop.f32.mrb[0].mxu0
    %752 = vmatprep.mubr.bf16.mxu0 0
    %753 = vmatmul.mubr.bf16.gmra.mrb[0].mxu0 %v710
    %v754 = vpop.f32.mrb[0].mxu0
    %v755 = vadd.f32 %v303, %v754
    %v756 = vpop.f32.mrb[0].mxu0
    %v757 = vpop.f32.mrb[0].mxu0
    %v758 = vadd.f32 %v306, %v757
    %v759 = vpop.f32.mrb[0].mxu0
    %760 = vdwg.mxu0
    %v761 = vmul.f32 %v747, %v474
    %v762 = vmul.f32 %v750, %v474
    %v763 = vmul.f32 %v755, %v474
    %v764 = vmul.f32 %v758, %v474
    %v765 = vadd.f32 %v761, %v484
    %v766 = vadd.f32 %v762, %v484
    %v767 = vadd.f32 %v763, %v484
    %v768 = vadd.f32 %v764, %v484
    %v769 = vmax.f32 %v765, 0.0
    %v770 = vmax.f32 %v766, 0.0
    %v771 = vmax.f32 %v767, 0.0
    %v772 = vmax.f32 %v768, 0.0
    %v773 = vpack.c.bf16 %v770, %v769
    %v774 = vpack.c.bf16 %v772, %v771
    %v776 = vsel %vm414, %v773, 0
    %v779 = vsel %vm414, %v774, 0
    %781 = vmatprep.subr.bf16.mxu0 0
    %782 = vmatpush1.bf16.msra.mxu0 %v504
    %783 = vmatprep.subr.bf16.mxu0 0
    %784 = vmatpush1.bf16.msra.mxu0 %v505
    %785 = vmatprep.subr.bf16.mxu0 0
    %786 = vmatpush1.bf16.msra.mxu0 0
    %787 = vmatprep.subr.bf16.mxu0 0
    %788 = vmatpush1.bf16.msra.mxu0 0
    %789 = vmatprep.subr.bf16.mxu0 0
    %790 = vmatpush1.bf16.msra.mxu0 0
    %791 = vmatprep.subr.bf16.mxu0 0
    %792 = vmatpush1.bf16.msra.mxu0 0
    %793 = vmatprep.subr.bf16.mxu0 0
    %794 = vmatpush1.bf16.msra.mxu0 0
    %795 = vmatprep.subr.bf16.mxu0 0
    %796 = vmatpush1.bf16.msra.mxu0 0
    %797 = vmatprep.subr.bf16.mxu0 0
    %798 = vmatpush1.bf16.msra.mxu0 0
    %799 = vmatprep.subr.bf16.mxu0 0
    %800 = vmatpush1.bf16.msra.mxu0 0
    %801 = vmatprep.subr.bf16.mxu0 0
    %802 = vmatpush1.bf16.msra.mxu0 0
    %803 = vmatprep.subr.bf16.mxu0 0
    %804 = vmatpush1.bf16.msra.mxu0 0
    %805 = vmatprep.subr.bf16.mxu0 0
    %806 = vmatpush1.bf16.msra.mxu0 0
    %807 = vmatprep.subr.bf16.mxu0 0
    %808 = vmatpush1.bf16.msra.mxu0 0
    %809 = vmatprep.subr.bf16.mxu0 0
    %810 = vmatpush1.bf16.msra.mxu0 0
    %811 = vmatprep.subr.bf16.mxu0 0
    %812 = vmatpush1.bf16.msra.mxu0 0
    %813 = vmatprep.mubr.bf16.mxu0 0
    %814 = vmatmul.mubr.bf16.gmra.mrb[0].mxu0 %v776
    %v815 = vpop.f32.mrb[0].mxu0
    %v816 = vadd.f32 0.0, %v815
    %v817 = vpop.f32.mrb[0].mxu0
    %v818 = vpop.f32.mrb[0].mxu0
    %v819 = vadd.f32 0.0, %v818
    %v820 = vpop.f32.mrb[0].mxu0
    %821 = vmatprep.mubr.bf16.mxu0 0
    %822 = vmatmul.mubr.bf16.gmra.mrb[0].mxu0 %v779
    %v823 = vpop.f32.mrb[0].mxu0
    %v824 = vadd.f32 0.0, %v823
    %v825 = vpop.f32.mrb[0].mxu0
    %v826 = vpop.f32.mrb[0].mxu0
    %v827 = vadd.f32 0.0, %v826
    %v828 = vpop.f32.mrb[0].mxu0
    %829 = vdwg.mxu0
    %v830 = vmul.f32 %v816, %v567
    %v831 = vmul.f32 %v819, %v567
    %v832 = vmul.f32 %v824, %v567
    %v833 = vmul.f32 %v827, %v567
    %v834 = vadd.f32 %v830, %v577
    %v835 = vadd.f32 %v831, %v577
    %v836 = vadd.f32 %v832, %v577
    %v837 = vadd.f32 %v833, %v577
    %v838 = vmax.f32 %v834, 0.0
    %v839 = vmax.f32 %v835, 0.0
    %v840 = vmax.f32 %v836, 0.0
    %v841 = vmax.f32 %v837, 0.0
    %v842 = vpack.c.bf16 %v839, %v838
    %v843 = vpack.c.bf16 %v841, %v840
    %v845 = vsel %vm414, %v842, 0
    %v848 = vsel %vm414, %v843, 0
    %850 = vmatprep.subr.bf16.mxu0 0
    %851 = vmatpush1.bf16.msra.mxu0 %v597
    %852 = vmatprep.subr.bf16.mxu0 0
    %853 = vmatpush1.bf16.msra.mxu0 %v598
    %854 = vmatprep.subr.bf16.mxu0 0
    %855 = vmatpush1.bf16.msra.mxu0 0
    %856 = vmatprep.subr.bf16.mxu0 0
    %857 = vmatpush1.bf16.msra.mxu0 0
    %858 = vmatprep.subr.bf16.mxu0 0
    %859 = vmatpush1.bf16.msra.mxu0 0
    %860 = vmatprep.subr.bf16.mxu0 0
    %861 = vmatpush1.bf16.msra.mxu0 0
    %862 = vmatprep.subr.bf16.mxu0 0
    %863 = vmatpush1.bf16.msra.mxu0 0
    %864 = vmatprep.subr.bf16.mxu0 0
    %865 = vmatpush1.bf16.msra.mxu0 0
    %866 = vmatprep.subr.bf16.mxu0 0
    %867 = vmatpush1.bf16.msra.mxu0 0
    %868 = vmatprep.subr.bf16.mxu0 0
    %869 = vmatpush1.bf16.msra.mxu0 0
    %870 = vmatprep.subr.bf16.mxu0 0
    %871 = vmatpush1.bf16.msra.mxu0 0
    %872 = vmatprep.subr.bf16.mxu0 0
    %873 = vmatpush1.bf16.msra.mxu0 0
    %874 = vmatprep.subr.bf16.mxu0 0
    %875 = vmatpush1.bf16.msra.mxu0 0
    %876 = vmatprep.subr.bf16.mxu0 0
    %877 = vmatpush1.bf16.msra.mxu0 0
    %878 = vmatprep.subr.bf16.mxu0 0
    %879 = vmatpush1.bf16.msra.mxu0 0
    %880 = vmatprep.subr.bf16.mxu0 0
    %881 = vmatpush1.bf16.msra.mxu0 0
    %882 = vmatprep.mubr.bf16.mxu0 0
    %883 = vmatmul.mubr.bf16.gmra.mrb[0].mxu0 %v845
    %v884 = vpop.f32.mrb[0].mxu0
    %v885 = vadd.f32 0.0, %v884
    %v886 = vpop.f32.mrb[0].mxu0
    %v887 = vpop.f32.mrb[0].mxu0
    %v888 = vadd.f32 0.0, %v887
    %v889 = vpop.f32.mrb[0].mxu0
    %890 = vmatprep.mubr.bf16.mxu0 0
    %891 = vmatmul.mubr.bf16.gmra.mrb[0].mxu0 %v848
    %v892 = vpop.f32.mrb[0].mxu0
    %v893 = vadd.f32 0.0, %v892
    %v894 = vpop.f32.mrb[0].mxu0
    %v895 = vpop.f32.mrb[0].mxu0
    %v896 = vadd.f32 0.0, %v895
    %v897 = vpop.f32.mrb[0].mxu0
    %898 = vdwg.mxu0
    %v899 = vmul.f32 %v885, %v660
    %v900 = vmul.f32 %v888, %v660
    %v901 = vmul.f32 %v893, %v660
    %v902 = vmul.f32 %v896, %v660
    %v903 = vadd.f32 %v899, %v670
    %v904 = vadd.f32 %v900, %v670
    %v905 = vadd.f32 %v901, %v670
    %v906 = vadd.f32 %v902, %v670
    %v907 = vmax.f32 %v903, 0.0
    %v908 = vmax.f32 %v904, 0.0
    %v909 = vmax.f32 %v905, 0.0
    %v910 = vmax.f32 %v906, 0.0
    %v911 = vmax.f32 %v676, %v907
    %v912 = vmax.f32 %v677, %v908
    %v913 = vmax.f32 %v678, %v909
    %v914 = vmax.f32 %v679, %v910
    %915 = vset.pattern.permute.xlu0 2
    %916 = vperm.xlu0 %915, %v382
    %v917 = vpop.permute.xlu0 %916
    %918 = vset.pattern.permute.xlu0 2
    %919 = vperm.xlu0 %918, %v383
    %v920 = vpop.permute.xlu0 %919
    %921 = vset.pattern.permute.xlu0 2
    %922 = vperm.xlu0 %921, %v384
    %v923 = vpop.permute.xlu0 %922
    %924 = vset.pattern.permute.xlu0 2
    %925 = vperm.xlu0 %924, %v385
    %v926 = vpop.permute.xlu0 %925
    %vm927 = vcmp.eq.s32.totalorder %v387, %v917
    %vm928 = vcmp.eq.s32.totalorder %v387, %v920
    %vm929 = vcmp.eq.s32.totalorder %v387, %v923
    %vm930 = vcmp.eq.s32.totalorder %v387, %v926
    %v931 = vsel %vm927, 1, 0
    %v932 = vsel %vm928, 1, 0
    %v933 = vsel %vm929, 1, 0
    %v934 = vsel %vm930, 1, 0
    %v935 = vcvt.s32.f32 %v931
    %v936 = vcvt.s32.f32 %v932
    %v937 = vcvt.s32.f32 %v933
    %v938 = vcvt.s32.f32 %v934
    %v939 = vpack.c.bf16 %v936, %v935
    %v940 = vpack.c.bf16 %v938, %v937
    %v942 = vsel %vm414, %v939, 0
    %v945 = vsel %vm414, %v940, 0
    %947 = vmatprep.subr.bf16.mxu0 0
    %948 = vmatpush1.bf16.msra.mxu0 %v366
    %949 = vmatprep.subr.bf16.mxu0 0
    %950 = vmatpush1.bf16.msra.mxu0 %v367
    %951 = vmatprep.subr.bf16.mxu0 0
    %952 = vmatpush1.bf16.msra.mxu0 0
    %953 = vmatprep.subr.bf16.mxu0 0
    %954 = vmatpush1.bf16.msra.mxu0 0
    %955 = vmatprep.subr.bf16.mxu0 0
    %956 = vmatpush1.bf16.msra.mxu0 0
    %957 = vmatprep.subr.bf16.mxu0 0
    %958 = vmatpush1.bf16.msra.mxu0 0
    %959 = vmatprep.subr.bf16.mxu0 0
    %960 = vmatpush1.bf16.msra.mxu0 0
    %961 = vmatprep.subr.bf16.mxu0 0
    %962 = vmatpush1.bf16.msra.mxu0 0
    %963 = vmatprep.subr.bf16.mxu0 0
    %964 = vmatpush1.bf16.msra.mxu0 0
    %965 = vmatprep.subr.bf16.mxu0 0
    %966 = vmatpush1.bf16.msra.mxu0 0
    %967 = vmatprep.subr.bf16.mxu0 0
    %968 = vmatpush1.bf16.msra.mxu0 0
    %969 = vmatprep.subr.bf16.mxu0 0
    %970 = vmatpush1.bf16.msra.mxu0 0
    %971 = vmatprep.subr.bf16.mxu0 0
    %972 = vmatpush1.bf16.msra.mxu0 0
    %973 = vmatprep.subr.bf16.mxu0 0
    %974 = vmatpush1.bf16.msra.mxu0 0
    %975 = vmatprep.subr.bf16.mxu0 0
    %976 = vmatpush1.bf16.msra.mxu0 0
    %977 = vmatprep.subr.bf16.mxu0 0
    %978 = vmatpush1.bf16.msra.mxu0 0
    %979 = vmatprep.mubr.bf16.mxu0 0
    %980 = vmatmul.mubr.bf16.gmra.mrb[0].mxu0 %v942
    %v981 = vpop.f32.mrb[0].mxu0
    %v982 = vadd.f32 %v295, %v981
    %v983 = vpop.f32.mrb[0].mxu0
    %v984 = vpop.f32.mrb[0].mxu0
    %v985 = vadd.f32 %v298, %v984
    %v986 = vpop.f32.mrb[0].mxu0
    %987 = vmatprep.mubr.bf16.mxu0 0
    %988 = vmatmul.mubr.bf16.gmra.mrb[0].mxu0 %v945
    %v989 = vpop.f32.mrb[0].mxu0
    %v990 = vadd.f32 %v303, %v989
    %v991 = vpop.f32.mrb[0].mxu0
    %v992 = vpop.f32.mrb[0].mxu0
    %v993 = vadd.f32 %v306, %v992
    %v994 = vpop.f32.mrb[0].mxu0
    %995 = vdwg.mxu0
    %v996 = vmul.f32 %v982, %v474
    %v997 = vmul.f32 %v985, %v474
    %v998 = vmul.f32 %v990, %v474
    %v999 = vmul.f32 %v993, %v474
    %v1000 = vadd.f32 %v996, %v484
    %v1001 = vadd.f32 %v997, %v484
    %v1002 = vadd.f32 %v998, %v484
    %v1003 = vadd.f32 %v999, %v484
    %v1004 = vmax.f32 %v1000, 0.0
    %v1005 = vmax.f32 %v1001, 0.0
    %v1006 = vmax.f32 %v1002, 0.0
    %v1007 = vmax.f32 %v1003, 0.0
    %v1008 = vpack.c.bf16 %v1005, %v1004
    %v1009 = vpack.c.bf16 %v1007, %v1006
    %v1011 = vsel %vm414, %v1008, 0
    %v1014 = vsel %vm414, %v1009, 0
    %1016 = vmatprep.subr.bf16.mxu0 0
    %1017 = vmatpush1.bf16.msra.mxu0 %v504
    %1018 = vmatprep.subr.bf16.mxu0 0
    %1019 = vmatpush1.bf16.msra.mxu0 %v505
    %1020 = vmatprep.subr.bf16.mxu0 0
    %1021 = vmatpush1.bf16.msra.mxu0 0
    %1022 = vmatprep.subr.bf16.mxu0 0
    %1023 = vmatpush1.bf16.msra.mxu0 0
    %1024 = vmatprep.subr.bf16.mxu0 0
    %1025 = vmatpush1.bf16.msra.mxu0 0
    %1026 = vmatprep.subr.bf16.mxu0 0
    %1027 = vmatpush1.bf16.msra.mxu0 0
    %1028 = vmatprep.subr.bf16.mxu0 0
    %1029 = vmatpush1.bf16.msra.mxu0 0
    %1030 = vmatprep.subr.bf16.mxu0 0
    %1031 = vmatpush1.bf16.msra.mxu0 0
    %1032 = vmatprep.subr.bf16.mxu0 0
    %1033 = vmatpush1.bf16.msra.mxu0 0
    %1034 = vmatprep.subr.bf16.mxu0 0
    %1035 = vmatpush1.bf16.msra.mxu0 0
    %1036 = vmatprep.subr.bf16.mxu0 0
    %1037 = vmatpush1.bf16.msra.mxu0 0
    %1038 = vmatprep.subr.bf16.mxu0 0
    %1039 = vmatpush1.bf16.msra.mxu0 0
    %1040 = vmatprep.subr.bf16.mxu0 0
    %1041 = vmatpush1.bf16.msra.mxu0 0
    %1042 = vmatprep.subr.bf16.mxu0 0
    %1043 = vmatpush1.bf16.msra.mxu0 0
    %1044 = vmatprep.subr.bf16.mxu0 0
    %1045 = vmatpush1.bf16.msra.mxu0 0
    %1046 = vmatprep.subr.bf16.mxu0 0
    %1047 = vmatpush1.bf16.msra.mxu0 0
    %1048 = vmatprep.mubr.bf16.mxu0 0
    %1049 = vmatmul.mubr.bf16.gmra.mrb[0].mxu0 %v1011
    %v1050 = vpop.f32.mrb[0].mxu0
    %v1051 = vadd.f32 0.0, %v1050
    %v1052 = vpop.f32.mrb[0].mxu0
    %v1053 = vpop.f32.mrb[0].mxu0
    %v1054 = vadd.f32 0.0, %v1053
    %v1055 = vpop.f32.mrb[0].mxu0
    %1056 = vmatprep.mubr.bf16.mxu0 0
    %1057 = vmatmul.mubr.bf16.gmra.mrb[0].mxu0 %v1014
    %v1058 = vpop.f32.mrb[0].mxu0
    %v1059 = vadd.f32 0.0, %v1058
    %v1060 = vpop.f32.mrb[0].mxu0
    %v1061 = vpop.f32.mrb[0].mxu0
    %v1062 = vadd.f32 0.0, %v1061
    %v1063 = vpop.f32.mrb[0].mxu0
    %1064 = vdwg.mxu0
    %v1065 = vmul.f32 %v1051, %v567
    %v1066 = vmul.f32 %v1054, %v567
    %v1067 = vmul.f32 %v1059, %v567
    %v1068 = vmul.f32 %v1062, %v567
    %v1069 = vadd.f32 %v1065, %v577
    %v1070 = vadd.f32 %v1066, %v577
    %v1071 = vadd.f32 %v1067, %v577
    %v1072 = vadd.f32 %v1068, %v577
    %v1073 = vmax.f32 %v1069, 0.0
    %v1074 = vmax.f32 %v1070, 0.0
    %v1075 = vmax.f32 %v1071, 0.0
    %v1076 = vmax.f32 %v1072, 0.0
    %v1077 = vpack.c.bf16 %v1074, %v1073
    %v1078 = vpack.c.bf16 %v1076, %v1075
    %v1080 = vsel %vm414, %v1077, 0
    %v1083 = vsel %vm414, %v1078, 0
    %1085 = vmatprep.subr.bf16.mxu0 0
    %1086 = vmatpush1.bf16.msra.mxu0 %v597
    %1087 = vmatprep.subr.bf16.mxu0 0
    %1088 = vmatpush1.bf16.msra.mxu0 %v598
    %1089 = vmatprep.subr.bf16.mxu0 0
    %1090 = vmatpush1.bf16.msra.mxu0 0
    %1091 = vmatprep.subr.bf16.mxu0 0
    %1092 = vmatpush1.bf16.msra.mxu0 0
    %1093 = vmatprep.subr.bf16.mxu0 0
    %1094 = vmatpush1.bf16.msra.mxu0 0
    %1095 = vmatprep.subr.bf16.mxu0 0
    %1096 = vmatpush1.bf16.msra.mxu0 0
    %1097 = vmatprep.subr.bf16.mxu0 0
    %1098 = vmatpush1.bf16.msra.mxu0 0
    %1099 = vmatprep.subr.bf16.mxu0 0
    %1100 = vmatpush1.bf16.msra.mxu0 0
    %1101 = vmatprep.subr.bf16.mxu0 0
    %1102 = vmatpush1.bf16.msra.mxu0 0
    %1103 = vmatprep.subr.bf16.mxu0 0
    %1104 = vmatpush1.bf16.msra.mxu0 0
    %1105 = vmatprep.subr.bf16.mxu0 0
    %1106 = vmatpush1.bf16.msra.mxu0 0
    %1107 = vmatprep.subr.bf16.mxu0 0
    %1108 = vmatpush1.bf16.msra.mxu0 0
    %1109 = vmatprep.subr.bf16.mxu0 0
    %1110 = vmatpush1.bf16.msra.mxu0 0
    %1111 = vmatprep.subr.bf16.mxu0 0
    %1112 = vmatpush1.bf16.msra.mxu0 0
    %1113 = vmatprep.subr.bf16.mxu0 0
    %1114 = vmatpush1.bf16.msra.mxu0 0
    %1115 = vmatprep.subr.bf16.mxu0 0
    %1116 = vmatpush1.bf16.msra.mxu0 0
    %1117 = vmatprep.mubr.bf16.mxu0 0
    %1118 = vmatmul.mubr.bf16.gmra.mrb[0].mxu0 %v1080
    %v1119 = vpop.f32.mrb[0].mxu0
    %v1120 = vadd.f32 0.0, %v1119
    %v1121 = vpop.f32.mrb[0].mxu0
    %v1122 = vpop.f32.mrb[0].mxu0
    %v1123 = vadd.f32 0.0, %v1122
    %v1124 = vpop.f32.mrb[0].mxu0
    %1125 = vmatprep.mubr.bf16.mxu0 0
    %1126 = vmatmul.mubr.bf16.gmra.mrb[0].mxu0 %v1083
    %v1127 = vpop.f32.mrb[0].mxu0
    %v1128 = vadd.f32 0.0, %v1127
    %v1129 = vpop.f32.mrb[0].mxu0
    %v1130 = vpop.f32.mrb[0].mxu0
    %v1131 = vadd.f32 0.0, %v1130
    %v1132 = vpop.f32.mrb[0].mxu0
    %1133 = vdwg.mxu0
    %v1134 = vmul.f32 %v1120, %v660
    %v1135 = vmul.f32 %v1123, %v660
    %v1136 = vmul.f32 %v1128, %v660
    %v1137 = vmul.f32 %v1131, %v660
    %v1138 = vadd.f32 %v1134, %v670
    %v1139 = vadd.f32 %v1135, %v670
    %v1140 = vadd.f32 %v1136, %v670
    %v1141 = vadd.f32 %v1137, %v670
    %v1142 = vmax.f32 %v1138, 0.0
    %v1143 = vmax.f32 %v1139, 0.0
    %v1144 = vmax.f32 %v1140, 0.0
    %v1145 = vmax.f32 %v1141, 0.0
    %v1146 = vmax.f32 %v911, %v1142
    %v1147 = vmax.f32 %v912, %v1143
    %v1148 = vmax.f32 %v913, %v1144
    %v1149 = vmax.f32 %v914, %v1145
    %1150 = vset.pattern.permute.xlu0 3
    %1151 = vperm.xlu0 %1150, %v382
    %v1152 = vpop.permute.xlu0 %1151
    %1153 = vset.pattern.permute.xlu0 3
    %1154 = vperm.xlu0 %1153, %v383
    %v1155 = vpop.permute.xlu0 %1154
    %1156 = vset.pattern.permute.xlu0 3
    %1157 = vperm.xlu0 %1156, %v384
    %v1158 = vpop.permute.xlu0 %1157
    %1159 = vset.pattern.permute.xlu0 3
    %1160 = vperm.xlu0 %1159, %v385
    %v1161 = vpop.permute.xlu0 %1160
    %vm1162 = vcmp.eq.s32.totalorder %v387, %v1152
    %vm1163 = vcmp.eq.s32.totalorder %v387, %v1155
    %vm1164 = vcmp.eq.s32.totalorder %v387, %v1158
    %vm1165 = vcmp.eq.s32.totalorder %v387, %v1161
    %v1166 = vsel %vm1162, 1, 0
    %v1167 = vsel %vm1163, 1, 0
    %v1168 = vsel %vm1164, 1, 0
    %v1169 = vsel %vm1165, 1, 0
    %v1170 = vcvt.s32.f32 %v1166
    %v1171 = vcvt.s32.f32 %v1167
    %v1172 = vcvt.s32.f32 %v1168
    %v1173 = vcvt.s32.f32 %v1169
    %v1174 = vpack.c.bf16 %v1171, %v1170
    %v1175 = vpack.c.bf16 %v1173, %v1172
    %v1177 = vsel %vm414, %v1174, 0
    %v1180 = vsel %vm414, %v1175, 0
    %1182 = vmatprep.subr.bf16.mxu0 0
    %1183 = vmatpush1.bf16.msra.mxu0 %v366
    %1184 = vmatprep.subr.bf16.mxu0 0
    %1185 = vmatpush1.bf16.msra.mxu0 %v367
    %1186 = vmatprep.subr.bf16.mxu0 0
    %1187 = vmatpush1.bf16.msra.mxu0 0
    %1188 = vmatprep.subr.bf16.mxu0 0
    %1189 = vmatpush1.bf16.msra.mxu0 0
    %1190 = vmatprep.subr.bf16.mxu0 0
    %1191 = vmatpush1.bf16.msra.mxu0 0
    %1192 = vmatprep.subr.bf16.mxu0 0
    %1193 = vmatpush1.bf16.msra.mxu0 0
    %1194 = vmatprep.subr.bf16.mxu0 0
    %1195 = vmatpush1.bf16.msra.mxu0 0
    %1196 = vmatprep.subr.bf16.mxu0 0
    %1197 = vmatpush1.bf16.msra.mxu0 0
    %1198 = vmatprep.subr.bf16.mxu0 0
    %1199 = vmatpush1.bf16.msra.mxu0 0
    %1200 = vmatprep.subr.bf16.mxu0 0
    %1201 = vmatpush1.bf16.msra.mxu0 0
    %1202 = vmatprep.subr.bf16.mxu0 0
    %1203 = vmatpush1.bf16.msra.mxu0 0
    %1204 = vmatprep.subr.bf16.mxu0 0
    %1205 = vmatpush1.bf16.msra.mxu0 0
    %1206 = vmatprep.subr.bf16.mxu0 0
    %1207 = vmatpush1.bf16.msra.mxu0 0
    %1208 = vmatprep.subr.bf16.mxu0 0
    %1209 = vmatpush1.bf16.msra.mxu0 0
    %1210 = vmatprep.subr.bf16.mxu0 0
    %1211 = vmatpush1.bf16.msra.mxu0 0
    %1212 = vmatprep.subr.bf16.mxu0 0
    %1213 = vmatpush1.bf16.msra.mxu0 0
    %1214 = vmatprep.mubr.bf16.mxu0 0
    %1215 = vmatmul.mubr.bf16.gmra.mrb[0].mxu0 %v1177
    %v1216 = vpop.f32.mrb[0].mxu0
    %v1217 = vadd.f32 %v295, %v1216
    %v1218 = vpop.f32.mrb[0].mxu0
    %v1219 = vpop.f32.mrb[0].mxu0
    %v1220 = vadd.f32 %v298, %v1219
    %v1221 = vpop.f32.mrb[0].mxu0
    %1222 = vmatprep.mubr.bf16.mxu0 0
    %1223 = vmatmul.mubr.bf16.gmra.mrb[0].mxu0 %v1180
    %v1224 = vpop.f32.mrb[0].mxu0
    %v1225 = vadd.f32 %v303, %v1224
    %v1226 = vpop.f32.mrb[0].mxu0
    %v1227 = vpop.f32.mrb[0].mxu0
    %v1228 = vadd.f32 %v306, %v1227
    %v1229 = vpop.f32.mrb[0].mxu0
    %1230 = vdwg.mxu0
    %v1231 = vmul.f32 %v1217, %v474
    %v1232 = vmul.f32 %v1220, %v474
    %v1233 = vmul.f32 %v1225, %v474
    %v1234 = vmul.f32 %v1228, %v474
    %v1235 = vadd.f32 %v1231, %v484
    %v1236 = vadd.f32 %v1232, %v484
    %v1237 = vadd.f32 %v1233, %v484
    %v1238 = vadd.f32 %v1234, %v484
    %v1239 = vmax.f32 %v1235, 0.0
    %v1240 = vmax.f32 %v1236, 0.0
    %v1241 = vmax.f32 %v1237, 0.0
    %v1242 = vmax.f32 %v1238, 0.0
    %v1243 = vpack.c.bf16 %v1240, %v1239
    %v1244 = vpack.c.bf16 %v1242, %v1241
    %v1246 = vsel %vm414, %v1243, 0
    %v1249 = vsel %vm414, %v1244, 0
    %1251 = vmatprep.subr.bf16.mxu0 0
    %1252 = vmatpush1.bf16.msra.mxu0 %v504
    %1253 = vmatprep.subr.bf16.mxu0 0
    %1254 = vmatpush1.bf16.msra.mxu0 %v505
    %1255 = vmatprep.subr.bf16.mxu0 0
    %1256 = vmatpush1.bf16.msra.mxu0 0
    %1257 = vmatprep.subr.bf16.mxu0 0
    %1258 = vmatpush1.bf16.msra.mxu0 0
    %1259 = vmatprep.subr.bf16.mxu0 0
    %1260 = vmatpush1.bf16.msra.mxu0 0
    %1261 = vmatprep.subr.bf16.mxu0 0
    %1262 = vmatpush1.bf16.msra.mxu0 0
    %1263 = vmatprep.subr.bf16.mxu0 0
    %1264 = vmatpush1.bf16.msra.mxu0 0
    %1265 = vmatprep.subr.bf16.mxu0 0
    %1266 = vmatpush1.bf16.msra.mxu0 0
    %1267 = vmatprep.subr.bf16.mxu0 0
    %1268 = vmatpush1.bf16.msra.mxu0 0
    %1269 = vmatprep.subr.bf16.mxu0 0
    %1270 = vmatpush1.bf16.msra.mxu0 0
    %1271 = vmatprep.subr.bf16.mxu0 0
    %1272 = vmatpush1.bf16.msra.mxu0 0
    %1273 = vmatprep.subr.bf16.mxu0 0
    %1274 = vmatpush1.bf16.msra.mxu0 0
    %1275 = vmatprep.subr.bf16.mxu0 0
    %1276 = vmatpush1.bf16.msra.mxu0 0
    %1277 = vmatprep.subr.bf16.mxu0 0
    %1278 = vmatpush1.bf16.msra.mxu0 0
    %1279 = vmatprep.subr.bf16.mxu0 0
    %1280 = vmatpush1.bf16.msra.mxu0 0
    %1281 = vmatprep.subr.bf16.mxu0 0
    %1282 = vmatpush1.bf16.msra.mxu0 0
    %1283 = vmatprep.mubr.bf16.mxu0 0
    %1284 = vmatmul.mubr.bf16.gmra.mrb[0].mxu0 %v1246
    %v1285 = vpop.f32.mrb[0].mxu0
    %v1286 = vadd.f32 0.0, %v1285
    %v1287 = vpop.f32.mrb[0].mxu0
    %v1288 = vpop.f32.mrb[0].mxu0
    %v1289 = vadd.f32 0.0, %v1288
    %v1290 = vpop.f32.mrb[0].mxu0
    %1291 = vmatprep.mubr.bf16.mxu0 0
    %1292 = vmatmul.mubr.bf16.gmra.mrb[0].mxu0 %v1249
    %v1293 = vpop.f32.mrb[0].mxu0
    %v1294 = vadd.f32 0.0, %v1293
    %v1295 = vpop.f32.mrb[0].mxu0
    %v1296 = vpop.f32.mrb[0].mxu0
    %v1297 = vadd.f32 0.0, %v1296
    %v1298 = vpop.f32.mrb[0].mxu0
    %1299 = vdwg.mxu0
    %v1300 = vmul.f32 %v1286, %v567
    %v1301 = vmul.f32 %v1289, %v567
    %v1302 = vmul.f32 %v1294, %v567
    %v1303 = vmul.f32 %v1297, %v567
    %v1304 = vadd.f32 %v1300, %v577
    %v1305 = vadd.f32 %v1301, %v577
    %v1306 = vadd.f32 %v1302, %v577
    %v1307 = vadd.f32 %v1303, %v577
    %v1308 = vmax.f32 %v1304, 0.0
    %v1309 = vmax.f32 %v1305, 0.0
    %v1310 = vmax.f32 %v1306, 0.0
    %v1311 = vmax.f32 %v1307, 0.0
    %v1312 = vpack.c.bf16 %v1309, %v1308
    %v1313 = vpack.c.bf16 %v1311, %v1310
    %v1315 = vsel %vm414, %v1312, 0
    %v1318 = vsel %vm414, %v1313, 0
    %1320 = vmatprep.subr.bf16.mxu0 0
    %1321 = vmatpush1.bf16.msra.mxu0 %v597
    %1322 = vmatprep.subr.bf16.mxu0 0
    %1323 = vmatpush1.bf16.msra.mxu0 %v598
    %1324 = vmatprep.subr.bf16.mxu0 0
    %1325 = vmatpush1.bf16.msra.mxu0 0
    %1326 = vmatprep.subr.bf16.mxu0 0
    %1327 = vmatpush1.bf16.msra.mxu0 0
    %1328 = vmatprep.subr.bf16.mxu0 0
    %1329 = vmatpush1.bf16.msra.mxu0 0
    %1330 = vmatprep.subr.bf16.mxu0 0
    %1331 = vmatpush1.bf16.msra.mxu0 0
    %1332 = vmatprep.subr.bf16.mxu0 0
    %1333 = vmatpush1.bf16.msra.mxu0 0
    %1334 = vmatprep.subr.bf16.mxu0 0
    %1335 = vmatpush1.bf16.msra.mxu0 0
    %1336 = vmatprep.subr.bf16.mxu0 0
    %1337 = vmatpush1.bf16.msra.mxu0 0
    %1338 = vmatprep.subr.bf16.mxu0 0
    %1339 = vmatpush1.bf16.msra.mxu0 0
    %1340 = vmatprep.subr.bf16.mxu0 0
    %1341 = vmatpush1.bf16.msra.mxu0 0
    %1342 = vmatprep.subr.bf16.mxu0 0
    %1343 = vmatpush1.bf16.msra.mxu0 0
    %1344 = vmatprep.subr.bf16.mxu0 0
    %1345 = vmatpush1.bf16.msra.mxu0 0
    %1346 = vmatprep.subr.bf16.mxu0 0
    %1347 = vmatpush1.bf16.msra.mxu0 0
    %1348 = vmatprep.subr.bf16.mxu0 0
    %1349 = vmatpush1.bf16.msra.mxu0 0
    %1350 = vmatprep.subr.bf16.mxu0 0
    %1351 = vmatpush1.bf16.msra.mxu0 0
    %1352 = vmatprep.mubr.bf16.mxu0 0
    %1353 = vmatmul.mubr.bf16.gmra.mrb[0].mxu0 %v1315
    %v1354 = vpop.f32.mrb[0].mxu0
    %v1355 = vadd.f32 0.0, %v1354
    %v1356 = vpop.f32.mrb[0].mxu0
    %v1357 = vpop.f32.mrb[0].mxu0
    %v1358 = vadd.f32 0.0, %v1357
    %v1359 = vpop.f32.mrb[0].mxu0
    %1360 = vmatprep.mubr.bf16.mxu0 0
    %1361 = vmatmul.mubr.bf16.gmra.mrb[0].mxu0 %v1318
    %v1362 = vpop.f32.mrb[0].mxu0
    %v1363 = vadd.f32 0.0, %v1362
    %v1364 = vpop.f32.mrb[0].mxu0
    %v1365 = vpop.f32.mrb[0].mxu0
    %v1366 = vadd.f32 0.0, %v1365
    %v1367 = vpop.f32.mrb[0].mxu0
    %1368 = vdwg.mxu0
    %v1369 = vmul.f32 %v1355, %v660
    %v1370 = vmul.f32 %v1358, %v660
    %v1371 = vmul.f32 %v1363, %v660
    %v1372 = vmul.f32 %v1366, %v660
    %v1373 = vadd.f32 %v1369, %v670
    %v1374 = vadd.f32 %v1370, %v670
    %v1375 = vadd.f32 %v1371, %v670
    %v1376 = vadd.f32 %v1372, %v670
    %v1377 = vmax.f32 %v1373, 0.0
    %v1378 = vmax.f32 %v1374, 0.0
    %v1379 = vmax.f32 %v1375, 0.0
    %v1380 = vmax.f32 %v1376, 0.0
    %v1381 = vmax.f32 %v1146, %v1377
    %v1382 = vmax.f32 %v1147, %v1378
    %v1383 = vmax.f32 %v1148, %v1379
    %v1384 = vmax.f32 %v1149, %v1380
    %1385 = vset.pattern.permute.xlu0 4
    %1386 = vperm.xlu0 %1385, %v382
    %v1387 = vpop.permute.xlu0 %1386
    %1388 = vset.pattern.permute.xlu0 4
    %1389 = vperm.xlu0 %1388, %v383
    %v1390 = vpop.permute.xlu0 %1389
    %1391 = vset.pattern.permute.xlu0 4
    %1392 = vperm.xlu0 %1391, %v384
    %v1393 = vpop.permute.xlu0 %1392
    %1394 = vset.pattern.permute.xlu0 4
    %1395 = vperm.xlu0 %1394, %v385
    %v1396 = vpop.permute.xlu0 %1395
    %vm1397 = vcmp.eq.s32.totalorder %v387, %v1387
    %vm1398 = vcmp.eq.s32.totalorder %v387, %v1390
    %vm1399 = vcmp.eq.s32.totalorder %v387, %v1393
    %vm1400 = vcmp.eq.s32.totalorder %v387, %v1396
    %v1401 = vsel %vm1397, 1, 0
    %v1402 = vsel %vm1398, 1, 0
    %v1403 = vsel %vm1399, 1, 0
    %v1404 = vsel %vm1400, 1, 0
    %v1405 = vcvt.s32.f32 %v1401
    %v1406 = vcvt.s32.f32 %v1402
    %v1407 = vcvt.s32.f32 %v1403
    %v1408 = vcvt.s32.f32 %v1404
    %v1409 = vpack.c.bf16 %v1406, %v1405
    %v1410 = vpack.c.bf16 %v1408, %v1407
    %v1412 = vsel %vm414, %v1409, 0
    %v1415 = vsel %vm414, %v1410, 0
    %1417 = vmatprep.subr.bf16.mxu0 0
    %1418 = vmatpush1.bf16.msra.mxu0 %v366
    %1419 = vmatprep.subr.bf16.mxu0 0
    %1420 = vmatpush1.bf16.msra.mxu0 %v367
    %1421 = vmatprep.subr.bf16.mxu0 0
    %1422 = vmatpush1.bf16.msra.mxu0 0
    %1423 = vmatprep.subr.bf16.mxu0 0
    %1424 = vmatpush1.bf16.msra.mxu0 0
    %1425 = vmatprep.subr.bf16.mxu0 0
    %1426 = vmatpush1.bf16.msra.mxu0 0
    %1427 = vmatprep.subr.bf16.mxu0 0
    %1428 = vmatpush1.bf16.msra.mxu0 0
    %1429 = vmatprep.subr.bf16.mxu0 0
    %1430 = vmatpush1.bf16.msra.mxu0 0
    %1431 = vmatprep.subr.bf16.mxu0 0
    %1432 = vmatpush1.bf16.msra.mxu0 0
    %1433 = vmatprep.subr.bf16.mxu0 0
    %1434 = vmatpush1.bf16.msra.mxu0 0
    %1435 = vmatprep.subr.bf16.mxu0 0
    %1436 = vmatpush1.bf16.msra.mxu0 0
    %1437 = vmatprep.subr.bf16.mxu0 0
    %1438 = vmatpush1.bf16.msra.mxu0 0
    %1439 = vmatprep.subr.bf16.mxu0 0
    %1440 = vmatpush1.bf16.msra.mxu0 0
    %1441 = vmatprep.subr.bf16.mxu0 0
    %1442 = vmatpush1.bf16.msra.mxu0 0
    %1443 = vmatprep.subr.bf16.mxu0 0
    %1444 = vmatpush1.bf16.msra.mxu0 0
    %1445 = vmatprep.subr.bf16.mxu0 0
    %1446 = vmatpush1.bf16.msra.mxu0 0
    %1447 = vmatprep.subr.bf16.mxu0 0
    %1448 = vmatpush1.bf16.msra.mxu0 0
    %1449 = vmatprep.mubr.bf16.mxu0 0
    %1450 = vmatmul.mubr.bf16.gmra.mrb[0].mxu0 %v1412
    %v1451 = vpop.f32.mrb[0].mxu0
    %v1452 = vadd.f32 %v295, %v1451
    %v1453 = vpop.f32.mrb[0].mxu0
    %v1454 = vpop.f32.mrb[0].mxu0
    %v1455 = vadd.f32 %v298, %v1454
    %v1456 = vpop.f32.mrb[0].mxu0
    %1457 = vmatprep.mubr.bf16.mxu0 0
    %1458 = vmatmul.mubr.bf16.gmra.mrb[0].mxu0 %v1415
    %v1459 = vpop.f32.mrb[0].mxu0
    %v1460 = vadd.f32 %v303, %v1459
    %v1461 = vpop.f32.mrb[0].mxu0
    %v1462 = vpop.f32.mrb[0].mxu0
    %v1463 = vadd.f32 %v306, %v1462
    %v1464 = vpop.f32.mrb[0].mxu0
    %1465 = vdwg.mxu0
    %v1466 = vmul.f32 %v1452, %v474
    %v1467 = vmul.f32 %v1455, %v474
    %v1468 = vmul.f32 %v1460, %v474
    %v1469 = vmul.f32 %v1463, %v474
    %v1470 = vadd.f32 %v1466, %v484
    %v1471 = vadd.f32 %v1467, %v484
    %v1472 = vadd.f32 %v1468, %v484
    %v1473 = vadd.f32 %v1469, %v484
    %v1474 = vmax.f32 %v1470, 0.0
    %v1475 = vmax.f32 %v1471, 0.0
    %v1476 = vmax.f32 %v1472, 0.0
    %v1477 = vmax.f32 %v1473, 0.0
    %v1478 = vpack.c.bf16 %v1475, %v1474
    %v1479 = vpack.c.bf16 %v1477, %v1476
    %v1481 = vsel %vm414, %v1478, 0
    %v1484 = vsel %vm414, %v1479, 0
    %1486 = vmatprep.subr.bf16.mxu0 0
    %1487 = vmatpush1.bf16.msra.mxu0 %v504
    %1488 = vmatprep.subr.bf16.mxu0 0
    %1489 = vmatpush1.bf16.msra.mxu0 %v505
    %1490 = vmatprep.subr.bf16.mxu0 0
    %1491 = vmatpush1.bf16.msra.mxu0 0
    %1492 = vmatprep.subr.bf16.mxu0 0
    %1493 = vmatpush1.bf16.msra.mxu0 0
    %1494 = vmatprep.subr.bf16.mxu0 0
    %1495 = vmatpush1.bf16.msra.mxu0 0
    %1496 = vmatprep.subr.bf16.mxu0 0
    %1497 = vmatpush1.bf16.msra.mxu0 0
    %1498 = vmatprep.subr.bf16.mxu0 0
    %1499 = vmatpush1.bf16.msra.mxu0 0
    %1500 = vmatprep.subr.bf16.mxu0 0
    %1501 = vmatpush1.bf16.msra.mxu0 0
    %1502 = vmatprep.subr.bf16.mxu0 0
    %1503 = vmatpush1.bf16.msra.mxu0 0
    %1504 = vmatprep.subr.bf16.mxu0 0
    %1505 = vmatpush1.bf16.msra.mxu0 0
    %1506 = vmatprep.subr.bf16.mxu0 0
    %1507 = vmatpush1.bf16.msra.mxu0 0
    %1508 = vmatprep.subr.bf16.mxu0 0
    %1509 = vmatpush1.bf16.msra.mxu0 0
    %1510 = vmatprep.subr.bf16.mxu0 0
    %1511 = vmatpush1.bf16.msra.mxu0 0
    %1512 = vmatprep.subr.bf16.mxu0 0
    %1513 = vmatpush1.bf16.msra.mxu0 0
    %1514 = vmatprep.subr.bf16.mxu0 0
    %1515 = vmatpush1.bf16.msra.mxu0 0
    %1516 = vmatprep.subr.bf16.mxu0 0
    %1517 = vmatpush1.bf16.msra.mxu0 0
    %1518 = vmatprep.mubr.bf16.mxu0 0
    %1519 = vmatmul.mubr.bf16.gmra.mrb[0].mxu0 %v1481
    %v1520 = vpop.f32.mrb[0].mxu0
    %v1521 = vadd.f32 0.0, %v1520
    %v1522 = vpop.f32.mrb[0].mxu0
    %v1523 = vpop.f32.mrb[0].mxu0
    %v1524 = vadd.f32 0.0, %v1523
    %v1525 = vpop.f32.mrb[0].mxu0
    %1526 = vmatprep.mubr.bf16.mxu0 0
    %1527 = vmatmul.mubr.bf16.gmra.mrb[0].mxu0 %v1484
    %v1528 = vpop.f32.mrb[0].mxu0
    %v1529 = vadd.f32 0.0, %v1528
    %v1530 = vpop.f32.mrb[0].mxu0
    %v1531 = vpop.f32.mrb[0].mxu0
    %v1532 = vadd.f32 0.0, %v1531
    %v1533 = vpop.f32.mrb[0].mxu0
    %1534 = vdwg.mxu0
    %v1535 = vmul.f32 %v1521, %v567
    %v1536 = vmul.f32 %v1524, %v567
    %v1537 = vmul.f32 %v1529, %v567
    %v1538 = vmul.f32 %v1532, %v567
    %v1539 = vadd.f32 %v1535, %v577
    %v1540 = vadd.f32 %v1536, %v577
    %v1541 = vadd.f32 %v1537, %v577
    %v1542 = vadd.f32 %v1538, %v577
    %v1543 = vmax.f32 %v1539, 0.0
    %v1544 = vmax.f32 %v1540, 0.0
    %v1545 = vmax.f32 %v1541, 0.0
    %v1546 = vmax.f32 %v1542, 0.0
    %v1547 = vpack.c.bf16 %v1544, %v1543
    %v1548 = vpack.c.bf16 %v1546, %v1545
    %v1550 = vsel %vm414, %v1547, 0
    %v1553 = vsel %vm414, %v1548, 0
    %1555 = vmatprep.subr.bf16.mxu0 0
    %1556 = vmatpush1.bf16.msra.mxu0 %v597
    %1557 = vmatprep.subr.bf16.mxu0 0
    %1558 = vmatpush1.bf16.msra.mxu0 %v598
    %1559 = vmatprep.subr.bf16.mxu0 0
    %1560 = vmatpush1.bf16.msra.mxu0 0
    %1561 = vmatprep.subr.bf16.mxu0 0
    %1562 = vmatpush1.bf16.msra.mxu0 0
    %1563 = vmatprep.subr.bf16.mxu0 0
    %1564 = vmatpush1.bf16.msra.mxu0 0
    %1565 = vmatprep.subr.bf16.mxu0 0
    %1566 = vmatpush1.bf16.msra.mxu0 0
    %1567 = vmatprep.subr.bf16.mxu0 0
    %1568 = vmatpush1.bf16.msra.mxu0 0
    %1569 = vmatprep.subr.bf16.mxu0 0
    %1570 = vmatpush1.bf16.msra.mxu0 0
    %1571 = vmatprep.subr.bf16.mxu0 0
    %1572 = vmatpush1.bf16.msra.mxu0 0
    %1573 = vmatprep.subr.bf16.mxu0 0
    %1574 = vmatpush1.bf16.msra.mxu0 0
    %1575 = vmatprep.subr.bf16.mxu0 0
    %1576 = vmatpush1.bf16.msra.mxu0 0
    %1577 = vmatprep.subr.bf16.mxu0 0
    %1578 = vmatpush1.bf16.msra.mxu0 0
    %1579 = vmatprep.subr.bf16.mxu0 0
    %1580 = vmatpush1.bf16.msra.mxu0 0
    %1581 = vmatprep.subr.bf16.mxu0 0
    %1582 = vmatpush1.bf16.msra.mxu0 0
    %1583 = vmatprep.subr.bf16.mxu0 0
    %1584 = vmatpush1.bf16.msra.mxu0 0
    %1585 = vmatprep.subr.bf16.mxu0 0
    %1586 = vmatpush1.bf16.msra.mxu0 0
    %1587 = vmatprep.mubr.bf16.mxu0 0
    %1588 = vmatmul.mubr.bf16.gmra.mrb[0].mxu0 %v1550
    %v1589 = vpop.f32.mrb[0].mxu0
    %v1590 = vadd.f32 0.0, %v1589
    %v1591 = vpop.f32.mrb[0].mxu0
    %v1592 = vpop.f32.mrb[0].mxu0
    %v1593 = vadd.f32 0.0, %v1592
    %v1594 = vpop.f32.mrb[0].mxu0
    %1595 = vmatprep.mubr.bf16.mxu0 0
    %1596 = vmatmul.mubr.bf16.gmra.mrb[0].mxu0 %v1553
    %v1597 = vpop.f32.mrb[0].mxu0
    %v1598 = vadd.f32 0.0, %v1597
    %v1599 = vpop.f32.mrb[0].mxu0
    %v1600 = vpop.f32.mrb[0].mxu0
    %v1601 = vadd.f32 0.0, %v1600
    %v1602 = vpop.f32.mrb[0].mxu0
    %1603 = vdwg.mxu0
    %v1604 = vmul.f32 %v1590, %v660
    %v1605 = vmul.f32 %v1593, %v660
    %v1606 = vmul.f32 %v1598, %v660
    %v1607 = vmul.f32 %v1601, %v660
    %v1608 = vadd.f32 %v1604, %v670
    %v1609 = vadd.f32 %v1605, %v670
    %v1610 = vadd.f32 %v1606, %v670
    %v1611 = vadd.f32 %v1607, %v670
    %v1612 = vmax.f32 %v1608, 0.0
    %v1613 = vmax.f32 %v1609, 0.0
    %v1614 = vmax.f32 %v1610, 0.0
    %v1615 = vmax.f32 %v1611, 0.0
    %v1616 = vmax.f32 %v1381, %v1612
    %v1617 = vmax.f32 %v1382, %v1613
    %v1618 = vmax.f32 %v1383, %v1614
    %v1619 = vmax.f32 %v1384, %v1615
    %1620 = vset.pattern.permute.xlu0 5
    %1621 = vperm.xlu0 %1620, %v382
    %v1622 = vpop.permute.xlu0 %1621
    %1623 = vset.pattern.permute.xlu0 5
    %1624 = vperm.xlu0 %1623, %v383
    %v1625 = vpop.permute.xlu0 %1624
    %1626 = vset.pattern.permute.xlu0 5
    %1627 = vperm.xlu0 %1626, %v384
    %v1628 = vpop.permute.xlu0 %1627
    %1629 = vset.pattern.permute.xlu0 5
    %1630 = vperm.xlu0 %1629, %v385
    %v1631 = vpop.permute.xlu0 %1630
    %vm1632 = vcmp.eq.s32.totalorder %v387, %v1622
    %vm1633 = vcmp.eq.s32.totalorder %v387, %v1625
    %vm1634 = vcmp.eq.s32.totalorder %v387, %v1628
    %vm1635 = vcmp.eq.s32.totalorder %v387, %v1631
    %v1636 = vsel %vm1632, 1, 0
    %v1637 = vsel %vm1633, 1, 0
    %v1638 = vsel %vm1634, 1, 0
    %v1639 = vsel %vm1635, 1, 0
    %v1640 = vcvt.s32.f32 %v1636
    %v1641 = vcvt.s32.f32 %v1637
    %v1642 = vcvt.s32.f32 %v1638
    %v1643 = vcvt.s32.f32 %v1639
    %v1644 = vpack.c.bf16 %v1641, %v1640
    %v1645 = vpack.c.bf16 %v1643, %v1642
    %v1647 = vsel %vm414, %v1644, 0
    %v1650 = vsel %vm414, %v1645, 0
    %1652 = vmatprep.subr.bf16.mxu0 0
    %1653 = vmatpush1.bf16.msra.mxu0 %v366
    %1654 = vmatprep.subr.bf16.mxu0 0
    %1655 = vmatpush1.bf16.msra.mxu0 %v367
    %1656 = vmatprep.subr.bf16.mxu0 0
    %1657 = vmatpush1.bf16.msra.mxu0 0
    %1658 = vmatprep.subr.bf16.mxu0 0
    %1659 = vmatpush1.bf16.msra.mxu0 0
    %1660 = vmatprep.subr.bf16.mxu0 0
    %1661 = vmatpush1.bf16.msra.mxu0 0
    %1662 = vmatprep.subr.bf16.mxu0 0
    %1663 = vmatpush1.bf16.msra.mxu0 0
    %1664 = vmatprep.subr.bf16.mxu0 0
    %1665 = vmatpush1.bf16.msra.mxu0 0
    %1666 = vmatprep.subr.bf16.mxu0 0
    %1667 = vmatpush1.bf16.msra.mxu0 0
    %1668 = vmatprep.subr.bf16.mxu0 0
    %1669 = vmatpush1.bf16.msra.mxu0 0
    %1670 = vmatprep.subr.bf16.mxu0 0
    %1671 = vmatpush1.bf16.msra.mxu0 0
    %1672 = vmatprep.subr.bf16.mxu0 0
    %1673 = vmatpush1.bf16.msra.mxu0 0
    %1674 = vmatprep.subr.bf16.mxu0 0
    %1675 = vmatpush1.bf16.msra.mxu0 0
    %1676 = vmatprep.subr.bf16.mxu0 0
    %1677 = vmatpush1.bf16.msra.mxu0 0
    %1678 = vmatprep.subr.bf16.mxu0 0
    %1679 = vmatpush1.bf16.msra.mxu0 0
    %1680 = vmatprep.subr.bf16.mxu0 0
    %1681 = vmatpush1.bf16.msra.mxu0 0
    %1682 = vmatprep.subr.bf16.mxu0 0
    %1683 = vmatpush1.bf16.msra.mxu0 0
    %1684 = vmatprep.mubr.bf16.mxu0 0
    %1685 = vmatmul.mubr.bf16.gmra.mrb[0].mxu0 %v1647
    %v1686 = vpop.f32.mrb[0].mxu0
    %v1687 = vadd.f32 %v295, %v1686
    %v1688 = vpop.f32.mrb[0].mxu0
    %v1689 = vpop.f32.mrb[0].mxu0
    %v1690 = vadd.f32 %v298, %v1689
    %v1691 = vpop.f32.mrb[0].mxu0
    %1692 = vmatprep.mubr.bf16.mxu0 0
    %1693 = vmatmul.mubr.bf16.gmra.mrb[0].mxu0 %v1650
    %v1694 = vpop.f32.mrb[0].mxu0
    %v1695 = vadd.f32 %v303, %v1694
    %v1696 = vpop.f32.mrb[0].mxu0
    %v1697 = vpop.f32.mrb[0].mxu0
    %v1698 = vadd.f32 %v306, %v1697
    %v1699 = vpop.f32.mrb[0].mxu0
    %1700 = vdwg.mxu0
    %v1701 = vmul.f32 %v1687, %v474
    %v1702 = vmul.f32 %v1690, %v474
    %v1703 = vmul.f32 %v1695, %v474
    %v1704 = vmul.f32 %v1698, %v474
    %v1705 = vadd.f32 %v1701, %v484
    %v1706 = vadd.f32 %v1702, %v484
    %v1707 = vadd.f32 %v1703, %v484
    %v1708 = vadd.f32 %v1704, %v484
    %v1709 = vmax.f32 %v1705, 0.0
    %v1710 = vmax.f32 %v1706, 0.0
    %v1711 = vmax.f32 %v1707, 0.0
    %v1712 = vmax.f32 %v1708, 0.0
    %v1713 = vpack.c.bf16 %v1710, %v1709
    %v1714 = vpack.c.bf16 %v1712, %v1711
    %v1716 = vsel %vm414, %v1713, 0
    %v1719 = vsel %vm414, %v1714, 0
    %1721 = vmatprep.subr.bf16.mxu0 0
    %1722 = vmatpush1.bf16.msra.mxu0 %v504
    %1723 = vmatprep.subr.bf16.mxu0 0
    %1724 = vmatpush1.bf16.msra.mxu0 %v505
    %1725 = vmatprep.subr.bf16.mxu0 0
    %1726 = vmatpush1.bf16.msra.mxu0 0
    %1727 = vmatprep.subr.bf16.mxu0 0
    %1728 = vmatpush1.bf16.msra.mxu0 0
    %1729 = vmatprep.subr.bf16.mxu0 0
    %1730 = vmatpush1.bf16.msra.mxu0 0
    %1731 = vmatprep.subr.bf16.mxu0 0
    %1732 = vmatpush1.bf16.msra.mxu0 0
    %1733 = vmatprep.subr.bf16.mxu0 0
    %1734 = vmatpush1.bf16.msra.mxu0 0
    %1735 = vmatprep.subr.bf16.mxu0 0
    %1736 = vmatpush1.bf16.msra.mxu0 0
    %1737 = vmatprep.subr.bf16.mxu0 0
    %1738 = vmatpush1.bf16.msra.mxu0 0
    %1739 = vmatprep.subr.bf16.mxu0 0
    %1740 = vmatpush1.bf16.msra.mxu0 0
    %1741 = vmatprep.subr.bf16.mxu0 0
    %1742 = vmatpush1.bf16.msra.mxu0 0
    %1743 = vmatprep.subr.bf16.mxu0 0
    %1744 = vmatpush1.bf16.msra.mxu0 0
    %1745 = vmatprep.subr.bf16.mxu0 0
    %1746 = vmatpush1.bf16.msra.mxu0 0
    %1747 = vmatprep.subr.bf16.mxu0 0
    %1748 = vmatpush1.bf16.msra.mxu0 0
    %1749 = vmatprep.subr.bf16.mxu0 0
    %1750 = vmatpush1.bf16.msra.mxu0 0
    %1751 = vmatprep.subr.bf16.mxu0 0
    %1752 = vmatpush1.bf16.msra.mxu0 0
    %1753 = vmatprep.mubr.bf16.mxu0 0
    %1754 = vmatmul.mubr.bf16.gmra.mrb[0].mxu0 %v1716
    %v1755 = vpop.f32.mrb[0].mxu0
    %v1756 = vadd.f32 0.0, %v1755
    %v1757 = vpop.f32.mrb[0].mxu0
    %v1758 = vpop.f32.mrb[0].mxu0
    %v1759 = vadd.f32 0.0, %v1758
    %v1760 = vpop.f32.mrb[0].mxu0
    %1761 = vmatprep.mubr.bf16.mxu0 0
    %1762 = vmatmul.mubr.bf16.gmra.mrb[0].mxu0 %v1719
    %v1763 = vpop.f32.mrb[0].mxu0
    %v1764 = vadd.f32 0.0, %v1763
    %v1765 = vpop.f32.mrb[0].mxu0
    %v1766 = vpop.f32.mrb[0].mxu0
    %v1767 = vadd.f32 0.0, %v1766
    %v1768 = vpop.f32.mrb[0].mxu0
    %1769 = vdwg.mxu0
    %v1770 = vmul.f32 %v1756, %v567
    %v1771 = vmul.f32 %v1759, %v567
    %v1772 = vmul.f32 %v1764, %v567
    %v1773 = vmul.f32 %v1767, %v567
    %v1774 = vadd.f32 %v1770, %v577
    %v1775 = vadd.f32 %v1771, %v577
    %v1776 = vadd.f32 %v1772, %v577
    %v1777 = vadd.f32 %v1773, %v577
    %v1778 = vmax.f32 %v1774, 0.0
    %v1779 = vmax.f32 %v1775, 0.0
    %v1780 = vmax.f32 %v1776, 0.0
    %v1781 = vmax.f32 %v1777, 0.0
    %v1782 = vpack.c.bf16 %v1779, %v1778
    %v1783 = vpack.c.bf16 %v1781, %v1780
    %v1785 = vsel %vm414, %v1782, 0
    %v1788 = vsel %vm414, %v1783, 0
    %1790 = vmatprep.subr.bf16.mxu0 0
    %1791 = vmatpush1.bf16.msra.mxu0 %v597
    %1792 = vmatprep.subr.bf16.mxu0 0
    %1793 = vmatpush1.bf16.msra.mxu0 %v598
    %1794 = vmatprep.subr.bf16.mxu0 0
    %1795 = vmatpush1.bf16.msra.mxu0 0
    %1796 = vmatprep.subr.bf16.mxu0 0
    %1797 = vmatpush1.bf16.msra.mxu0 0
    %1798 = vmatprep.subr.bf16.mxu0 0
    %1799 = vmatpush1.bf16.msra.mxu0 0
    %1800 = vmatprep.subr.bf16.mxu0 0
    %1801 = vmatpush1.bf16.msra.mxu0 0
    %1802 = vmatprep.subr.bf16.mxu0 0
    %1803 = vmatpush1.bf16.msra.mxu0 0
    %1804 = vmatprep.subr.bf16.mxu0 0
    %1805 = vmatpush1.bf16.msra.mxu0 0
    %1806 = vmatprep.subr.bf16.mxu0 0
    %1807 = vmatpush1.bf16.msra.mxu0 0
    %1808 = vmatprep.subr.bf16.mxu0 0
    %1809 = vmatpush1.bf16.msra.mxu0 0
    %1810 = vmatprep.subr.bf16.mxu0 0
    %1811 = vmatpush1.bf16.msra.mxu0 0
    %1812 = vmatprep.subr.bf16.mxu0 0
    %1813 = vmatpush1.bf16.msra.mxu0 0
    %1814 = vmatprep.subr.bf16.mxu0 0
    %1815 = vmatpush1.bf16.msra.mxu0 0
    %1816 = vmatprep.subr.bf16.mxu0 0
    %1817 = vmatpush1.bf16.msra.mxu0 0
    %1818 = vmatprep.subr.bf16.mxu0 0
    %1819 = vmatpush1.bf16.msra.mxu0 0
    %1820 = vmatprep.subr.bf16.mxu0 0
    %1821 = vmatpush1.bf16.msra.mxu0 0
    %1822 = vmatprep.mubr.bf16.mxu0 0
    %1823 = vmatmul.mubr.bf16.gmra.mrb[0].mxu0 %v1785
    %v1824 = vpop.f32.mrb[0].mxu0
    %v1825 = vadd.f32 0.0, %v1824
    %v1826 = vpop.f32.mrb[0].mxu0
    %v1827 = vpop.f32.mrb[0].mxu0
    %v1828 = vadd.f32 0.0, %v1827
    %v1829 = vpop.f32.mrb[0].mxu0
    %1830 = vmatprep.mubr.bf16.mxu0 0
    %1831 = vmatmul.mubr.bf16.gmra.mrb[0].mxu0 %v1788
    %v1832 = vpop.f32.mrb[0].mxu0
    %v1833 = vadd.f32 0.0, %v1832
    %v1834 = vpop.f32.mrb[0].mxu0
    %v1835 = vpop.f32.mrb[0].mxu0
    %v1836 = vadd.f32 0.0, %v1835
    %v1837 = vpop.f32.mrb[0].mxu0
    %1838 = vdwg.mxu0
    %v1839 = vmul.f32 %v1825, %v660
    %v1840 = vmul.f32 %v1828, %v660
    %v1841 = vmul.f32 %v1833, %v660
    %v1842 = vmul.f32 %v1836, %v660
    %v1843 = vadd.f32 %v1839, %v670
    %v1844 = vadd.f32 %v1840, %v670
    %v1845 = vadd.f32 %v1841, %v670
    %v1846 = vadd.f32 %v1842, %v670
    %v1847 = vmax.f32 %v1843, 0.0
    %v1848 = vmax.f32 %v1844, 0.0
    %v1849 = vmax.f32 %v1845, 0.0
    %v1850 = vmax.f32 %v1846, 0.0
    %v1851 = vmax.f32 %v1616, %v1847
    %v1852 = vmax.f32 %v1617, %v1848
    %v1853 = vmax.f32 %v1618, %v1849
    %v1854 = vmax.f32 %v1619, %v1850
    %1855 = vset.pattern.permute.xlu0 6
    %1856 = vperm.xlu0 %1855, %v382
    %v1857 = vpop.permute.xlu0 %1856
    %1858 = vset.pattern.permute.xlu0 6
    %1859 = vperm.xlu0 %1858, %v383
    %v1860 = vpop.permute.xlu0 %1859
    %1861 = vset.pattern.permute.xlu0 6
    %1862 = vperm.xlu0 %1861, %v384
    %v1863 = vpop.permute.xlu0 %1862
    %1864 = vset.pattern.permute.xlu0 6
    %1865 = vperm.xlu0 %1864, %v385
    %v1866 = vpop.permute.xlu0 %1865
    %vm1867 = vcmp.eq.s32.totalorder %v387, %v1857
    %vm1868 = vcmp.eq.s32.totalorder %v387, %v1860
    %vm1869 = vcmp.eq.s32.totalorder %v387, %v1863
    %vm1870 = vcmp.eq.s32.totalorder %v387, %v1866
    %v1871 = vsel %vm1867, 1, 0
    %v1872 = vsel %vm1868, 1, 0
    %v1873 = vsel %vm1869, 1, 0
    %v1874 = vsel %vm1870, 1, 0
    %v1875 = vcvt.s32.f32 %v1871
    %v1876 = vcvt.s32.f32 %v1872
    %v1877 = vcvt.s32.f32 %v1873
    %v1878 = vcvt.s32.f32 %v1874
    %v1879 = vpack.c.bf16 %v1876, %v1875
    %v1880 = vpack.c.bf16 %v1878, %v1877
    %v1882 = vsel %vm414, %v1879, 0
    %v1885 = vsel %vm414, %v1880, 0
    %1887 = vmatprep.subr.bf16.mxu0 0
    %1888 = vmatpush1.bf16.msra.mxu0 %v366
    %1889 = vmatprep.subr.bf16.mxu0 0
    %1890 = vmatpush1.bf16.msra.mxu0 %v367
    %1891 = vmatprep.subr.bf16.mxu0 0
    %1892 = vmatpush1.bf16.msra.mxu0 0
    %1893 = vmatprep.subr.bf16.mxu0 0
    %1894 = vmatpush1.bf16.msra.mxu0 0
    %1895 = vmatprep.subr.bf16.mxu0 0
    %1896 = vmatpush1.bf16.msra.mxu0 0
    %1897 = vmatprep.subr.bf16.mxu0 0
    %1898 = vmatpush1.bf16.msra.mxu0 0
    %1899 = vmatprep.subr.bf16.mxu0 0
    %1900 = vmatpush1.bf16.msra.mxu0 0
    %1901 = vmatprep.subr.bf16.mxu0 0
    %1902 = vmatpush1.bf16.msra.mxu0 0
    %1903 = vmatprep.subr.bf16.mxu0 0
    %1904 = vmatpush1.bf16.msra.mxu0 0
    %1905 = vmatprep.subr.bf16.mxu0 0
    %1906 = vmatpush1.bf16.msra.mxu0 0
    %1907 = vmatprep.subr.bf16.mxu0 0
    %1908 = vmatpush1.bf16.msra.mxu0 0
    %1909 = vmatprep.subr.bf16.mxu0 0
    %1910 = vmatpush1.bf16.msra.mxu0 0
    %1911 = vmatprep.subr.bf16.mxu0 0
    %1912 = vmatpush1.bf16.msra.mxu0 0
    %1913 = vmatprep.subr.bf16.mxu0 0
    %1914 = vmatpush1.bf16.msra.mxu0 0
    %1915 = vmatprep.subr.bf16.mxu0 0
    %1916 = vmatpush1.bf16.msra.mxu0 0
    %1917 = vmatprep.subr.bf16.mxu0 0
    %1918 = vmatpush1.bf16.msra.mxu0 0
    %1919 = vmatprep.mubr.bf16.mxu0 0
    %1920 = vmatmul.mubr.bf16.gmra.mrb[0].mxu0 %v1882
    %v1921 = vpop.f32.mrb[0].mxu0
    %v1922 = vadd.f32 %v295, %v1921
    %v1923 = vpop.f32.mrb[0].mxu0
    %v1924 = vpop.f32.mrb[0].mxu0
    %v1925 = vadd.f32 %v298, %v1924
    %v1926 = vpop.f32.mrb[0].mxu0
    %1927 = vmatprep.mubr.bf16.mxu0 0
    %1928 = vmatmul.mubr.bf16.gmra.mrb[0].mxu0 %v1885
    %v1929 = vpop.f32.mrb[0].mxu0
    %v1930 = vadd.f32 %v303, %v1929
    %v1931 = vpop.f32.mrb[0].mxu0
    %v1932 = vpop.f32.mrb[0].mxu0
    %v1933 = vadd.f32 %v306, %v1932
    %v1934 = vpop.f32.mrb[0].mxu0
    %1935 = vdwg.mxu0
    %v1936 = vmul.f32 %v1922, %v474
    %v1937 = vmul.f32 %v1925, %v474
    %v1938 = vmul.f32 %v1930, %v474
    %v1939 = vmul.f32 %v1933, %v474
    %v1940 = vadd.f32 %v1936, %v484
    %v1941 = vadd.f32 %v1937, %v484
    %v1942 = vadd.f32 %v1938, %v484
    %v1943 = vadd.f32 %v1939, %v484
    %v1944 = vmax.f32 %v1940, 0.0
    %v1945 = vmax.f32 %v1941, 0.0
    %v1946 = vmax.f32 %v1942, 0.0
    %v1947 = vmax.f32 %v1943, 0.0
    %v1948 = vpack.c.bf16 %v1945, %v1944
    %v1949 = vpack.c.bf16 %v1947, %v1946
    %v1951 = vsel %vm414, %v1948, 0
    %v1954 = vsel %vm414, %v1949, 0
    %1956 = vmatprep.subr.bf16.mxu0 0
    %1957 = vmatpush1.bf16.msra.mxu0 %v504
    %1958 = vmatprep.subr.bf16.mxu0 0
    %1959 = vmatpush1.bf16.msra.mxu0 %v505
    %1960 = vmatprep.subr.bf16.mxu0 0
    %1961 = vmatpush1.bf16.msra.mxu0 0
    %1962 = vmatprep.subr.bf16.mxu0 0
    %1963 = vmatpush1.bf16.msra.mxu0 0
    %1964 = vmatprep.subr.bf16.mxu0 0
    %1965 = vmatpush1.bf16.msra.mxu0 0
    %1966 = vmatprep.subr.bf16.mxu0 0
    %1967 = vmatpush1.bf16.msra.mxu0 0
    %1968 = vmatprep.subr.bf16.mxu0 0
    %1969 = vmatpush1.bf16.msra.mxu0 0
    %1970 = vmatprep.subr.bf16.mxu0 0
    %1971 = vmatpush1.bf16.msra.mxu0 0
    %1972 = vmatprep.subr.bf16.mxu0 0
    %1973 = vmatpush1.bf16.msra.mxu0 0
    %1974 = vmatprep.subr.bf16.mxu0 0
    %1975 = vmatpush1.bf16.msra.mxu0 0
    %1976 = vmatprep.subr.bf16.mxu0 0
    %1977 = vmatpush1.bf16.msra.mxu0 0
    %1978 = vmatprep.subr.bf16.mxu0 0
    %1979 = vmatpush1.bf16.msra.mxu0 0
    %1980 = vmatprep.subr.bf16.mxu0 0
    %1981 = vmatpush1.bf16.msra.mxu0 0
    %1982 = vmatprep.subr.bf16.mxu0 0
    %1983 = vmatpush1.bf16.msra.mxu0 0
    %1984 = vmatprep.subr.bf16.mxu0 0
    %1985 = vmatpush1.bf16.msra.mxu0 0
    %1986 = vmatprep.subr.bf16.mxu0 0
    %1987 = vmatpush1.bf16.msra.mxu0 0
    %1988 = vmatprep.mubr.bf16.mxu0 0
    %1989 = vmatmul.mubr.bf16.gmra.mrb[0].mxu0 %v1951
    %v1990 = vpop.f32.mrb[0].mxu0
    %v1991 = vadd.f32 0.0, %v1990
    %v1992 = vpop.f32.mrb[0].mxu0
    %v1993 = vpop.f32.mrb[0].mxu0
    %v1994 = vadd.f32 0.0, %v1993
    %v1995 = vpop.f32.mrb[0].mxu0
    %1996 = vmatprep.mubr.bf16.mxu0 0
    %1997 = vmatmul.mubr.bf16.gmra.mrb[0].mxu0 %v1954
    %v1998 = vpop.f32.mrb[0].mxu0
    %v1999 = vadd.f32 0.0, %v1998
    %v2000 = vpop.f32.mrb[0].mxu0
    %v2001 = vpop.f32.mrb[0].mxu0
    %v2002 = vadd.f32 0.0, %v2001
    %v2003 = vpop.f32.mrb[0].mxu0
    %2004 = vdwg.mxu0
    %v2005 = vmul.f32 %v1991, %v567
    %v2006 = vmul.f32 %v1994, %v567
    %v2007 = vmul.f32 %v1999, %v567
    %v2008 = vmul.f32 %v2002, %v567
    %v2009 = vadd.f32 %v2005, %v577
    %v2010 = vadd.f32 %v2006, %v577
    %v2011 = vadd.f32 %v2007, %v577
    %v2012 = vadd.f32 %v2008, %v577
    %v2013 = vmax.f32 %v2009, 0.0
    %v2014 = vmax.f32 %v2010, 0.0
    %v2015 = vmax.f32 %v2011, 0.0
    %v2016 = vmax.f32 %v2012, 0.0
    %v2017 = vpack.c.bf16 %v2014, %v2013
    %v2018 = vpack.c.bf16 %v2016, %v2015
    %v2020 = vsel %vm414, %v2017, 0
    %v2023 = vsel %vm414, %v2018, 0
    %2025 = vmatprep.subr.bf16.mxu0 0
    %2026 = vmatpush1.bf16.msra.mxu0 %v597
    %2027 = vmatprep.subr.bf16.mxu0 0
    %2028 = vmatpush1.bf16.msra.mxu0 %v598
    %2029 = vmatprep.subr.bf16.mxu0 0
    %2030 = vmatpush1.bf16.msra.mxu0 0
    %2031 = vmatprep.subr.bf16.mxu0 0
    %2032 = vmatpush1.bf16.msra.mxu0 0
    %2033 = vmatprep.subr.bf16.mxu0 0
    %2034 = vmatpush1.bf16.msra.mxu0 0
    %2035 = vmatprep.subr.bf16.mxu0 0
    %2036 = vmatpush1.bf16.msra.mxu0 0
    %2037 = vmatprep.subr.bf16.mxu0 0
    %2038 = vmatpush1.bf16.msra.mxu0 0
    %2039 = vmatprep.subr.bf16.mxu0 0
    %2040 = vmatpush1.bf16.msra.mxu0 0
    %2041 = vmatprep.subr.bf16.mxu0 0
    %2042 = vmatpush1.bf16.msra.mxu0 0
    %2043 = vmatprep.subr.bf16.mxu0 0
    %2044 = vmatpush1.bf16.msra.mxu0 0
    %2045 = vmatprep.subr.bf16.mxu0 0
    %2046 = vmatpush1.bf16.msra.mxu0 0
    %2047 = vmatprep.subr.bf16.mxu0 0
    %2048 = vmatpush1.bf16.msra.mxu0 0
    %2049 = vmatprep.subr.bf16.mxu0 0
    %2050 = vmatpush1.bf16.msra.mxu0 0
    %2051 = vmatprep.subr.bf16.mxu0 0
    %2052 = vmatpush1.bf16.msra.mxu0 0
    %2053 = vmatprep.subr.bf16.mxu0 0
    %2054 = vmatpush1.bf16.msra.mxu0 0
    %2055 = vmatprep.subr.bf16.mxu0 0
    %2056 = vmatpush1.bf16.msra.mxu0 0
    %2057 = vmatprep.mubr.bf16.mxu0 0
    %2058 = vmatmul.mubr.bf16.gmra.mrb[0].mxu0 %v2020
    %v2059 = vpop.f32.mrb[0].mxu0
    %v2060 = vadd.f32 0.0, %v2059
    %v2061 = vpop.f32.mrb[0].mxu0
    %v2062 = vpop.f32.mrb[0].mxu0
    %v2063 = vadd.f32 0.0, %v2062
    %v2064 = vpop.f32.mrb[0].mxu0
    %2065 = vmatprep.mubr.bf16.mxu0 0
    %2066 = vmatmul.mubr.bf16.gmra.mrb[0].mxu0 %v2023
    %v2067 = vpop.f32.mrb[0].mxu0
    %v2068 = vadd.f32 0.0, %v2067
    %v2069 = vpop.f32.mrb[0].mxu0
    %v2070 = vpop.f32.mrb[0].mxu0
    %v2071 = vadd.f32 0.0, %v2070
    %v2072 = vpop.f32.mrb[0].mxu0
    %2073 = vdwg.mxu0
    %v2074 = vmul.f32 %v2060, %v660
    %v2075 = vmul.f32 %v2063, %v660
    %v2076 = vmul.f32 %v2068, %v660
    %v2077 = vmul.f32 %v2071, %v660
    %v2078 = vadd.f32 %v2074, %v670
    %v2079 = vadd.f32 %v2075, %v670
    %v2080 = vadd.f32 %v2076, %v670
    %v2081 = vadd.f32 %v2077, %v670
    %v2082 = vmax.f32 %v2078, 0.0
    %v2083 = vmax.f32 %v2079, 0.0
    %v2084 = vmax.f32 %v2080, 0.0
    %v2085 = vmax.f32 %v2081, 0.0
    %v2086 = vmax.f32 %v1851, %v2082
    %v2087 = vmax.f32 %v1852, %v2083
    %v2088 = vmax.f32 %v1853, %v2084
    %v2089 = vmax.f32 %v1854, %v2085
    %v2090 = vld [vmem:[#allocation22] sm:$0xf]
    %v2091 = vld [vmem:[#allocation22 + $0x4] sm:$0xf]
    %v2094 = vunpack.c.l.b16 %v2090
    %v2095 = vunpack.c.l.b16 %v2091
    %v2096 = vpack.c.b16 %v2095, %v2094
    %2098 = vmatprep.subr.bf16.mxu0 0
    %2099 = vmatpush1.bf16.msra.mxu0 %v2096
    %2100 = vmatprep.subr.bf16.mxu0 0
    %2101 = vmatpush1.bf16.msra.mxu0 0
    %2102 = vmatprep.subr.bf16.mxu0 0
    %2103 = vmatpush1.bf16.msra.mxu0 0
    %2104 = vmatprep.subr.bf16.mxu0 0
    %2105 = vmatpush1.bf16.msra.mxu0 0
    %2106 = vmatprep.subr.bf16.mxu0 0
    %2107 = vmatpush1.bf16.msra.mxu0 0
    %2108 = vmatprep.subr.bf16.mxu0 0
    %2109 = vmatpush1.bf16.msra.mxu0 0
    %2110 = vmatprep.subr.bf16.mxu0 0
    %2111 = vmatpush1.bf16.msra.mxu0 0
    %2112 = vmatprep.subr.bf16.mxu0 0
    %2113 = vmatpush1.bf16.msra.mxu0 0
    %2114 = vmatprep.subr.bf16.mxu0 0
    %2115 = vmatpush1.bf16.msra.mxu0 0
    %2116 = vmatprep.subr.bf16.mxu0 0
    %2117 = vmatpush1.bf16.msra.mxu0 0
    %2118 = vmatprep.subr.bf16.mxu0 0
    %2119 = vmatpush1.bf16.msra.mxu0 0
    %2120 = vmatprep.subr.bf16.mxu0 0
    %2121 = vmatpush1.bf16.msra.mxu0 0
    %2122 = vmatprep.subr.bf16.mxu0 0
    %2123 = vmatpush1.bf16.msra.mxu0 0
    %2124 = vmatprep.subr.bf16.mxu0 0
    %2125 = vmatpush1.bf16.msra.mxu0 0
    %2126 = vmatprep.subr.bf16.mxu0 0
    %2127 = vmatpush1.bf16.msra.mxu0 0
    %2128 = vmatprep.subr.bf16.mxu0 0
    %2129 = vmatpush1.bf16.msra.mxu0 0
    %2130 = vmatprep.mubr.bf16.mxu0 0
    %2131 = vmatmul.mubr.bf16.gmra.mrb[0].mxu0 %v255
    %v2132 = vpop.f32.mrb[0].mxu0
    %v2133 = vadd.f32 0.0, %v2132
    %v2134 = vpop.f32.mrb[0].mxu0
    %v2135 = vpop.f32.mrb[0].mxu0
    %v2136 = vadd.f32 0.0, %v2135
    %v2137 = vpop.f32.mrb[0].mxu0
    %2138 = vmatprep.mubr.bf16.mxu0 0
    %2139 = vmatmul.mubr.bf16.gmra.mrb[0].mxu0 %v258
    %v2140 = vpop.f32.mrb[0].mxu0
    %v2141 = vadd.f32 0.0, %v2140
    %v2142 = vpop.f32.mrb[0].mxu0
    %v2143 = vpop.f32.mrb[0].mxu0
    %v2144 = vadd.f32 0.0, %v2143
    %v2145 = vpop.f32.mrb[0].mxu0
    %2146 = vdwg.mxu0
    %v2147 = vld [vmem:[#allocation23] sm:$0x1]
    %v2149 = vlaneseq
    %v2150 = vshrl.u32 %v2149, 7
    %v2151 = vsub.s32 0, %v2150
    %v2152 = vrot.slane %v2147, %v2151
    %v2154 = vmul.f32 %v2133, %v2152
    %v2155 = vmul.f32 %v2136, %v2152
    %v2156 = vmul.f32 %v2141, %v2152
    %v2157 = vmul.f32 %v2144, %v2152
    %v2158 = vld [vmem:[#allocation25] sm:$0x1]
    %v2160 = vlaneseq
    %v2161 = vshrl.u32 %v2160, 7
    %v2162 = vsub.s32 0, %v2161
    %v2163 = vrot.slane %v2158, %v2162
    %v2165 = vadd.f32 %v2154, %v2163
    %v2166 = vadd.f32 %v2155, %v2163
    %v2167 = vadd.f32 %v2156, %v2163
    %v2168 = vadd.f32 %v2157, %v2163
    %v2169 = vadd.f32 %v2086, %v2165
    %v2170 = vadd.f32 %v2087, %v2166
    %v2171 = vadd.f32 %v2088, %v2167
    %v2172 = vadd.f32 %v2089, %v2168
    %v2173 = vmax.f32 %v2169, 0.0
    %v2174 = vmax.f32 %v2170, 0.0
    %v2175 = vmax.f32 %v2171, 0.0
    %v2176 = vmax.f32 %v2172, 0.0
    %2177 = vst.msk [vmem:[#allocation26] sm:$0xff] %vm414, %v2173
    %2178 = vst.msk [vmem:[#allocation26 + $0x8] sm:$0xff] %vm414, %v2174
    %2179 = vst.msk [vmem:[#allocation26 + $0x10] sm:$0xff] %vm414, %v2175
    %2180 = vst.msk [vmem:[#allocation26 + $0x18] sm:$0xff] %vm414, %v2176
    // Predicated region
    $region122: #{_lambda_.4} parent=1 // pred_check
      _
    $region123: #{_lambda_.4} parent=1 // pred_check_branch
      %2182 = sbr.rel (0) target = $region125
    $region124: #{_lambda_.4} parent=1 // pred_region
      %s2184 = ssub.s32 512, 512
      %2185 = vsyncadd [#allocation4], %s2184
      %s2186 = sshll.u32 [#allocation26], 4
      %s2187 = int_to_ptr.vmem [resolvable:$true] %s2186
      %2192 = dma.vmem_to_hbm [thread:$0]  %s2187, 512, %s15, [#allocation4], 128, 128, 8
    $region125: #{_lambda_.4} parent=1 // pred_fallthru
      _
    // Predicated region
    $region126: #{_lambda_.4} parent=1 // pred_check
      _
    $region127: #{_lambda_.4} parent=1 // pred_check_branch
      %2194 = sbr.rel (0) target = $region129
    $region128: #{_lambda_.4} parent=1 // pred_region
      %2195 = dma.done [#allocation4], 512
    $region129: #{_lambda_.4} parent=1 // pred_fallthru
      _
    %2196 = vsyncpa [#allocation3], 1
    %2197 = vsyncpa [#allocation6], 1
    %2198 = vsyncpa [#allocation9], 1
    %2199 = vsyncpa [#allocation12], 1
    %2200 = vsyncpa [#allocation15], 1
    %2201 = vsyncpa [#allocation18], 1
    %2202 = vsyncpa [#allocation21], 1
    %2203 = vsyncpa [#allocation24], 1
    %2204 = vsyncpa [#allocation4], 1

// kernel: _lambda_.3
$region0: #{_lambda_.3}
  #allocation0 [shape = 'u32[]', space=smem, size = 0x4, offset = 0x4, fixed_abs, tag = 'smem constant byte address 0x4 - core index']
  #allocation1 [shape = 'u32[144,128]{1,0:T(1,128)}', space=vmem, size = 0x12000, scoped, tag = 'internal scratch']
  %s0 = inlined_call_operand.hbm [shape: f32[32,4], index: 0, kind: input, shape index: {}]
  %s1 = inlined_call_operand.hbm [shape: s32[1,32,7], index: 1, kind: input, shape index: {}]
  %s2 = inlined_call_operand.hbm [shape: bf16[4,16], index: 2, kind: input, shape index: {}]
  %s3 = inlined_call_operand.hbm [shape: bf16[4,16], index: 3, kind: input, shape index: {}]
  %s4 = inlined_call_operand.hbm [shape: f32[1,16], index: 4, kind: input, shape index: {}]
  %s5 = inlined_call_operand.hbm [shape: f32[1,16], index: 5, kind: input, shape index: {}]
  %s6 = inlined_call_operand.hbm [shape: bf16[16,16], index: 6, kind: input, shape index: {}]
  %s7 = inlined_call_operand.hbm [shape: f32[1,16], index: 7, kind: input, shape index: {}]
  %s8 = inlined_call_operand.hbm [shape: f32[1,16], index: 8, kind: input, shape index: {}]
  %s9 = inlined_call_operand.hbm [shape: bf16[16,16], index: 9, kind: input, shape index: {}]
  %s10 = inlined_call_operand.hbm [shape: f32[1,16], index: 10, kind: input, shape index: {}]
  %s11 = inlined_call_operand.hbm [shape: f32[1,16], index: 11, kind: input, shape index: {}]
  %s12 = inlined_call_operand.hbm [shape: bf16[4,16], index: 12, kind: input, shape index: {}]
  %s13 = inlined_call_operand.hbm [shape: f32[1,16], index: 13, kind: input, shape index: {}]
  %s14 = inlined_call_operand.hbm [shape: f32[1,16], index: 14, kind: input, shape index: {}]
  %s15 = inlined_call_operand.hbm [shape: f32[32,16], index: 15, kind: output, shape index: {}]
  %s16 = sld [smem:[#allocation0]]
  $region130: #{_lambda_.3} parent=0
    _
  %s18 = ssub.s32 1, %s16
  %s19 = scalar_select 0, %s18, %s16
  $region1: #{_lambda_.3} parent=0
    #allocation2 [shape = 'u8[16384]{0}', space=vmem, size = 0x4000, scoped, tag = 'input window, operand 0, single buffered']
    #allocation3 [shape = 's32[1]{0}', space=sflag, size = 0x4, scoped, tag = 'scoped memory for _lambda_.3']
    #allocation4 [shape = 's32[1]{0}', space=sflag, size = 0x4, scoped, tag = 'scoped memory for _lambda_.3']
    #allocation5 [shape = 'u8[16384]{0}', space=vmem, size = 0x4000, scoped, tag = 'input window, operand 1, single buffered']
    #allocation6 [shape = 's32[1]{0}', space=sflag, size = 0x4, scoped, tag = 'scoped memory for _lambda_.3']
    #allocation7 [shape = 'u8[1024]{0}', space=vmem, size = 0x400, scoped, tag = 'input window, operand 2, single buffered']
    #allocation8 [shape = 'u8[1024]{0}', space=vmem, size = 0x400, scoped, tag = 'input window, operand 3, single buffered']
    #allocation9 [shape = 's32[1]{0}', space=sflag, size = 0x4, scoped, tag = 'scoped memory for _lambda_.3']
    #allocation10 [shape = 'u8[512]{0}', space=vmem, size = 0x400, scoped, tag = 'input window, operand 4, single buffered']
    #allocation11 [shape = 'u8[512]{0}', space=vmem, size = 0x400, scoped, tag = 'input window, operand 5, single buffered']
    #allocation12 [shape = 's32[1]{0}', space=sflag, size = 0x4, scoped, tag = 'scoped memory for _lambda_.3']
    #allocation13 [shape = 'u8[4096]{0}', space=vmem, size = 0x1000, scoped, tag = 'input window, operand 6, single buffered']
    #allocation14 [shape = 'u8[512]{0}', space=vmem, size = 0x400, scoped, tag = 'input window, operand 7, single buffered']
    #allocation15 [shape = 's32[1]{0}', space=sflag, size = 0x4, scoped, tag = 'scoped memory for _lambda_.3']
    #allocation16 [shape = 'u8[512]{0}', space=vmem, size = 0x400, scoped, tag = 'input window, operand 8, single buffered']
    #allocation17 [shape = 'u8[4096]{0}', space=vmem, size = 0x1000, scoped, tag = 'input window, operand 9, single buffered']
    #allocation18 [shape = 's32[1]{0}', space=sflag, size = 0x4, scoped, tag = 'scoped memory for _lambda_.3']
    #allocation19 [shape = 'u8[512]{0}', space=vmem, size = 0x400, scoped, tag = 'input window, operand 10, single buffered']
    #allocation20 [shape = 'u8[512]{0}', space=vmem, size = 0x400, scoped, tag = 'input window, operand 11, single buffered']
    #allocation21 [shape = 's32[1]{0}', space=sflag, size = 0x4, scoped, tag = 'scoped memory for _lambda_.3']
    #allocation22 [shape = 'u8[1024]{0}', space=vmem, size = 0x400, scoped, tag = 'input window, operand 12, single buffered']
    #allocation23 [shape = 'u8[512]{0}', space=vmem, size = 0x400, scoped, tag = 'input window, operand 13, single buffered']
    #allocation24 [shape = 's32[1]{0}', space=sflag, size = 0x4, scoped, tag = 'scoped memory for _lambda_.3']
    #allocation25 [shape = 'u8[512]{0}', space=vmem, size = 0x400, scoped, tag = 'input window, operand 14, single buffered']
    #allocation26 [shape = 'u8[16384]{0}', space=vmem, size = 0x4000, scoped, tag = 'output window, operand 0, single buffered']
    %20 = vsyncpa [#allocation3], 0
    %21 = vsyncpa [#allocation6], 0
    %22 = vsyncpa [#allocation9], 0
    %23 = vsyncpa [#allocation12], 0
    %24 = vsyncpa [#allocation15], 0
    %25 = vsyncpa [#allocation18], 0
    %26 = vsyncpa [#allocation21], 0
    %27 = vsyncpa [#allocation24], 0
    %28 = vsyncpa [#allocation4], 0
    // Predicated region
    $region2: #{_lambda_.3} parent=1 // pred_check
      _
    $region3: #{_lambda_.3} parent=1 // pred_check_branch
      %30 = sbr.rel (0) target = $region5
    $region4: #{_lambda_.3} parent=1 // pred_region
      %s32 = ssub.s32 512, 512
      %33 = vsyncadd [#allocation3], %s32
      %s34 = sshll.u32 [#allocation2], 4
      %s35 = int_to_ptr.vmem [resolvable:$true] %s34
      %40 = dma.hbm_to_vmem [thread:$0]  %s0, 512, %s35, [#allocation3], 128, 128, 8
    $region5: #{_lambda_.3} parent=1 // pred_fallthru
      _
    // Predicated region
    $region6: #{_lambda_.3} parent=1 // pred_check
      _
    $region7: #{_lambda_.3} parent=1 // pred_check_branch
      %42 = sbr.rel (0) target = $region9
    $region8: #{_lambda_.3} parent=1 // pred_region
      %s44 = ssub.s32 512, 512
      %45 = vsyncadd [#allocation6], %s44
      %s46 = sshll.u32 [#allocation5], 4
      %s47 = int_to_ptr.vmem [resolvable:$true] %s46
      %52 = dma.hbm_to_vmem [thread:$0]  %s1, 512, %s47, [#allocation6], 128, 128, 8
    $region9: #{_lambda_.3} parent=1 // pred_fallthru
      _
    // Predicated region
    $region10: #{_lambda_.3} parent=1 // pred_check
      _
    $region11: #{_lambda_.3} parent=1 // pred_check_branch
      %54 = sbr.rel (0) target = $region13
    $region12: #{_lambda_.3} parent=1 // pred_region
      %s56 = ssub.s32 32, 32
      %57 = vsyncadd [#allocation6], %s56
      %s59 = sshll.u32 [#allocation7], 4
      %s60 = int_to_ptr.vmem [resolvable:$true] %s59
      %62 = dma.hbm_to_vmem [thread:$0]  %s2, 32, %s60, [#allocation6]
    $region13: #{_lambda_.3} parent=1 // pred_fallthru
      _
    // Predicated region
    $region14: #{_lambda_.3} parent=1 // pred_check
      _
    $region15: #{_lambda_.3} parent=1 // pred_check_branch
      %64 = sbr.rel (0) target = $region17
    $region16: #{_lambda_.3} parent=1 // pred_region
      %s66 = ssub.s32 32, 32
      %67 = vsyncadd [#allocation9], %s66
      %s69 = sshll.u32 [#allocation8], 4
      %s70 = int_to_ptr.vmem [resolvable:$true] %s69
      %72 = dma.hbm_to_vmem [thread:$0]  %s3, 32, %s70, [#allocation9]
    $region17: #{_lambda_.3} parent=1 // pred_fallthru
      _
    // Predicated region
    $region18: #{_lambda_.3} parent=1 // pred_check
      _
    $region19: #{_lambda_.3} parent=1 // pred_check_branch
      %74 = sbr.rel (0) target = $region21
    $region20: #{_lambda_.3} parent=1 // pred_region
      %s76 = ssub.s32 16, 16
      %77 = vsyncadd [#allocation9], %s76
      %s79 = sshll.u32 [#allocation10], 4
      %s80 = int_to_ptr.vmem [resolvable:$true] %s79
      %82 = dma.hbm_to_vmem [thread:$0]  %s4, 16, %s80, [#allocation9]
    $region21: #{_lambda_.3} parent=1 // pred_fallthru
      _
    // Predicated region
    $region22: #{_lambda_.3} parent=1 // pred_check
      _
    $region23: #{_lambda_.3} parent=1 // pred_check_branch
      %84 = sbr.rel (0) target = $region25
    $region24: #{_lambda_.3} parent=1 // pred_region
      %s86 = ssub.s32 16, 16
      %87 = vsyncadd [#allocation12], %s86
      %s89 = sshll.u32 [#allocation11], 4
      %s90 = int_to_ptr.vmem [resolvable:$true] %s89
      %92 = dma.hbm_to_vmem [thread:$0]  %s5, 16, %s90, [#allocation12]
    $region25: #{_lambda_.3} parent=1 // pred_fallthru
      _
    // Predicated region
    $region26: #{_lambda_.3} parent=1 // pred_check
      _
    $region27: #{_lambda_.3} parent=1 // pred_check_branch
      %94 = sbr.rel (0) target = $region29
    $region28: #{_lambda_.3} parent=1 // pred_region
      %s96 = ssub.s32 128, 128
      %97 = vsyncadd [#allocation12], %s96
      %s98 = sshll.u32 [#allocation13], 4
      %s99 = int_to_ptr.vmem [resolvable:$true] %s98
      %104 = dma.hbm_to_vmem [thread:$0]  %s6, 128, %s99, [#allocation12], 64, 64, 4
    $region29: #{_lambda_.3} parent=1 // pred_fallthru
      _
    // Predicated region
    $region30: #{_lambda_.3} parent=1 // pred_check
      _
    $region31: #{_lambda_.3} parent=1 // pred_check_branch
      %106 = sbr.rel (0) target = $region33
    $region32: #{_lambda_.3} parent=1 // pred_region
      %s108 = ssub.s32 16, 16
      %109 = vsyncadd [#allocation15], %s108
      %s111 = sshll.u32 [#allocation14], 4
      %s112 = int_to_ptr.vmem [resolvable:$true] %s111
      %114 = dma.hbm_to_vmem [thread:$0]  %s7, 16, %s112, [#allocation15]
    $region33: #{_lambda_.3} parent=1 // pred_fallthru
      _
    // Predicated region
    $region34: #{_lambda_.3} parent=1 // pred_check
      _
    $region35: #{_lambda_.3} parent=1 // pred_check_branch
      %116 = sbr.rel (0) target = $region37
    $region36: #{_lambda_.3} parent=1 // pred_region
      %s118 = ssub.s32 16, 16
      %119 = vsyncadd [#allocation15], %s118
      %s121 = sshll.u32 [#allocation16], 4
      %s122 = int_to_ptr.vmem [resolvable:$true] %s121
      %124 = dma.hbm_to_vmem [thread:$0]  %s8, 16, %s122, [#allocation15]
    $region37: #{_lambda_.3} parent=1 // pred_fallthru
      _
    // Predicated region
    $region38: #{_lambda_.3} parent=1 // pred_check
      _
    $region39: #{_lambda_.3} parent=1 // pred_check_branch
      %126 = sbr.rel (0) target = $region41
    $region40: #{_lambda_.3} parent=1 // pred_region
      %s128 = ssub.s32 128, 128
      %129 = vsyncadd [#allocation18], %s128
      %s130 = sshll.u32 [#allocation17], 4
      %s131 = int_to_ptr.vmem [resolvable:$true] %s130
      %136 = dma.hbm_to_vmem [thread:$0]  %s9, 128, %s131, [#allocation18], 64, 64, 4
    $region41: #{_lambda_.3} parent=1 // pred_fallthru
      _
    // Predicated region
    $region42: #{_lambda_.3} parent=1 // pred_check
      _
    $region43: #{_lambda_.3} parent=1 // pred_check_branch
      %138 = sbr.rel (0) target = $region45
    $region44: #{_lambda_.3} parent=1 // pred_region
      %s140 = ssub.s32 16, 16
      %141 = vsyncadd [#allocation18], %s140
      %s143 = sshll.u32 [#allocation19], 4
      %s144 = int_to_ptr.vmem [resolvable:$true] %s143
      %146 = dma.hbm_to_vmem [thread:$0]  %s10, 16, %s144, [#allocation18]
    $region45: #{_lambda_.3} parent=1 // pred_fallthru
      _
    // Predicated region
    $region46: #{_lambda_.3} parent=1 // pred_check
      _
    $region47: #{_lambda_.3} parent=1 // pred_check_branch
      %148 = sbr.rel (0) target = $region49
    $region48: #{_lambda_.3} parent=1 // pred_region
      %s150 = ssub.s32 16, 16
      %151 = vsyncadd [#allocation21], %s150
      %s153 = sshll.u32 [#allocation20], 4
      %s154 = int_to_ptr.vmem [resolvable:$true] %s153
      %156 = dma.hbm_to_vmem [thread:$0]  %s11, 16, %s154, [#allocation21]
    $region49: #{_lambda_.3} parent=1 // pred_fallthru
      _
    // Predicated region
    $region50: #{_lambda_.3} parent=1 // pred_check
      _
    $region51: #{_lambda_.3} parent=1 // pred_check_branch
      %158 = sbr.rel (0) target = $region53
    $region52: #{_lambda_.3} parent=1 // pred_region
      %s160 = ssub.s32 32, 32
      %161 = vsyncadd [#allocation21], %s160
      %s163 = sshll.u32 [#allocation22], 4
      %s164 = int_to_ptr.vmem [resolvable:$true] %s163
      %166 = dma.hbm_to_vmem [thread:$0]  %s12, 32, %s164, [#allocation21]
    $region53: #{_lambda_.3} parent=1 // pred_fallthru
      _
    // Predicated region
    $region54: #{_lambda_.3} parent=1 // pred_check
      _
    $region55: #{_lambda_.3} parent=1 // pred_check_branch
      %168 = sbr.rel (0) target = $region57
    $region56: #{_lambda_.3} parent=1 // pred_region
      %s170 = ssub.s32 16, 16
      %171 = vsyncadd [#allocation24], %s170
      %s173 = sshll.u32 [#allocation23], 4
      %s174 = int_to_ptr.vmem [resolvable:$true] %s173
      %176 = dma.hbm_to_vmem [thread:$0]  %s13, 16, %s174, [#allocation24]
    $region57: #{_lambda_.3} parent=1 // pred_fallthru
      _
    // Predicated region
    $region58: #{_lambda_.3} parent=1 // pred_check
      _
    $region59: #{_lambda_.3} parent=1 // pred_check_branch
      %178 = sbr.rel (0) target = $region61
    $region60: #{_lambda_.3} parent=1 // pred_region
      %s180 = ssub.s32 16, 16
      %181 = vsyncadd [#allocation24], %s180
      %s183 = sshll.u32 [#allocation25], 4
      %s184 = int_to_ptr.vmem [resolvable:$true] %s183
      %186 = dma.hbm_to_vmem [thread:$0]  %s14, 16, %s184, [#allocation24]
    $region61: #{_lambda_.3} parent=1 // pred_fallthru
      _
    // Predicated region
    $region62: #{_lambda_.3} parent=1 // pred_check
      _
    $region63: #{_lambda_.3} parent=1 // pred_check_branch
      %188 = sbr.rel (0) target = $region65
    $region64: #{_lambda_.3} parent=1 // pred_region
      %189 = dma.done [#allocation3], 512
    $region65: #{_lambda_.3} parent=1 // pred_fallthru
      _
    // Predicated region
    $region66: #{_lambda_.3} parent=1 // pred_check
      _
    $region67: #{_lambda_.3} parent=1 // pred_check_branch
      %191 = sbr.rel (0) target = $region69
    $region68: #{_lambda_.3} parent=1 // pred_region
      %192 = dma.done [#allocation6], 512
    $region69: #{_lambda_.3} parent=1 // pred_fallthru
      _
    // Predicated region
    $region70: #{_lambda_.3} parent=1 // pred_check
      _
    $region71: #{_lambda_.3} parent=1 // pred_check_branch
      %194 = sbr.rel (0) target = $region73
    $region72: #{_lambda_.3} parent=1 // pred_region
      %195 = dma.done [#allocation6], 32
    $region73: #{_lambda_.3} parent=1 // pred_fallthru
      _
    // Predicated region
    $region74: #{_lambda_.3} parent=1 // pred_check
      _
    $region75: #{_lambda_.3} parent=1 // pred_check_branch
      %197 = sbr.rel (0) target = $region77
    $region76: #{_lambda_.3} parent=1 // pred_region
      %198 = dma.done [#allocation9], 32
    $region77: #{_lambda_.3} parent=1 // pred_fallthru
      _
    // Predicated region
    $region78: #{_lambda_.3} parent=1 // pred_check
      _
    $region79: #{_lambda_.3} parent=1 // pred_check_branch
      %200 = sbr.rel (0) target = $region81
    $region80: #{_lambda_.3} parent=1 // pred_region
      %201 = dma.done [#allocation9], 16
    $region81: #{_lambda_.3} parent=1 // pred_fallthru
      _
    // Predicated region
    $region82: #{_lambda_.3} parent=1 // pred_check
      _
    $region83: #{_lambda_.3} parent=1 // pred_check_branch
      %203 = sbr.rel (0) target = $region85
    $region84: #{_lambda_.3} parent=1 // pred_region
      %204 = dma.done [#allocation12], 16
    $region85: #{_lambda_.3} parent=1 // pred_fallthru
      _
    // Predicated region
    $region86: #{_lambda_.3} parent=1 // pred_check
      _
    $region87: #{_lambda_.3} parent=1 // pred_check_branch
      %206 = sbr.rel (0) target = $region89
    $region88: #{_lambda_.3} parent=1 // pred_region
      %207 = dma.done [#allocation12], 128
    $region89: #{_lambda_.3} parent=1 // pred_fallthru
      _
    // Predicated region
    $region90: #{_lambda_.3} parent=1 // pred_check
      _
    $region91: #{_lambda_.3} parent=1 // pred_check_branch
      %209 = sbr.rel (0) target = $region93
    $region92: #{_lambda_.3} parent=1 // pred_region
      %210 = dma.done [#allocation15], 16
    $region93: #{_lambda_.3} parent=1 // pred_fallthru
      _
    // Predicated region
    $region94: #{_lambda_.3} parent=1 // pred_check
      _
    $region95: #{_lambda_.3} parent=1 // pred_check_branch
      %212 = sbr.rel (0) target = $region97
    $region96: #{_lambda_.3} parent=1 // pred_region
      %213 = dma.done [#allocation15], 16
    $region97: #{_lambda_.3} parent=1 // pred_fallthru
      _
    // Predicated region
    $region98: #{_lambda_.3} parent=1 // pred_check
      _
    $region99: #{_lambda_.3} parent=1 // pred_check_branch
      %215 = sbr.rel (0) target = $region101
    $region100: #{_lambda_.3} parent=1 // pred_region
      %216 = dma.done [#allocation18], 128
    $region101: #{_lambda_.3} parent=1 // pred_fallthru
      _
    // Predicated region
    $region102: #{_lambda_.3} parent=1 // pred_check
      _
    $region103: #{_lambda_.3} parent=1 // pred_check_branch
      %218 = sbr.rel (0) target = $region105
    $region104: #{_lambda_.3} parent=1 // pred_region
      %219 = dma.done [#allocation18], 16
    $region105: #{_lambda_.3} parent=1 // pred_fallthru
      _
    // Predicated region
    $region106: #{_lambda_.3} parent=1 // pred_check
      _
    $region107: #{_lambda_.3} parent=1 // pred_check_branch
      %221 = sbr.rel (0) target = $region109
    $region108: #{_lambda_.3} parent=1 // pred_region
      %222 = dma.done [#allocation21], 16
    $region109: #{_lambda_.3} parent=1 // pred_fallthru
      _
    // Predicated region
    $region110: #{_lambda_.3} parent=1 // pred_check
      _
    $region111: #{_lambda_.3} parent=1 // pred_check_branch
      %224 = sbr.rel (0) target = $region113
    $region112: #{_lambda_.3} parent=1 // pred_region
      %225 = dma.done [#allocation21], 32
    $region113: #{_lambda_.3} parent=1 // pred_fallthru
      _
    // Predicated region
    $region114: #{_lambda_.3} parent=1 // pred_check
      _
    $region115: #{_lambda_.3} parent=1 // pred_check_branch
      %227 = sbr.rel (0) target = $region117
    $region116: #{_lambda_.3} parent=1 // pred_region
      %228 = dma.done [#allocation24], 16
    $region117: #{_lambda_.3} parent=1 // pred_fallthru
      _
    // Predicated region
    $region118: #{_lambda_.3} parent=1 // pred_check
      _
    $region119: #{_lambda_.3} parent=1 // pred_check_branch
      %230 = sbr.rel (0) target = $region121
    $region120: #{_lambda_.3} parent=1 // pred_region
      %231 = dma.done [#allocation24], 16
    $region121: #{_lambda_.3} parent=1 // pred_fallthru
      _
    %v233 = vld [vmem:[#allocation2] sm:$0xff]
    %v234 = vld [vmem:[#allocation2 + $0x8] sm:$0xff]
    %v235 = vld [vmem:[#allocation2 + $0x10] sm:$0xff]
    %v236 = vld [vmem:[#allocation2 + $0x18] sm:$0xff]
    %v237 = vpack.c.bf16 %v234, %v233
    %v238 = vpack.c.bf16 %v236, %v235
    %v239 = vld [vmem:[#allocation7] sm:$0x3]
    %vm240 = vcmask 31744
    %v242 = vsel %vm240, %v237, 0
    %v245 = vsel %vm240, %v238, 0
    %vm247 = vcmask 1041408
    %v249 = vsel %vm247, %v239, 0
    %251 = vmatprep.subr.bf16.mxu0 0
    %252 = vmatpush1.bf16.msra.mxu0 %v249
    %253 = vmatprep.subr.bf16.mxu0 0
    %254 = vmatpush1.bf16.msra.mxu0 0
    %255 = vmatprep.subr.bf16.mxu0 0
    %256 = vmatpush1.bf16.msra.mxu0 0
    %257 = vmatprep.subr.bf16.mxu0 0
    %258 = vmatpush1.bf16.msra.mxu0 0
    %259 = vmatprep.subr.bf16.mxu0 0
    %260 = vmatpush1.bf16.msra.mxu0 0
    %261 = vmatprep.subr.bf16.mxu0 0
    %262 = vmatpush1.bf16.msra.mxu0 0
    %263 = vmatprep.subr.bf16.mxu0 0
    %264 = vmatpush1.bf16.msra.mxu0 0
    %265 = vmatprep.subr.bf16.mxu0 0
    %266 = vmatpush1.bf16.msra.mxu0 0
    %267 = vmatprep.subr.bf16.mxu0 0
    %268 = vmatpush1.bf16.msra.mxu0 0
    %269 = vmatprep.subr.bf16.mxu0 0
    %270 = vmatpush1.bf16.msra.mxu0 0
    %271 = vmatprep.subr.bf16.mxu0 0
    %272 = vmatpush1.bf16.msra.mxu0 0
    %273 = vmatprep.subr.bf16.mxu0 0
    %274 = vmatpush1.bf16.msra.mxu0 0
    %275 = vmatprep.subr.bf16.mxu0 0
    %276 = vmatpush1.bf16.msra.mxu0 0
    %277 = vmatprep.subr.bf16.mxu0 0
    %278 = vmatpush1.bf16.msra.mxu0 0
    %279 = vmatprep.subr.bf16.mxu0 0
    %280 = vmatpush1.bf16.msra.mxu0 0
    %281 = vmatprep.subr.bf16.mxu0 0
    %282 = vmatpush1.bf16.msra.mxu0 0
    %283 = vmatprep.mubr.bf16.mxu0 0
    %284 = vmatmul.mubr.bf16.gmra.mrb[0].mxu0 %v242
    %v285 = vpop.f32.mrb[0].mxu0
    %v286 = vadd.f32 0.0, %v285
    %v287 = vpop.f32.mrb[0].mxu0
    %v288 = vpop.f32.mrb[0].mxu0
    %v289 = vadd.f32 0.0, %v288
    %v290 = vpop.f32.mrb[0].mxu0
    %291 = vmatprep.mubr.bf16.mxu0 0
    %292 = vmatmul.mubr.bf16.gmra.mrb[0].mxu0 %v245
    %v293 = vpop.f32.mrb[0].mxu0
    %v294 = vadd.f32 0.0, %v293
    %v295 = vpop.f32.mrb[0].mxu0
    %v296 = vpop.f32.mrb[0].mxu0
    %v297 = vadd.f32 0.0, %v296
    %v298 = vpop.f32.mrb[0].mxu0
    %299 = vdwg.mxu0
    %v300 = vld [vmem:[#allocation8] sm:$0x3]
    %v302 = vsel %vm247, %v300, 0
    %304 = vmatprep.subr.bf16.mxu0 0
    %305 = vmatpush1.bf16.msra.mxu0 %v302
    %306 = vmatprep.subr.bf16.mxu0 0
    %307 = vmatpush1.bf16.msra.mxu0 0
    %308 = vmatprep.subr.bf16.mxu0 0
    %309 = vmatpush1.bf16.msra.mxu0 0
    %310 = vmatprep.subr.bf16.mxu0 0
    %311 = vmatpush1.bf16.msra.mxu0 0
    %312 = vmatprep.subr.bf16.mxu0 0
    %313 = vmatpush1.bf16.msra.mxu0 0
    %314 = vmatprep.subr.bf16.mxu0 0
    %315 = vmatpush1.bf16.msra.mxu0 0
    %316 = vmatprep.subr.bf16.mxu0 0
    %317 = vmatpush1.bf16.msra.mxu0 0
    %318 = vmatprep.subr.bf16.mxu0 0
    %319 = vmatpush1.bf16.msra.mxu0 0
    %320 = vmatprep.subr.bf16.mxu0 0
    %321 = vmatpush1.bf16.msra.mxu0 0
    %322 = vmatprep.subr.bf16.mxu0 0
    %323 = vmatpush1.bf16.msra.mxu0 0
    %324 = vmatprep.subr.bf16.mxu0 0
    %325 = vmatpush1.bf16.msra.mxu0 0
    %326 = vmatprep.subr.bf16.mxu0 0
    %327 = vmatpush1.bf16.msra.mxu0 0
    %328 = vmatprep.subr.bf16.mxu0 0
    %329 = vmatpush1.bf16.msra.mxu0 0
    %330 = vmatprep.subr.bf16.mxu0 0
    %331 = vmatpush1.bf16.msra.mxu0 0
    %332 = vmatprep.subr.bf16.mxu0 0
    %333 = vmatpush1.bf16.msra.mxu0 0
    %334 = vmatprep.subr.bf16.mxu0 0
    %335 = vmatpush1.bf16.msra.mxu0 0
    %336 = vmatprep.mubr.bf16.mxu0 0
    %337 = vmatmul.mubr.bf16.gmra.mrb[0].mxu0 %v242
    %v338 = vpop.f32.mrb[0].mxu0
    %v339 = vadd.f32 0.0, %v338
    %v340 = vpop.f32.mrb[0].mxu0
    %v341 = vpop.f32.mrb[0].mxu0
    %v342 = vadd.f32 0.0, %v341
    %v343 = vpop.f32.mrb[0].mxu0
    %344 = vmatprep.mubr.bf16.mxu0 0
    %345 = vmatmul.mubr.bf16.gmra.mrb[0].mxu0 %v245
    %v346 = vpop.f32.mrb[0].mxu0
    %v347 = vadd.f32 0.0, %v346
    %v348 = vpop.f32.mrb[0].mxu0
    %v349 = vpop.f32.mrb[0].mxu0
    %v350 = vadd.f32 0.0, %v349
    %v351 = vpop.f32.mrb[0].mxu0
    %352 = vdwg.mxu0
    %v353 = vpack.c.bf16 %v342, %v339
    %v354 = vpack.c.bf16 %v350, %v347
    %v355 = vld [vmem:[#allocation10] sm:$0x1]
    %v356 = vld [vmem:[#allocation11] sm:$0x1]
    %v357 = vld [vmem:[#allocation14] sm:$0x1]
    %v358 = vld [vmem:[#allocation16] sm:$0x1]
    %v359 = vld [vmem:[#allocation19] sm:$0x1]
    %v360 = vld [vmem:[#allocation20] sm:$0x1]
    %v361 = vld [vmem:[#allocation13] sm:$0xf]
    %v362 = vld [vmem:[#allocation13 + $0x4] sm:$0xf]
    %v363 = vld [vmem:[#allocation17] sm:$0xf]
    %v364 = vld [vmem:[#allocation17 + $0x4] sm:$0xf]
    %v365 = vld [vmem:[#allocation5] sm:$0xff]
    %v366 = vld [vmem:[#allocation5 + $0x8] sm:$0xff]
    %v367 = vld [vmem:[#allocation5 + $0x10] sm:$0xff]
    %v368 = vld [vmem:[#allocation5 + $0x18] sm:$0xff]
    %v369 = vlaneseq
    %v370 = vand.u32 %v369, 127
    %371 = vset.pattern.permute.xlu0 0
    %372 = vperm.xlu0 %371, %v365
    %v373 = vpop.permute.xlu0 %372
    %374 = vset.pattern.permute.xlu0 0
    %375 = vperm.xlu0 %374, %v366
    %v376 = vpop.permute.xlu0 %375
    %377 = vset.pattern.permute.xlu0 0
    %378 = vperm.xlu0 %377, %v367
    %v379 = vpop.permute.xlu0 %378
    %380 = vset.pattern.permute.xlu0 0
    %381 = vperm.xlu0 %380, %v368
    %v382 = vpop.permute.xlu0 %381
    %vm383 = vcmp.eq.s32.totalorder %v370, %v373
    %vm384 = vcmp.eq.s32.totalorder %v370, %v376
    %vm385 = vcmp.eq.s32.totalorder %v370, %v379
    %vm386 = vcmp.eq.s32.totalorder %v370, %v382
    %v387 = vsel %vm383, 1, 0
    %v388 = vsel %vm384, 1, 0
    %v389 = vsel %vm385, 1, 0
    %v390 = vsel %vm386, 1, 0
    %v391 = vcvt.s32.f32 %v387
    %v392 = vcvt.s32.f32 %v388
    %v393 = vcvt.s32.f32 %v389
    %v394 = vcvt.s32.f32 %v390
    %v395 = vpack.c.bf16 %v392, %v391
    %v396 = vpack.c.bf16 %v394, %v393
    %vm397 = vcmask 261120
    %v399 = vsel %vm397, %v395, 0
    %v402 = vsel %vm397, %v396, 0
    %404 = vmatprep.subr.bf16.mxu0 0
    %405 = vmatpush1.bf16.msra.mxu0 %v353
    %406 = vmatprep.subr.bf16.mxu0 0
    %407 = vmatpush1.bf16.msra.mxu0 %v354
    %408 = vmatprep.subr.bf16.mxu0 0
    %409 = vmatpush1.bf16.msra.mxu0 0
    %410 = vmatprep.subr.bf16.mxu0 0
    %411 = vmatpush1.bf16.msra.mxu0 0
    %412 = vmatprep.subr.bf16.mxu0 0
    %413 = vmatpush1.bf16.msra.mxu0 0
    %414 = vmatprep.subr.bf16.mxu0 0
    %415 = vmatpush1.bf16.msra.mxu0 0
    %416 = vmatprep.subr.bf16.mxu0 0
    %417 = vmatpush1.bf16.msra.mxu0 0
    %418 = vmatprep.subr.bf16.mxu0 0
    %419 = vmatpush1.bf16.msra.mxu0 0
    %420 = vmatprep.subr.bf16.mxu0 0
    %421 = vmatpush1.bf16.msra.mxu0 0
    %422 = vmatprep.subr.bf16.mxu0 0
    %423 = vmatpush1.bf16.msra.mxu0 0
    %424 = vmatprep.subr.bf16.mxu0 0
    %425 = vmatpush1.bf16.msra.mxu0 0
    %426 = vmatprep.subr.bf16.mxu0 0
    %427 = vmatpush1.bf16.msra.mxu0 0
    %428 = vmatprep.subr.bf16.mxu0 0
    %429 = vmatpush1.bf16.msra.mxu0 0
    %430 = vmatprep.subr.bf16.mxu0 0
    %431 = vmatpush1.bf16.msra.mxu0 0
    %432 = vmatprep.subr.bf16.mxu0 0
    %433 = vmatpush1.bf16.msra.mxu0 0
    %434 = vmatprep.subr.bf16.mxu0 0
    %435 = vmatpush1.bf16.msra.mxu0 0
    %436 = vmatprep.mubr.bf16.mxu0 0
    %437 = vmatmul.mubr.bf16.gmra.mrb[0].mxu0 %v399
    %v438 = vpop.f32.mrb[0].mxu0
    %v439 = vadd.f32 %v286, %v438
    %v440 = vpop.f32.mrb[0].mxu0
    %v441 = vpop.f32.mrb[0].mxu0
    %v442 = vadd.f32 %v289, %v441
    %v443 = vpop.f32.mrb[0].mxu0
    %444 = vmatprep.mubr.bf16.mxu0 0
    %445 = vmatmul.mubr.bf16.gmra.mrb[0].mxu0 %v402
    %v446 = vpop.f32.mrb[0].mxu0
    %v447 = vadd.f32 %v294, %v446
    %v448 = vpop.f32.mrb[0].mxu0
    %v449 = vpop.f32.mrb[0].mxu0
    %v450 = vadd.f32 %v297, %v449
    %v451 = vpop.f32.mrb[0].mxu0
    %452 = vdwg.mxu0
    %v454 = vlaneseq
    %v455 = vshrl.u32 %v454, 7
    %v456 = vsub.s32 0, %v455
    %v457 = vrot.slane %v355, %v456
    %v459 = vmul.f32 %v439, %v457
    %v460 = vmul.f32 %v442, %v457
    %v461 = vmul.f32 %v447, %v457
    %v462 = vmul.f32 %v450, %v457
    %v464 = vlaneseq
    %v465 = vshrl.u32 %v464, 7
    %v466 = vsub.s32 0, %v465
    %v467 = vrot.slane %v356, %v466
    %v469 = vadd.f32 %v459, %v467
    %v470 = vadd.f32 %v460, %v467
    %v471 = vadd.f32 %v461, %v467
    %v472 = vadd.f32 %v462, %v467
    %v473 = vmax.f32 %v469, 0.0
    %v474 = vmax.f32 %v470, 0.0
    %v475 = vmax.f32 %v471, 0.0
    %v476 = vmax.f32 %v472, 0.0
    %v477 = vpack.c.bf16 %v474, %v473
    %v478 = vpack.c.bf16 %v476, %v475
    %v481 = vunpack.c.l.b16 %v361
    %v482 = vunpack.c.l.b16 %v362
    %v483 = vpack.c.b16 %v482, %v481
    %vm485 = vcmask 130048
    %v487 = vsel %vm485, %v477, 0
    %v490 = vsel %vm485, %v478, 0
    %492 = vmatprep.subr.bf16.mxu0 0
    %493 = vmatpush1.bf16.msra.mxu0 %v483
    %494 = vmatprep.subr.bf16.mxu0 0
    %495 = vmatpush1.bf16.msra.mxu0 0
    %496 = vmatprep.subr.bf16.mxu0 0
    %497 = vmatpush1.bf16.msra.mxu0 0
    %498 = vmatprep.subr.bf16.mxu0 0
    %499 = vmatpush1.bf16.msra.mxu0 0
    %500 = vmatprep.subr.bf16.mxu0 0
    %501 = vmatpush1.bf16.msra.mxu0 0
    %502 = vmatprep.subr.bf16.mxu0 0
    %503 = vmatpush1.bf16.msra.mxu0 0
    %504 = vmatprep.subr.bf16.mxu0 0
    %505 = vmatpush1.bf16.msra.mxu0 0
    %506 = vmatprep.subr.bf16.mxu0 0
    %507 = vmatpush1.bf16.msra.mxu0 0
    %508 = vmatprep.subr.bf16.mxu0 0
    %509 = vmatpush1.bf16.msra.mxu0 0
    %510 = vmatprep.subr.bf16.mxu0 0
    %511 = vmatpush1.bf16.msra.mxu0 0
    %512 = vmatprep.subr.bf16.mxu0 0
    %513 = vmatpush1.bf16.msra.mxu0 0
    %514 = vmatprep.subr.bf16.mxu0 0
    %515 = vmatpush1.bf16.msra.mxu0 0
    %516 = vmatprep.subr.bf16.mxu0 0
    %517 = vmatpush1.bf16.msra.mxu0 0
    %518 = vmatprep.subr.bf16.mxu0 0
    %519 = vmatpush1.bf16.msra.mxu0 0
    %520 = vmatprep.subr.bf16.mxu0 0
    %521 = vmatpush1.bf16.msra.mxu0 0
    %522 = vmatprep.subr.bf16.mxu0 0
    %523 = vmatpush1.bf16.msra.mxu0 0
    %524 = vmatprep.mubr.bf16.mxu0 0
    %525 = vmatmul.mubr.bf16.gmra.mrb[0].mxu0 %v487
    %v526 = vpop.f32.mrb[0].mxu0
    %v527 = vadd.f32 0.0, %v526
    %v528 = vpop.f32.mrb[0].mxu0
    %v529 = vpop.f32.mrb[0].mxu0
    %v530 = vadd.f32 0.0, %v529
    %v531 = vpop.f32.mrb[0].mxu0
    %532 = vmatprep.mubr.bf16.mxu0 0
    %533 = vmatmul.mubr.bf16.gmra.mrb[0].mxu0 %v490
    %v534 = vpop.f32.mrb[0].mxu0
    %v535 = vadd.f32 0.0, %v534
    %v536 = vpop.f32.mrb[0].mxu0
    %v537 = vpop.f32.mrb[0].mxu0
    %v538 = vadd.f32 0.0, %v537
    %v539 = vpop.f32.mrb[0].mxu0
    %540 = vdwg.mxu0
    %v542 = vlaneseq
    %v543 = vshrl.u32 %v542, 7
    %v544 = vsub.s32 0, %v543
    %v545 = vrot.slane %v357, %v544
    %v547 = vmul.f32 %v527, %v545
    %v548 = vmul.f32 %v530, %v545
    %v549 = vmul.f32 %v535, %v545
    %v550 = vmul.f32 %v538, %v545
    %v552 = vlaneseq
    %v553 = vshrl.u32 %v552, 7
    %v554 = vsub.s32 0, %v553
    %v555 = vrot.slane %v358, %v554
    %v557 = vadd.f32 %v547, %v555
    %v558 = vadd.f32 %v548, %v555
    %v559 = vadd.f32 %v549, %v555
    %v560 = vadd.f32 %v550, %v555
    %v561 = vmax.f32 %v557, 0.0
    %v562 = vmax.f32 %v558, 0.0
    %v563 = vmax.f32 %v559, 0.0
    %v564 = vmax.f32 %v560, 0.0
    %v565 = vpack.c.bf16 %v562, %v561
    %v566 = vpack.c.bf16 %v564, %v563
    %v569 = vunpack.c.l.b16 %v363
    %v570 = vunpack.c.l.b16 %v364
    %v571 = vpack.c.b16 %v570, %v569
    %v574 = vsel %vm485, %v565, 0
    %v577 = vsel %vm485, %v566, 0
    %579 = vmatprep.subr.bf16.mxu0 0
    %580 = vmatpush1.bf16.msra.mxu0 %v571
    %581 = vmatprep.subr.bf16.mxu0 0
    %582 = vmatpush1.bf16.msra.mxu0 0
    %583 = vmatprep.subr.bf16.mxu0 0
    %584 = vmatpush1.bf16.msra.mxu0 0
    %585 = vmatprep.subr.bf16.mxu0 0
    %586 = vmatpush1.bf16.msra.mxu0 0
    %587 = vmatprep.subr.bf16.mxu0 0
    %588 = vmatpush1.bf16.msra.mxu0 0
    %589 = vmatprep.subr.bf16.mxu0 0
    %590 = vmatpush1.bf16.msra.mxu0 0
    %591 = vmatprep.subr.bf16.mxu0 0
    %592 = vmatpush1.bf16.msra.mxu0 0
    %593 = vmatprep.subr.bf16.mxu0 0
    %594 = vmatpush1.bf16.msra.mxu0 0
    %595 = vmatprep.subr.bf16.mxu0 0
    %596 = vmatpush1.bf16.msra.mxu0 0
    %597 = vmatprep.subr.bf16.mxu0 0
    %598 = vmatpush1.bf16.msra.mxu0 0
    %599 = vmatprep.subr.bf16.mxu0 0
    %600 = vmatpush1.bf16.msra.mxu0 0
    %601 = vmatprep.subr.bf16.mxu0 0
    %602 = vmatpush1.bf16.msra.mxu0 0
    %603 = vmatprep.subr.bf16.mxu0 0
    %604 = vmatpush1.bf16.msra.mxu0 0
    %605 = vmatprep.subr.bf16.mxu0 0
    %606 = vmatpush1.bf16.msra.mxu0 0
    %607 = vmatprep.subr.bf16.mxu0 0
    %608 = vmatpush1.bf16.msra.mxu0 0
    %609 = vmatprep.subr.bf16.mxu0 0
    %610 = vmatpush1.bf16.msra.mxu0 0
    %611 = vmatprep.mubr.bf16.mxu0 0
    %612 = vmatmul.mubr.bf16.gmra.mrb[0].mxu0 %v574
    %v613 = vpop.f32.mrb[0].mxu0
    %v614 = vadd.f32 0.0, %v613
    %v615 = vpop.f32.mrb[0].mxu0
    %v616 = vpop.f32.mrb[0].mxu0
    %v617 = vadd.f32 0.0, %v616
    %v618 = vpop.f32.mrb[0].mxu0
    %619 = vmatprep.mubr.bf16.mxu0 0
    %620 = vmatmul.mubr.bf16.gmra.mrb[0].mxu0 %v577
    %v621 = vpop.f32.mrb[0].mxu0
    %v622 = vadd.f32 0.0, %v621
    %v623 = vpop.f32.mrb[0].mxu0
    %v624 = vpop.f32.mrb[0].mxu0
    %v625 = vadd.f32 0.0, %v624
    %v626 = vpop.f32.mrb[0].mxu0
    %627 = vdwg.mxu0
    %v629 = vlaneseq
    %v630 = vshrl.u32 %v629, 7
    %v631 = vsub.s32 0, %v630
    %v632 = vrot.slane %v359, %v631
    %v634 = vmul.f32 %v614, %v632
    %v635 = vmul.f32 %v617, %v632
    %v636 = vmul.f32 %v622, %v632
    %v637 = vmul.f32 %v625, %v632
    %v639 = vlaneseq
    %v640 = vshrl.u32 %v639, 7
    %v641 = vsub.s32 0, %v640
    %v642 = vrot.slane %v360, %v641
    %v644 = vadd.f32 %v634, %v642
    %v645 = vadd.f32 %v635, %v642
    %v646 = vadd.f32 %v636, %v642
    %v647 = vadd.f32 %v637, %v642
    %v648 = vmax.f32 %v644, 0.0
    %v649 = vmax.f32 %v645, 0.0
    %v650 = vmax.f32 %v646, 0.0
    %v651 = vmax.f32 %v647, 0.0
    %652 = vset.pattern.permute.xlu0 1
    %653 = vperm.xlu0 %652, %v365
    %v654 = vpop.permute.xlu0 %653
    %655 = vset.pattern.permute.xlu0 1
    %656 = vperm.xlu0 %655, %v366
    %v657 = vpop.permute.xlu0 %656
    %658 = vset.pattern.permute.xlu0 1
    %659 = vperm.xlu0 %658, %v367
    %v660 = vpop.permute.xlu0 %659
    %661 = vset.pattern.permute.xlu0 1
    %662 = vperm.xlu0 %661, %v368
    %v663 = vpop.permute.xlu0 %662
    %vm664 = vcmp.eq.s32.totalorder %v370, %v654
    %vm665 = vcmp.eq.s32.totalorder %v370, %v657
    %vm666 = vcmp.eq.s32.totalorder %v370, %v660
    %vm667 = vcmp.eq.s32.totalorder %v370, %v663
    %v668 = vsel %vm664, 1, 0
    %v669 = vsel %vm665, 1, 0
    %v670 = vsel %vm666, 1, 0
    %v671 = vsel %vm667, 1, 0
    %v672 = vcvt.s32.f32 %v668
    %v673 = vcvt.s32.f32 %v669
    %v674 = vcvt.s32.f32 %v670
    %v675 = vcvt.s32.f32 %v671
    %v676 = vpack.c.bf16 %v673, %v672
    %v677 = vpack.c.bf16 %v675, %v674
    %v679 = vsel %vm397, %v676, 0
    %v682 = vsel %vm397, %v677, 0
    %684 = vmatprep.subr.bf16.mxu0 0
    %685 = vmatpush1.bf16.msra.mxu0 %v353
    %686 = vmatprep.subr.bf16.mxu0 0
    %687 = vmatpush1.bf16.msra.mxu0 %v354
    %688 = vmatprep.subr.bf16.mxu0 0
    %689 = vmatpush1.bf16.msra.mxu0 0
    %690 = vmatprep.subr.bf16.mxu0 0
    %691 = vmatpush1.bf16.msra.mxu0 0
    %692 = vmatprep.subr.bf16.mxu0 0
    %693 = vmatpush1.bf16.msra.mxu0 0
    %694 = vmatprep.subr.bf16.mxu0 0
    %695 = vmatpush1.bf16.msra.mxu0 0
    %696 = vmatprep.subr.bf16.mxu0 0
    %697 = vmatpush1.bf16.msra.mxu0 0
    %698 = vmatprep.subr.bf16.mxu0 0
    %699 = vmatpush1.bf16.msra.mxu0 0
    %700 = vmatprep.subr.bf16.mxu0 0
    %701 = vmatpush1.bf16.msra.mxu0 0
    %702 = vmatprep.subr.bf16.mxu0 0
    %703 = vmatpush1.bf16.msra.mxu0 0
    %704 = vmatprep.subr.bf16.mxu0 0
    %705 = vmatpush1.bf16.msra.mxu0 0
    %706 = vmatprep.subr.bf16.mxu0 0
    %707 = vmatpush1.bf16.msra.mxu0 0
    %708 = vmatprep.subr.bf16.mxu0 0
    %709 = vmatpush1.bf16.msra.mxu0 0
    %710 = vmatprep.subr.bf16.mxu0 0
    %711 = vmatpush1.bf16.msra.mxu0 0
    %712 = vmatprep.subr.bf16.mxu0 0
    %713 = vmatpush1.bf16.msra.mxu0 0
    %714 = vmatprep.subr.bf16.mxu0 0
    %715 = vmatpush1.bf16.msra.mxu0 0
    %716 = vmatprep.mubr.bf16.mxu0 0
    %717 = vmatmul.mubr.bf16.gmra.mrb[0].mxu0 %v679
    %v718 = vpop.f32.mrb[0].mxu0
    %v719 = vadd.f32 %v286, %v718
    %v720 = vpop.f32.mrb[0].mxu0
    %v721 = vpop.f32.mrb[0].mxu0
    %v722 = vadd.f32 %v289, %v721
    %v723 = vpop.f32.mrb[0].mxu0
    %724 = vmatprep.mubr.bf16.mxu0 0
    %725 = vmatmul.mubr.bf16.gmra.mrb[0].mxu0 %v682
    %v726 = vpop.f32.mrb[0].mxu0
    %v727 = vadd.f32 %v294, %v726
    %v728 = vpop.f32.mrb[0].mxu0
    %v729 = vpop.f32.mrb[0].mxu0
    %v730 = vadd.f32 %v297, %v729
    %v731 = vpop.f32.mrb[0].mxu0
    %732 = vdwg.mxu0
    %v733 = vmul.f32 %v719, %v457
    %v734 = vmul.f32 %v722, %v457
    %v735 = vmul.f32 %v727, %v457
    %v736 = vmul.f32 %v730, %v457
    %v737 = vadd.f32 %v733, %v467
    %v738 = vadd.f32 %v734, %v467
    %v739 = vadd.f32 %v735, %v467
    %v740 = vadd.f32 %v736, %v467
    %v741 = vmax.f32 %v737, 0.0
    %v742 = vmax.f32 %v738, 0.0
    %v743 = vmax.f32 %v739, 0.0
    %v744 = vmax.f32 %v740, 0.0
    %v745 = vpack.c.bf16 %v742, %v741
    %v746 = vpack.c.bf16 %v744, %v743
    %v748 = vsel %vm485, %v745, 0
    %v751 = vsel %vm485, %v746, 0
    %753 = vmatprep.subr.bf16.mxu0 0
    %754 = vmatpush1.bf16.msra.mxu0 %v483
    %755 = vmatprep.subr.bf16.mxu0 0
    %756 = vmatpush1.bf16.msra.mxu0 0
    %757 = vmatprep.subr.bf16.mxu0 0
    %758 = vmatpush1.bf16.msra.mxu0 0
    %759 = vmatprep.subr.bf16.mxu0 0
    %760 = vmatpush1.bf16.msra.mxu0 0
    %761 = vmatprep.subr.bf16.mxu0 0
    %762 = vmatpush1.bf16.msra.mxu0 0
    %763 = vmatprep.subr.bf16.mxu0 0
    %764 = vmatpush1.bf16.msra.mxu0 0
    %765 = vmatprep.subr.bf16.mxu0 0
    %766 = vmatpush1.bf16.msra.mxu0 0
    %767 = vmatprep.subr.bf16.mxu0 0
    %768 = vmatpush1.bf16.msra.mxu0 0
    %769 = vmatprep.subr.bf16.mxu0 0
    %770 = vmatpush1.bf16.msra.mxu0 0
    %771 = vmatprep.subr.bf16.mxu0 0
    %772 = vmatpush1.bf16.msra.mxu0 0
    %773 = vmatprep.subr.bf16.mxu0 0
    %774 = vmatpush1.bf16.msra.mxu0 0
    %775 = vmatprep.subr.bf16.mxu0 0
    %776 = vmatpush1.bf16.msra.mxu0 0
    %777 = vmatprep.subr.bf16.mxu0 0
    %778 = vmatpush1.bf16.msra.mxu0 0
    %779 = vmatprep.subr.bf16.mxu0 0
    %780 = vmatpush1.bf16.msra.mxu0 0
    %781 = vmatprep.subr.bf16.mxu0 0
    %782 = vmatpush1.bf16.msra.mxu0 0
    %783 = vmatprep.subr.bf16.mxu0 0
    %784 = vmatpush1.bf16.msra.mxu0 0
    %785 = vmatprep.mubr.bf16.mxu0 0
    %786 = vmatmul.mubr.bf16.gmra.mrb[0].mxu0 %v748
    %v787 = vpop.f32.mrb[0].mxu0
    %v788 = vadd.f32 0.0, %v787
    %v789 = vpop.f32.mrb[0].mxu0
    %v790 = vpop.f32.mrb[0].mxu0
    %v791 = vadd.f32 0.0, %v790
    %v792 = vpop.f32.mrb[0].mxu0
    %793 = vmatprep.mubr.bf16.mxu0 0
    %794 = vmatmul.mubr.bf16.gmra.mrb[0].mxu0 %v751
    %v795 = vpop.f32.mrb[0].mxu0
    %v796 = vadd.f32 0.0, %v795
    %v797 = vpop.f32.mrb[0].mxu0
    %v798 = vpop.f32.mrb[0].mxu0
    %v799 = vadd.f32 0.0, %v798
    %v800 = vpop.f32.mrb[0].mxu0
    %801 = vdwg.mxu0
    %v802 = vmul.f32 %v788, %v545
    %v803 = vmul.f32 %v791, %v545
    %v804 = vmul.f32 %v796, %v545
    %v805 = vmul.f32 %v799, %v545
    %v806 = vadd.f32 %v802, %v555
    %v807 = vadd.f32 %v803, %v555
    %v808 = vadd.f32 %v804, %v555
    %v809 = vadd.f32 %v805, %v555
    %v810 = vmax.f32 %v806, 0.0
    %v811 = vmax.f32 %v807, 0.0
    %v812 = vmax.f32 %v808, 0.0
    %v813 = vmax.f32 %v809, 0.0
    %v814 = vpack.c.bf16 %v811, %v810
    %v815 = vpack.c.bf16 %v813, %v812
    %v817 = vsel %vm485, %v814, 0
    %v820 = vsel %vm485, %v815, 0
    %822 = vmatprep.subr.bf16.mxu0 0
    %823 = vmatpush1.bf16.msra.mxu0 %v571
    %824 = vmatprep.subr.bf16.mxu0 0
    %825 = vmatpush1.bf16.msra.mxu0 0
    %826 = vmatprep.subr.bf16.mxu0 0
    %827 = vmatpush1.bf16.msra.mxu0 0
    %828 = vmatprep.subr.bf16.mxu0 0
    %829 = vmatpush1.bf16.msra.mxu0 0
    %830 = vmatprep.subr.bf16.mxu0 0
    %831 = vmatpush1.bf16.msra.mxu0 0
    %832 = vmatprep.subr.bf16.mxu0 0
    %833 = vmatpush1.bf16.msra.mxu0 0
    %834 = vmatprep.subr.bf16.mxu0 0
    %835 = vmatpush1.bf16.msra.mxu0 0
    %836 = vmatprep.subr.bf16.mxu0 0
    %837 = vmatpush1.bf16.msra.mxu0 0
    %838 = vmatprep.subr.bf16.mxu0 0
    %839 = vmatpush1.bf16.msra.mxu0 0
    %840 = vmatprep.subr.bf16.mxu0 0
    %841 = vmatpush1.bf16.msra.mxu0 0
    %842 = vmatprep.subr.bf16.mxu0 0
    %843 = vmatpush1.bf16.msra.mxu0 0
    %844 = vmatprep.subr.bf16.mxu0 0
    %845 = vmatpush1.bf16.msra.mxu0 0
    %846 = vmatprep.subr.bf16.mxu0 0
    %847 = vmatpush1.bf16.msra.mxu0 0
    %848 = vmatprep.subr.bf16.mxu0 0
    %849 = vmatpush1.bf16.msra.mxu0 0
    %850 = vmatprep.subr.bf16.mxu0 0
    %851 = vmatpush1.bf16.msra.mxu0 0
    %852 = vmatprep.subr.bf16.mxu0 0
    %853 = vmatpush1.bf16.msra.mxu0 0
    %854 = vmatprep.mubr.bf16.mxu0 0
    %855 = vmatmul.mubr.bf16.gmra.mrb[0].mxu0 %v817
    %v856 = vpop.f32.mrb[0].mxu0
    %v857 = vadd.f32 0.0, %v856
    %v858 = vpop.f32.mrb[0].mxu0
    %v859 = vpop.f32.mrb[0].mxu0
    %v860 = vadd.f32 0.0, %v859
    %v861 = vpop.f32.mrb[0].mxu0
    %862 = vmatprep.mubr.bf16.mxu0 0
    %863 = vmatmul.mubr.bf16.gmra.mrb[0].mxu0 %v820
    %v864 = vpop.f32.mrb[0].mxu0
    %v865 = vadd.f32 0.0, %v864
    %v866 = vpop.f32.mrb[0].mxu0
    %v867 = vpop.f32.mrb[0].mxu0
    %v868 = vadd.f32 0.0, %v867
    %v869 = vpop.f32.mrb[0].mxu0
    %870 = vdwg.mxu0
    %v871 = vmul.f32 %v857, %v632
    %v872 = vmul.f32 %v860, %v632
    %v873 = vmul.f32 %v865, %v632
    %v874 = vmul.f32 %v868, %v632
    %v875 = vadd.f32 %v871, %v642
    %v876 = vadd.f32 %v872, %v642
    %v877 = vadd.f32 %v873, %v642
    %v878 = vadd.f32 %v874, %v642
    %v879 = vmax.f32 %v875, 0.0
    %v880 = vmax.f32 %v876, 0.0
    %v881 = vmax.f32 %v877, 0.0
    %v882 = vmax.f32 %v878, 0.0
    %v883 = vmax.f32 %v648, %v879
    %v884 = vmax.f32 %v649, %v880
    %v885 = vmax.f32 %v650, %v881
    %v886 = vmax.f32 %v651, %v882
    %887 = vset.pattern.permute.xlu0 2
    %888 = vperm.xlu0 %887, %v365
    %v889 = vpop.permute.xlu0 %888
    %890 = vset.pattern.permute.xlu0 2
    %891 = vperm.xlu0 %890, %v366
    %v892 = vpop.permute.xlu0 %891
    %893 = vset.pattern.permute.xlu0 2
    %894 = vperm.xlu0 %893, %v367
    %v895 = vpop.permute.xlu0 %894
    %896 = vset.pattern.permute.xlu0 2
    %897 = vperm.xlu0 %896, %v368
    %v898 = vpop.permute.xlu0 %897
    %vm899 = vcmp.eq.s32.totalorder %v370, %v889
    %vm900 = vcmp.eq.s32.totalorder %v370, %v892
    %vm901 = vcmp.eq.s32.totalorder %v370, %v895
    %vm902 = vcmp.eq.s32.totalorder %v370, %v898
    %v903 = vsel %vm899, 1, 0
    %v904 = vsel %vm900, 1, 0
    %v905 = vsel %vm901, 1, 0
    %v906 = vsel %vm902, 1, 0
    %v907 = vcvt.s32.f32 %v903
    %v908 = vcvt.s32.f32 %v904
    %v909 = vcvt.s32.f32 %v905
    %v910 = vcvt.s32.f32 %v906
    %v911 = vpack.c.bf16 %v908, %v907
    %v912 = vpack.c.bf16 %v910, %v909
    %v914 = vsel %vm397, %v911, 0
    %v917 = vsel %vm397, %v912, 0
    %919 = vmatprep.subr.bf16.mxu0 0
    %920 = vmatpush1.bf16.msra.mxu0 %v353
    %921 = vmatprep.subr.bf16.mxu0 0
    %922 = vmatpush1.bf16.msra.mxu0 %v354
    %923 = vmatprep.subr.bf16.mxu0 0
    %924 = vmatpush1.bf16.msra.mxu0 0
    %925 = vmatprep.subr.bf16.mxu0 0
    %926 = vmatpush1.bf16.msra.mxu0 0
    %927 = vmatprep.subr.bf16.mxu0 0
    %928 = vmatpush1.bf16.msra.mxu0 0
    %929 = vmatprep.subr.bf16.mxu0 0
    %930 = vmatpush1.bf16.msra.mxu0 0
    %931 = vmatprep.subr.bf16.mxu0 0
    %932 = vmatpush1.bf16.msra.mxu0 0
    %933 = vmatprep.subr.bf16.mxu0 0
    %934 = vmatpush1.bf16.msra.mxu0 0
    %935 = vmatprep.subr.bf16.mxu0 0
    %936 = vmatpush1.bf16.msra.mxu0 0
    %937 = vmatprep.subr.bf16.mxu0 0
    %938 = vmatpush1.bf16.msra.mxu0 0
    %939 = vmatprep.subr.bf16.mxu0 0
    %940 = vmatpush1.bf16.msra.mxu0 0
    %941 = vmatprep.subr.bf16.mxu0 0
    %942 = vmatpush1.bf16.msra.mxu0 0
    %943 = vmatprep.subr.bf16.mxu0 0
    %944 = vmatpush1.bf16.msra.mxu0 0
    %945 = vmatprep.subr.bf16.mxu0 0
    %946 = vmatpush1.bf16.msra.mxu0 0
    %947 = vmatprep.subr.bf16.mxu0 0
    %948 = vmatpush1.bf16.msra.mxu0 0
    %949 = vmatprep.subr.bf16.mxu0 0
    %950 = vmatpush1.bf16.msra.mxu0 0
    %951 = vmatprep.mubr.bf16.mxu0 0
    %952 = vmatmul.mubr.bf16.gmra.mrb[0].mxu0 %v914
    %v953 = vpop.f32.mrb[0].mxu0
    %v954 = vadd.f32 %v286, %v953
    %v955 = vpop.f32.mrb[0].mxu0
    %v956 = vpop.f32.mrb[0].mxu0
    %v957 = vadd.f32 %v289, %v956
    %v958 = vpop.f32.mrb[0].mxu0
    %959 = vmatprep.mubr.bf16.mxu0 0
    %960 = vmatmul.mubr.bf16.gmra.mrb[0].mxu0 %v917
    %v961 = vpop.f32.mrb[0].mxu0
    %v962 = vadd.f32 %v294, %v961
    %v963 = vpop.f32.mrb[0].mxu0
    %v964 = vpop.f32.mrb[0].mxu0
    %v965 = vadd.f32 %v297, %v964
    %v966 = vpop.f32.mrb[0].mxu0
    %967 = vdwg.mxu0
    %v968 = vmul.f32 %v954, %v457
    %v969 = vmul.f32 %v957, %v457
    %v970 = vmul.f32 %v962, %v457
    %v971 = vmul.f32 %v965, %v457
    %v972 = vadd.f32 %v968, %v467
    %v973 = vadd.f32 %v969, %v467
    %v974 = vadd.f32 %v970, %v467
    %v975 = vadd.f32 %v971, %v467
    %v976 = vmax.f32 %v972, 0.0
    %v977 = vmax.f32 %v973, 0.0
    %v978 = vmax.f32 %v974, 0.0
    %v979 = vmax.f32 %v975, 0.0
    %v980 = vpack.c.bf16 %v977, %v976
    %v981 = vpack.c.bf16 %v979, %v978
    %v983 = vsel %vm485, %v980, 0
    %v986 = vsel %vm485, %v981, 0
    %988 = vmatprep.subr.bf16.mxu0 0
    %989 = vmatpush1.bf16.msra.mxu0 %v483
    %990 = vmatprep.subr.bf16.mxu0 0
    %991 = vmatpush1.bf16.msra.mxu0 0
    %992 = vmatprep.subr.bf16.mxu0 0
    %993 = vmatpush1.bf16.msra.mxu0 0
    %994 = vmatprep.subr.bf16.mxu0 0
    %995 = vmatpush1.bf16.msra.mxu0 0
    %996 = vmatprep.subr.bf16.mxu0 0
    %997 = vmatpush1.bf16.msra.mxu0 0
    %998 = vmatprep.subr.bf16.mxu0 0
    %999 = vmatpush1.bf16.msra.mxu0 0
    %1000 = vmatprep.subr.bf16.mxu0 0
    %1001 = vmatpush1.bf16.msra.mxu0 0
    %1002 = vmatprep.subr.bf16.mxu0 0
    %1003 = vmatpush1.bf16.msra.mxu0 0
    %1004 = vmatprep.subr.bf16.mxu0 0
    %1005 = vmatpush1.bf16.msra.mxu0 0
    %1006 = vmatprep.subr.bf16.mxu0 0
    %1007 = vmatpush1.bf16.msra.mxu0 0
    %1008 = vmatprep.subr.bf16.mxu0 0
    %1009 = vmatpush1.bf16.msra.mxu0 0
    %1010 = vmatprep.subr.bf16.mxu0 0
    %1011 = vmatpush1.bf16.msra.mxu0 0
    %1012 = vmatprep.subr.bf16.mxu0 0
    %1013 = vmatpush1.bf16.msra.mxu0 0
    %1014 = vmatprep.subr.bf16.mxu0 0
    %1015 = vmatpush1.bf16.msra.mxu0 0
    %1016 = vmatprep.subr.bf16.mxu0 0
    %1017 = vmatpush1.bf16.msra.mxu0 0
    %1018 = vmatprep.subr.bf16.mxu0 0
    %1019 = vmatpush1.bf16.msra.mxu0 0
    %1020 = vmatprep.mubr.bf16.mxu0 0
    %1021 = vmatmul.mubr.bf16.gmra.mrb[0].mxu0 %v983
    %v1022 = vpop.f32.mrb[0].mxu0
    %v1023 = vadd.f32 0.0, %v1022
    %v1024 = vpop.f32.mrb[0].mxu0
    %v1025 = vpop.f32.mrb[0].mxu0
    %v1026 = vadd.f32 0.0, %v1025
    %v1027 = vpop.f32.mrb[0].mxu0
    %1028 = vmatprep.mubr.bf16.mxu0 0
    %1029 = vmatmul.mubr.bf16.gmra.mrb[0].mxu0 %v986
    %v1030 = vpop.f32.mrb[0].mxu0
    %v1031 = vadd.f32 0.0, %v1030
    %v1032 = vpop.f32.mrb[0].mxu0
    %v1033 = vpop.f32.mrb[0].mxu0
    %v1034 = vadd.f32 0.0, %v1033
    %v1035 = vpop.f32.mrb[0].mxu0
    %1036 = vdwg.mxu0
    %v1037 = vmul.f32 %v1023, %v545
    %v1038 = vmul.f32 %v1026, %v545
    %v1039 = vmul.f32 %v1031, %v545
    %v1040 = vmul.f32 %v1034, %v545
    %v1041 = vadd.f32 %v1037, %v555
    %v1042 = vadd.f32 %v1038, %v555
    %v1043 = vadd.f32 %v1039, %v555
    %v1044 = vadd.f32 %v1040, %v555
    %v1045 = vmax.f32 %v1041, 0.0
    %v1046 = vmax.f32 %v1042, 0.0
    %v1047 = vmax.f32 %v1043, 0.0
    %v1048 = vmax.f32 %v1044, 0.0
    %v1049 = vpack.c.bf16 %v1046, %v1045
    %v1050 = vpack.c.bf16 %v1048, %v1047
    %v1052 = vsel %vm485, %v1049, 0
    %v1055 = vsel %vm485, %v1050, 0
    %1057 = vmatprep.subr.bf16.mxu0 0
    %1058 = vmatpush1.bf16.msra.mxu0 %v571
    %1059 = vmatprep.subr.bf16.mxu0 0
    %1060 = vmatpush1.bf16.msra.mxu0 0
    %1061 = vmatprep.subr.bf16.mxu0 0
    %1062 = vmatpush1.bf16.msra.mxu0 0
    %1063 = vmatprep.subr.bf16.mxu0 0
    %1064 = vmatpush1.bf16.msra.mxu0 0
    %1065 = vmatprep.subr.bf16.mxu0 0
    %1066 = vmatpush1.bf16.msra.mxu0 0
    %1067 = vmatprep.subr.bf16.mxu0 0
    %1068 = vmatpush1.bf16.msra.mxu0 0
    %1069 = vmatprep.subr.bf16.mxu0 0
    %1070 = vmatpush1.bf16.msra.mxu0 0
    %1071 = vmatprep.subr.bf16.mxu0 0
    %1072 = vmatpush1.bf16.msra.mxu0 0
    %1073 = vmatprep.subr.bf16.mxu0 0
    %1074 = vmatpush1.bf16.msra.mxu0 0
    %1075 = vmatprep.subr.bf16.mxu0 0
    %1076 = vmatpush1.bf16.msra.mxu0 0
    %1077 = vmatprep.subr.bf16.mxu0 0
    %1078 = vmatpush1.bf16.msra.mxu0 0
    %1079 = vmatprep.subr.bf16.mxu0 0
    %1080 = vmatpush1.bf16.msra.mxu0 0
    %1081 = vmatprep.subr.bf16.mxu0 0
    %1082 = vmatpush1.bf16.msra.mxu0 0
    %1083 = vmatprep.subr.bf16.mxu0 0
    %1084 = vmatpush1.bf16.msra.mxu0 0
    %1085 = vmatprep.subr.bf16.mxu0 0
    %1086 = vmatpush1.bf16.msra.mxu0 0
    %1087 = vmatprep.subr.bf16.mxu0 0
    %1088 = vmatpush1.bf16.msra.mxu0 0
    %1089 = vmatprep.mubr.bf16.mxu0 0
    %1090 = vmatmul.mubr.bf16.gmra.mrb[0].mxu0 %v1052
    %v1091 = vpop.f32.mrb[0].mxu0
    %v1092 = vadd.f32 0.0, %v1091
    %v1093 = vpop.f32.mrb[0].mxu0
    %v1094 = vpop.f32.mrb[0].mxu0
    %v1095 = vadd.f32 0.0, %v1094
    %v1096 = vpop.f32.mrb[0].mxu0
    %1097 = vmatprep.mubr.bf16.mxu0 0
    %1098 = vmatmul.mubr.bf16.gmra.mrb[0].mxu0 %v1055
    %v1099 = vpop.f32.mrb[0].mxu0
    %v1100 = vadd.f32 0.0, %v1099
    %v1101 = vpop.f32.mrb[0].mxu0
    %v1102 = vpop.f32.mrb[0].mxu0
    %v1103 = vadd.f32 0.0, %v1102
    %v1104 = vpop.f32.mrb[0].mxu0
    %1105 = vdwg.mxu0
    %v1106 = vmul.f32 %v1092, %v632
    %v1107 = vmul.f32 %v1095, %v632
    %v1108 = vmul.f32 %v1100, %v632
    %v1109 = vmul.f32 %v1103, %v632
    %v1110 = vadd.f32 %v1106, %v642
    %v1111 = vadd.f32 %v1107, %v642
    %v1112 = vadd.f32 %v1108, %v642
    %v1113 = vadd.f32 %v1109, %v642
    %v1114 = vmax.f32 %v1110, 0.0
    %v1115 = vmax.f32 %v1111, 0.0
    %v1116 = vmax.f32 %v1112, 0.0
    %v1117 = vmax.f32 %v1113, 0.0
    %v1118 = vmax.f32 %v883, %v1114
    %v1119 = vmax.f32 %v884, %v1115
    %v1120 = vmax.f32 %v885, %v1116
    %v1121 = vmax.f32 %v886, %v1117
    %1122 = vset.pattern.permute.xlu0 3
    %1123 = vperm.xlu0 %1122, %v365
    %v1124 = vpop.permute.xlu0 %1123
    %1125 = vset.pattern.permute.xlu0 3
    %1126 = vperm.xlu0 %1125, %v366
    %v1127 = vpop.permute.xlu0 %1126
    %1128 = vset.pattern.permute.xlu0 3
    %1129 = vperm.xlu0 %1128, %v367
    %v1130 = vpop.permute.xlu0 %1129
    %1131 = vset.pattern.permute.xlu0 3
    %1132 = vperm.xlu0 %1131, %v368
    %v1133 = vpop.permute.xlu0 %1132
    %vm1134 = vcmp.eq.s32.totalorder %v370, %v1124
    %vm1135 = vcmp.eq.s32.totalorder %v370, %v1127
    %vm1136 = vcmp.eq.s32.totalorder %v370, %v1130
    %vm1137 = vcmp.eq.s32.totalorder %v370, %v1133
    %v1138 = vsel %vm1134, 1, 0
    %v1139 = vsel %vm1135, 1, 0
    %v1140 = vsel %vm1136, 1, 0
    %v1141 = vsel %vm1137, 1, 0
    %v1142 = vcvt.s32.f32 %v1138
    %v1143 = vcvt.s32.f32 %v1139
    %v1144 = vcvt.s32.f32 %v1140
    %v1145 = vcvt.s32.f32 %v1141
    %v1146 = vpack.c.bf16 %v1143, %v1142
    %v1147 = vpack.c.bf16 %v1145, %v1144
    %v1149 = vsel %vm397, %v1146, 0
    %v1152 = vsel %vm397, %v1147, 0
    %1154 = vmatprep.subr.bf16.mxu0 0
    %1155 = vmatpush1.bf16.msra.mxu0 %v353
    %1156 = vmatprep.subr.bf16.mxu0 0
    %1157 = vmatpush1.bf16.msra.mxu0 %v354
    %1158 = vmatprep.subr.bf16.mxu0 0
    %1159 = vmatpush1.bf16.msra.mxu0 0
    %1160 = vmatprep.subr.bf16.mxu0 0
    %1161 = vmatpush1.bf16.msra.mxu0 0
    %1162 = vmatprep.subr.bf16.mxu0 0
    %1163 = vmatpush1.bf16.msra.mxu0 0
    %1164 = vmatprep.subr.bf16.mxu0 0
    %1165 = vmatpush1.bf16.msra.mxu0 0
    %1166 = vmatprep.subr.bf16.mxu0 0
    %1167 = vmatpush1.bf16.msra.mxu0 0
    %1168 = vmatprep.subr.bf16.mxu0 0
    %1169 = vmatpush1.bf16.msra.mxu0 0
    %1170 = vmatprep.subr.bf16.mxu0 0
    %1171 = vmatpush1.bf16.msra.mxu0 0
    %1172 = vmatprep.subr.bf16.mxu0 0
    %1173 = vmatpush1.bf16.msra.mxu0 0
    %1174 = vmatprep.subr.bf16.mxu0 0
    %1175 = vmatpush1.bf16.msra.mxu0 0
    %1176 = vmatprep.subr.bf16.mxu0 0
    %1177 = vmatpush1.bf16.msra.mxu0 0
    %1178 = vmatprep.subr.bf16.mxu0 0
    %1179 = vmatpush1.bf16.msra.mxu0 0
    %1180 = vmatprep.subr.bf16.mxu0 0
    %1181 = vmatpush1.bf16.msra.mxu0 0
    %1182 = vmatprep.subr.bf16.mxu0 0
    %1183 = vmatpush1.bf16.msra.mxu0 0
    %1184 = vmatprep.subr.bf16.mxu0 0
    %1185 = vmatpush1.bf16.msra.mxu0 0
    %1186 = vmatprep.mubr.bf16.mxu0 0
    %1187 = vmatmul.mubr.bf16.gmra.mrb[0].mxu0 %v1149
    %v1188 = vpop.f32.mrb[0].mxu0
    %v1189 = vadd.f32 %v286, %v1188
    %v1190 = vpop.f32.mrb[0].mxu0
    %v1191 = vpop.f32.mrb[0].mxu0
    %v1192 = vadd.f32 %v289, %v1191
    %v1193 = vpop.f32.mrb[0].mxu0
    %1194 = vmatprep.mubr.bf16.mxu0 0
    %1195 = vmatmul.mubr.bf16.gmra.mrb[0].mxu0 %v1152
    %v1196 = vpop.f32.mrb[0].mxu0
    %v1197 = vadd.f32 %v294, %v1196
    %v1198 = vpop.f32.mrb[0].mxu0
    %v1199 = vpop.f32.mrb[0].mxu0
    %v1200 = vadd.f32 %v297, %v1199
    %v1201 = vpop.f32.mrb[0].mxu0
    %1202 = vdwg.mxu0
    %v1203 = vmul.f32 %v1189, %v457
    %v1204 = vmul.f32 %v1192, %v457
    %v1205 = vmul.f32 %v1197, %v457
    %v1206 = vmul.f32 %v1200, %v457
    %v1207 = vadd.f32 %v1203, %v467
    %v1208 = vadd.f32 %v1204, %v467
    %v1209 = vadd.f32 %v1205, %v467
    %v1210 = vadd.f32 %v1206, %v467
    %v1211 = vmax.f32 %v1207, 0.0
    %v1212 = vmax.f32 %v1208, 0.0
    %v1213 = vmax.f32 %v1209, 0.0
    %v1214 = vmax.f32 %v1210, 0.0
    %v1215 = vpack.c.bf16 %v1212, %v1211
    %v1216 = vpack.c.bf16 %v1214, %v1213
    %v1218 = vsel %vm485, %v1215, 0
    %v1221 = vsel %vm485, %v1216, 0
    %1223 = vmatprep.subr.bf16.mxu0 0
    %1224 = vmatpush1.bf16.msra.mxu0 %v483
    %1225 = vmatprep.subr.bf16.mxu0 0
    %1226 = vmatpush1.bf16.msra.mxu0 0
    %1227 = vmatprep.subr.bf16.mxu0 0
    %1228 = vmatpush1.bf16.msra.mxu0 0
    %1229 = vmatprep.subr.bf16.mxu0 0
    %1230 = vmatpush1.bf16.msra.mxu0 0
    %1231 = vmatprep.subr.bf16.mxu0 0
    %1232 = vmatpush1.bf16.msra.mxu0 0
    %1233 = vmatprep.subr.bf16.mxu0 0
    %1234 = vmatpush1.bf16.msra.mxu0 0
    %1235 = vmatprep.subr.bf16.mxu0 0
    %1236 = vmatpush1.bf16.msra.mxu0 0
    %1237 = vmatprep.subr.bf16.mxu0 0
    %1238 = vmatpush1.bf16.msra.mxu0 0
    %1239 = vmatprep.subr.bf16.mxu0 0
    %1240 = vmatpush1.bf16.msra.mxu0 0
    %1241 = vmatprep.subr.bf16.mxu0 0
    %1242 = vmatpush1.bf16.msra.mxu0 0
    %1243 = vmatprep.subr.bf16.mxu0 0
    %1244 = vmatpush1.bf16.msra.mxu0 0
    %1245 = vmatprep.subr.bf16.mxu0 0
    %1246 = vmatpush1.bf16.msra.mxu0 0
    %1247 = vmatprep.subr.bf16.mxu0 0
    %1248 = vmatpush1.bf16.msra.mxu0 0
    %1249 = vmatprep.subr.bf16.mxu0 0
    %1250 = vmatpush1.bf16.msra.mxu0 0
    %1251 = vmatprep.subr.bf16.mxu0 0
    %1252 = vmatpush1.bf16.msra.mxu0 0
    %1253 = vmatprep.subr.bf16.mxu0 0
    %1254 = vmatpush1.bf16.msra.mxu0 0
    %1255 = vmatprep.mubr.bf16.mxu0 0
    %1256 = vmatmul.mubr.bf16.gmra.mrb[0].mxu0 %v1218
    %v1257 = vpop.f32.mrb[0].mxu0
    %v1258 = vadd.f32 0.0, %v1257
    %v1259 = vpop.f32.mrb[0].mxu0
    %v1260 = vpop.f32.mrb[0].mxu0
    %v1261 = vadd.f32 0.0, %v1260
    %v1262 = vpop.f32.mrb[0].mxu0
    %1263 = vmatprep.mubr.bf16.mxu0 0
    %1264 = vmatmul.mubr.bf16.gmra.mrb[0].mxu0 %v1221
    %v1265 = vpop.f32.mrb[0].mxu0
    %v1266 = vadd.f32 0.0, %v1265
    %v1267 = vpop.f32.mrb[0].mxu0
    %v1268 = vpop.f32.mrb[0].mxu0
    %v1269 = vadd.f32 0.0, %v1268
    %v1270 = vpop.f32.mrb[0].mxu0
    %1271 = vdwg.mxu0
    %v1272 = vmul.f32 %v1258, %v545
    %v1273 = vmul.f32 %v1261, %v545
    %v1274 = vmul.f32 %v1266, %v545
    %v1275 = vmul.f32 %v1269, %v545
    %v1276 = vadd.f32 %v1272, %v555
    %v1277 = vadd.f32 %v1273, %v555
    %v1278 = vadd.f32 %v1274, %v555
    %v1279 = vadd.f32 %v1275, %v555
    %v1280 = vmax.f32 %v1276, 0.0
    %v1281 = vmax.f32 %v1277, 0.0
    %v1282 = vmax.f32 %v1278, 0.0
    %v1283 = vmax.f32 %v1279, 0.0
    %v1284 = vpack.c.bf16 %v1281, %v1280
    %v1285 = vpack.c.bf16 %v1283, %v1282
    %v1287 = vsel %vm485, %v1284, 0
    %v1290 = vsel %vm485, %v1285, 0
    %1292 = vmatprep.subr.bf16.mxu0 0
    %1293 = vmatpush1.bf16.msra.mxu0 %v571
    %1294 = vmatprep.subr.bf16.mxu0 0
    %1295 = vmatpush1.bf16.msra.mxu0 0
    %1296 = vmatprep.subr.bf16.mxu0 0
    %1297 = vmatpush1.bf16.msra.mxu0 0
    %1298 = vmatprep.subr.bf16.mxu0 0
    %1299 = vmatpush1.bf16.msra.mxu0 0
    %1300 = vmatprep.subr.bf16.mxu0 0
    %1301 = vmatpush1.bf16.msra.mxu0 0
    %1302 = vmatprep.subr.bf16.mxu0 0
    %1303 = vmatpush1.bf16.msra.mxu0 0
    %1304 = vmatprep.subr.bf16.mxu0 0
    %1305 = vmatpush1.bf16.msra.mxu0 0
    %1306 = vmatprep.subr.bf16.mxu0 0
    %1307 = vmatpush1.bf16.msra.mxu0 0
    %1308 = vmatprep.subr.bf16.mxu0 0
    %1309 = vmatpush1.bf16.msra.mxu0 0
    %1310 = vmatprep.subr.bf16.mxu0 0
    %1311 = vmatpush1.bf16.msra.mxu0 0
    %1312 = vmatprep.subr.bf16.mxu0 0
    %1313 = vmatpush1.bf16.msra.mxu0 0
    %1314 = vmatprep.subr.bf16.mxu0 0
    %1315 = vmatpush1.bf16.msra.mxu0 0
    %1316 = vmatprep.subr.bf16.mxu0 0
    %1317 = vmatpush1.bf16.msra.mxu0 0
    %1318 = vmatprep.subr.bf16.mxu0 0
    %1319 = vmatpush1.bf16.msra.mxu0 0
    %1320 = vmatprep.subr.bf16.mxu0 0
    %1321 = vmatpush1.bf16.msra.mxu0 0
    %1322 = vmatprep.subr.bf16.mxu0 0
    %1323 = vmatpush1.bf16.msra.mxu0 0
    %1324 = vmatprep.mubr.bf16.mxu0 0
    %1325 = vmatmul.mubr.bf16.gmra.mrb[0].mxu0 %v1287
    %v1326 = vpop.f32.mrb[0].mxu0
    %v1327 = vadd.f32 0.0, %v1326
    %v1328 = vpop.f32.mrb[0].mxu0
    %v1329 = vpop.f32.mrb[0].mxu0
    %v1330 = vadd.f32 0.0, %v1329
    %v1331 = vpop.f32.mrb[0].mxu0
    %1332 = vmatprep.mubr.bf16.mxu0 0
    %1333 = vmatmul.mubr.bf16.gmra.mrb[0].mxu0 %v1290
    %v1334 = vpop.f32.mrb[0].mxu0
    %v1335 = vadd.f32 0.0, %v1334
    %v1336 = vpop.f32.mrb[0].mxu0
    %v1337 = vpop.f32.mrb[0].mxu0
    %v1338 = vadd.f32 0.0, %v1337
    %v1339 = vpop.f32.mrb[0].mxu0
    %1340 = vdwg.mxu0
    %v1341 = vmul.f32 %v1327, %v632
    %v1342 = vmul.f32 %v1330, %v632
    %v1343 = vmul.f32 %v1335, %v632
    %v1344 = vmul.f32 %v1338, %v632
    %v1345 = vadd.f32 %v1341, %v642
    %v1346 = vadd.f32 %v1342, %v642
    %v1347 = vadd.f32 %v1343, %v642
    %v1348 = vadd.f32 %v1344, %v642
    %v1349 = vmax.f32 %v1345, 0.0
    %v1350 = vmax.f32 %v1346, 0.0
    %v1351 = vmax.f32 %v1347, 0.0
    %v1352 = vmax.f32 %v1348, 0.0
    %v1353 = vmax.f32 %v1118, %v1349
    %v1354 = vmax.f32 %v1119, %v1350
    %v1355 = vmax.f32 %v1120, %v1351
    %v1356 = vmax.f32 %v1121, %v1352
    %1357 = vset.pattern.permute.xlu0 4
    %1358 = vperm.xlu0 %1357, %v365
    %v1359 = vpop.permute.xlu0 %1358
    %1360 = vset.pattern.permute.xlu0 4
    %1361 = vperm.xlu0 %1360, %v366
    %v1362 = vpop.permute.xlu0 %1361
    %1363 = vset.pattern.permute.xlu0 4
    %1364 = vperm.xlu0 %1363, %v367
    %v1365 = vpop.permute.xlu0 %1364
    %1366 = vset.pattern.permute.xlu0 4
    %1367 = vperm.xlu0 %1366, %v368
    %v1368 = vpop.permute.xlu0 %1367
    %vm1369 = vcmp.eq.s32.totalorder %v370, %v1359
    %vm1370 = vcmp.eq.s32.totalorder %v370, %v1362
    %vm1371 = vcmp.eq.s32.totalorder %v370, %v1365
    %vm1372 = vcmp.eq.s32.totalorder %v370, %v1368
    %v1373 = vsel %vm1369, 1, 0
    %v1374 = vsel %vm1370, 1, 0
    %v1375 = vsel %vm1371, 1, 0
    %v1376 = vsel %vm1372, 1, 0
    %v1377 = vcvt.s32.f32 %v1373
    %v1378 = vcvt.s32.f32 %v1374
    %v1379 = vcvt.s32.f32 %v1375
    %v1380 = vcvt.s32.f32 %v1376
    %v1381 = vpack.c.bf16 %v1378, %v1377
    %v1382 = vpack.c.bf16 %v1380, %v1379
    %v1384 = vsel %vm397, %v1381, 0
    %v1387 = vsel %vm397, %v1382, 0
    %1389 = vmatprep.subr.bf16.mxu0 0
    %1390 = vmatpush1.bf16.msra.mxu0 %v353
    %1391 = vmatprep.subr.bf16.mxu0 0
    %1392 = vmatpush1.bf16.msra.mxu0 %v354
    %1393 = vmatprep.subr.bf16.mxu0 0
    %1394 = vmatpush1.bf16.msra.mxu0 0
    %1395 = vmatprep.subr.bf16.mxu0 0
    %1396 = vmatpush1.bf16.msra.mxu0 0
    %1397 = vmatprep.subr.bf16.mxu0 0
    %1398 = vmatpush1.bf16.msra.mxu0 0
    %1399 = vmatprep.subr.bf16.mxu0 0
    %1400 = vmatpush1.bf16.msra.mxu0 0
    %1401 = vmatprep.subr.bf16.mxu0 0
    %1402 = vmatpush1.bf16.msra.mxu0 0
    %1403 = vmatprep.subr.bf16.mxu0 0
    %1404 = vmatpush1.bf16.msra.mxu0 0
    %1405 = vmatprep.subr.bf16.mxu0 0
    %1406 = vmatpush1.bf16.msra.mxu0 0
    %1407 = vmatprep.subr.bf16.mxu0 0
    %1408 = vmatpush1.bf16.msra.mxu0 0
    %1409 = vmatprep.subr.bf16.mxu0 0
    %1410 = vmatpush1.bf16.msra.mxu0 0
    %1411 = vmatprep.subr.bf16.mxu0 0
    %1412 = vmatpush1.bf16.msra.mxu0 0
    %1413 = vmatprep.subr.bf16.mxu0 0
    %1414 = vmatpush1.bf16.msra.mxu0 0
    %1415 = vmatprep.subr.bf16.mxu0 0
    %1416 = vmatpush1.bf16.msra.mxu0 0
    %1417 = vmatprep.subr.bf16.mxu0 0
    %1418 = vmatpush1.bf16.msra.mxu0 0
    %1419 = vmatprep.subr.bf16.mxu0 0
    %1420 = vmatpush1.bf16.msra.mxu0 0
    %1421 = vmatprep.mubr.bf16.mxu0 0
    %1422 = vmatmul.mubr.bf16.gmra.mrb[0].mxu0 %v1384
    %v1423 = vpop.f32.mrb[0].mxu0
    %v1424 = vadd.f32 %v286, %v1423
    %v1425 = vpop.f32.mrb[0].mxu0
    %v1426 = vpop.f32.mrb[0].mxu0
    %v1427 = vadd.f32 %v289, %v1426
    %v1428 = vpop.f32.mrb[0].mxu0
    %1429 = vmatprep.mubr.bf16.mxu0 0
    %1430 = vmatmul.mubr.bf16.gmra.mrb[0].mxu0 %v1387
    %v1431 = vpop.f32.mrb[0].mxu0
    %v1432 = vadd.f32 %v294, %v1431
    %v1433 = vpop.f32.mrb[0].mxu0
    %v1434 = vpop.f32.mrb[0].mxu0
    %v1435 = vadd.f32 %v297, %v1434
    %v1436 = vpop.f32.mrb[0].mxu0
    %1437 = vdwg.mxu0
    %v1438 = vmul.f32 %v1424, %v457
    %v1439 = vmul.f32 %v1427, %v457
    %v1440 = vmul.f32 %v1432, %v457
    %v1441 = vmul.f32 %v1435, %v457
    %v1442 = vadd.f32 %v1438, %v467
    %v1443 = vadd.f32 %v1439, %v467
    %v1444 = vadd.f32 %v1440, %v467
    %v1445 = vadd.f32 %v1441, %v467
    %v1446 = vmax.f32 %v1442, 0.0
    %v1447 = vmax.f32 %v1443, 0.0
    %v1448 = vmax.f32 %v1444, 0.0
    %v1449 = vmax.f32 %v1445, 0.0
    %v1450 = vpack.c.bf16 %v1447, %v1446
    %v1451 = vpack.c.bf16 %v1449, %v1448
    %v1453 = vsel %vm485, %v1450, 0
    %v1456 = vsel %vm485, %v1451, 0
    %1458 = vmatprep.subr.bf16.mxu0 0
    %1459 = vmatpush1.bf16.msra.mxu0 %v483
    %1460 = vmatprep.subr.bf16.mxu0 0
    %1461 = vmatpush1.bf16.msra.mxu0 0
    %1462 = vmatprep.subr.bf16.mxu0 0
    %1463 = vmatpush1.bf16.msra.mxu0 0
    %1464 = vmatprep.subr.bf16.mxu0 0
    %1465 = vmatpush1.bf16.msra.mxu0 0
    %1466 = vmatprep.subr.bf16.mxu0 0
    %1467 = vmatpush1.bf16.msra.mxu0 0
    %1468 = vmatprep.subr.bf16.mxu0 0
    %1469 = vmatpush1.bf16.msra.mxu0 0
    %1470 = vmatprep.subr.bf16.mxu0 0
    %1471 = vmatpush1.bf16.msra.mxu0 0
    %1472 = vmatprep.subr.bf16.mxu0 0
    %1473 = vmatpush1.bf16.msra.mxu0 0
    %1474 = vmatprep.subr.bf16.mxu0 0
    %1475 = vmatpush1.bf16.msra.mxu0 0
    %1476 = vmatprep.subr.bf16.mxu0 0
    %1477 = vmatpush1.bf16.msra.mxu0 0
    %1478 = vmatprep.subr.bf16.mxu0 0
    %1479 = vmatpush1.bf16.msra.mxu0 0
    %1480 = vmatprep.subr.bf16.mxu0 0
    %1481 = vmatpush1.bf16.msra.mxu0 0
    %1482 = vmatprep.subr.bf16.mxu0 0
    %1483 = vmatpush1.bf16.msra.mxu0 0
    %1484 = vmatprep.subr.bf16.mxu0 0
    %1485 = vmatpush1.bf16.msra.mxu0 0
    %1486 = vmatprep.subr.bf16.mxu0 0
    %1487 = vmatpush1.bf16.msra.mxu0 0
    %1488 = vmatprep.subr.bf16.mxu0 0
    %1489 = vmatpush1.bf16.msra.mxu0 0
    %1490 = vmatprep.mubr.bf16.mxu0 0
    %1491 = vmatmul.mubr.bf16.gmra.mrb[0].mxu0 %v1453
    %v1492 = vpop.f32.mrb[0].mxu0
    %v1493 = vadd.f32 0.0, %v1492
    %v1494 = vpop.f32.mrb[0].mxu0
    %v1495 = vpop.f32.mrb[0].mxu0
    %v1496 = vadd.f32 0.0, %v1495
    %v1497 = vpop.f32.mrb[0].mxu0
    %1498 = vmatprep.mubr.bf16.mxu0 0
    %1499 = vmatmul.mubr.bf16.gmra.mrb[0].mxu0 %v1456
    %v1500 = vpop.f32.mrb[0].mxu0
    %v1501 = vadd.f32 0.0, %v1500
    %v1502 = vpop.f32.mrb[0].mxu0
    %v1503 = vpop.f32.mrb[0].mxu0
    %v1504 = vadd.f32 0.0, %v1503
    %v1505 = vpop.f32.mrb[0].mxu0
    %1506 = vdwg.mxu0
    %v1507 = vmul.f32 %v1493, %v545
    %v1508 = vmul.f32 %v1496, %v545
    %v1509 = vmul.f32 %v1501, %v545
    %v1510 = vmul.f32 %v1504, %v545
    %v1511 = vadd.f32 %v1507, %v555
    %v1512 = vadd.f32 %v1508, %v555
    %v1513 = vadd.f32 %v1509, %v555
    %v1514 = vadd.f32 %v1510, %v555
    %v1515 = vmax.f32 %v1511, 0.0
    %v1516 = vmax.f32 %v1512, 0.0
    %v1517 = vmax.f32 %v1513, 0.0
    %v1518 = vmax.f32 %v1514, 0.0
    %v1519 = vpack.c.bf16 %v1516, %v1515
    %v1520 = vpack.c.bf16 %v1518, %v1517
    %v1522 = vsel %vm485, %v1519, 0
    %v1525 = vsel %vm485, %v1520, 0
    %1527 = vmatprep.subr.bf16.mxu0 0
    %1528 = vmatpush1.bf16.msra.mxu0 %v571
    %1529 = vmatprep.subr.bf16.mxu0 0
    %1530 = vmatpush1.bf16.msra.mxu0 0
    %1531 = vmatprep.subr.bf16.mxu0 0
    %1532 = vmatpush1.bf16.msra.mxu0 0
    %1533 = vmatprep.subr.bf16.mxu0 0
    %1534 = vmatpush1.bf16.msra.mxu0 0
    %1535 = vmatprep.subr.bf16.mxu0 0
    %1536 = vmatpush1.bf16.msra.mxu0 0
    %1537 = vmatprep.subr.bf16.mxu0 0
    %1538 = vmatpush1.bf16.msra.mxu0 0
    %1539 = vmatprep.subr.bf16.mxu0 0
    %1540 = vmatpush1.bf16.msra.mxu0 0
    %1541 = vmatprep.subr.bf16.mxu0 0
    %1542 = vmatpush1.bf16.msra.mxu0 0
    %1543 = vmatprep.subr.bf16.mxu0 0
    %1544 = vmatpush1.bf16.msra.mxu0 0
    %1545 = vmatprep.subr.bf16.mxu0 0
    %1546 = vmatpush1.bf16.msra.mxu0 0
    %1547 = vmatprep.subr.bf16.mxu0 0
    %1548 = vmatpush1.bf16.msra.mxu0 0
    %1549 = vmatprep.subr.bf16.mxu0 0
    %1550 = vmatpush1.bf16.msra.mxu0 0
    %1551 = vmatprep.subr.bf16.mxu0 0
    %1552 = vmatpush1.bf16.msra.mxu0 0
    %1553 = vmatprep.subr.bf16.mxu0 0
    %1554 = vmatpush1.bf16.msra.mxu0 0
    %1555 = vmatprep.subr.bf16.mxu0 0
    %1556 = vmatpush1.bf16.msra.mxu0 0
    %1557 = vmatprep.subr.bf16.mxu0 0
    %1558 = vmatpush1.bf16.msra.mxu0 0
    %1559 = vmatprep.mubr.bf16.mxu0 0
    %1560 = vmatmul.mubr.bf16.gmra.mrb[0].mxu0 %v1522
    %v1561 = vpop.f32.mrb[0].mxu0
    %v1562 = vadd.f32 0.0, %v1561
    %v1563 = vpop.f32.mrb[0].mxu0
    %v1564 = vpop.f32.mrb[0].mxu0
    %v1565 = vadd.f32 0.0, %v1564
    %v1566 = vpop.f32.mrb[0].mxu0
    %1567 = vmatprep.mubr.bf16.mxu0 0
    %1568 = vmatmul.mubr.bf16.gmra.mrb[0].mxu0 %v1525
    %v1569 = vpop.f32.mrb[0].mxu0
    %v1570 = vadd.f32 0.0, %v1569
    %v1571 = vpop.f32.mrb[0].mxu0
    %v1572 = vpop.f32.mrb[0].mxu0
    %v1573 = vadd.f32 0.0, %v1572
    %v1574 = vpop.f32.mrb[0].mxu0
    %1575 = vdwg.mxu0
    %v1576 = vmul.f32 %v1562, %v632
    %v1577 = vmul.f32 %v1565, %v632
    %v1578 = vmul.f32 %v1570, %v632
    %v1579 = vmul.f32 %v1573, %v632
    %v1580 = vadd.f32 %v1576, %v642
    %v1581 = vadd.f32 %v1577, %v642
    %v1582 = vadd.f32 %v1578, %v642
    %v1583 = vadd.f32 %v1579, %v642
    %v1584 = vmax.f32 %v1580, 0.0
    %v1585 = vmax.f32 %v1581, 0.0
    %v1586 = vmax.f32 %v1582, 0.0
    %v1587 = vmax.f32 %v1583, 0.0
    %v1588 = vmax.f32 %v1353, %v1584
    %v1589 = vmax.f32 %v1354, %v1585
    %v1590 = vmax.f32 %v1355, %v1586
    %v1591 = vmax.f32 %v1356, %v1587
    %1592 = vset.pattern.permute.xlu0 5
    %1593 = vperm.xlu0 %1592, %v365
    %v1594 = vpop.permute.xlu0 %1593
    %1595 = vset.pattern.permute.xlu0 5
    %1596 = vperm.xlu0 %1595, %v366
    %v1597 = vpop.permute.xlu0 %1596
    %1598 = vset.pattern.permute.xlu0 5
    %1599 = vperm.xlu0 %1598, %v367
    %v1600 = vpop.permute.xlu0 %1599
    %1601 = vset.pattern.permute.xlu0 5
    %1602 = vperm.xlu0 %1601, %v368
    %v1603 = vpop.permute.xlu0 %1602
    %vm1604 = vcmp.eq.s32.totalorder %v370, %v1594
    %vm1605 = vcmp.eq.s32.totalorder %v370, %v1597
    %vm1606 = vcmp.eq.s32.totalorder %v370, %v1600
    %vm1607 = vcmp.eq.s32.totalorder %v370, %v1603
    %v1608 = vsel %vm1604, 1, 0
    %v1609 = vsel %vm1605, 1, 0
    %v1610 = vsel %vm1606, 1, 0
    %v1611 = vsel %vm1607, 1, 0
    %v1612 = vcvt.s32.f32 %v1608
    %v1613 = vcvt.s32.f32 %v1609
    %v1614 = vcvt.s32.f32 %v1610
    %v1615 = vcvt.s32.f32 %v1611
    %v1616 = vpack.c.bf16 %v1613, %v1612
    %v1617 = vpack.c.bf16 %v1615, %v1614
    %v1619 = vsel %vm397, %v1616, 0
    %v1622 = vsel %vm397, %v1617, 0
    %1624 = vmatprep.subr.bf16.mxu0 0
    %1625 = vmatpush1.bf16.msra.mxu0 %v353
    %1626 = vmatprep.subr.bf16.mxu0 0
    %1627 = vmatpush1.bf16.msra.mxu0 %v354
    %1628 = vmatprep.subr.bf16.mxu0 0
    %1629 = vmatpush1.bf16.msra.mxu0 0
    %1630 = vmatprep.subr.bf16.mxu0 0
    %1631 = vmatpush1.bf16.msra.mxu0 0
    %1632 = vmatprep.subr.bf16.mxu0 0
    %1633 = vmatpush1.bf16.msra.mxu0 0
    %1634 = vmatprep.subr.bf16.mxu0 0
    %1635 = vmatpush1.bf16.msra.mxu0 0
    %1636 = vmatprep.subr.bf16.mxu0 0
    %1637 = vmatpush1.bf16.msra.mxu0 0
    %1638 = vmatprep.subr.bf16.mxu0 0
    %1639 = vmatpush1.bf16.msra.mxu0 0
    %1640 = vmatprep.subr.bf16.mxu0 0
    %1641 = vmatpush1.bf16.msra.mxu0 0
    %1642 = vmatprep.subr.bf16.mxu0 0
    %1643 = vmatpush1.bf16.msra.mxu0 0
    %1644 = vmatprep.subr.bf16.mxu0 0
    %1645 = vmatpush1.bf16.msra.mxu0 0
    %1646 = vmatprep.subr.bf16.mxu0 0
    %1647 = vmatpush1.bf16.msra.mxu0 0
    %1648 = vmatprep.subr.bf16.mxu0 0
    %1649 = vmatpush1.bf16.msra.mxu0 0
    %1650 = vmatprep.subr.bf16.mxu0 0
    %1651 = vmatpush1.bf16.msra.mxu0 0
    %1652 = vmatprep.subr.bf16.mxu0 0
    %1653 = vmatpush1.bf16.msra.mxu0 0
    %1654 = vmatprep.subr.bf16.mxu0 0
    %1655 = vmatpush1.bf16.msra.mxu0 0
    %1656 = vmatprep.mubr.bf16.mxu0 0
    %1657 = vmatmul.mubr.bf16.gmra.mrb[0].mxu0 %v1619
    %v1658 = vpop.f32.mrb[0].mxu0
    %v1659 = vadd.f32 %v286, %v1658
    %v1660 = vpop.f32.mrb[0].mxu0
    %v1661 = vpop.f32.mrb[0].mxu0
    %v1662 = vadd.f32 %v289, %v1661
    %v1663 = vpop.f32.mrb[0].mxu0
    %1664 = vmatprep.mubr.bf16.mxu0 0
    %1665 = vmatmul.mubr.bf16.gmra.mrb[0].mxu0 %v1622
    %v1666 = vpop.f32.mrb[0].mxu0
    %v1667 = vadd.f32 %v294, %v1666
    %v1668 = vpop.f32.mrb[0].mxu0
    %v1669 = vpop.f32.mrb[0].mxu0
    %v1670 = vadd.f32 %v297, %v1669
    %v1671 = vpop.f32.mrb[0].mxu0
    %1672 = vdwg.mxu0
    %v1673 = vmul.f32 %v1659, %v457
    %v1674 = vmul.f32 %v1662, %v457
    %v1675 = vmul.f32 %v1667, %v457
    %v1676 = vmul.f32 %v1670, %v457
    %v1677 = vadd.f32 %v1673, %v467
    %v1678 = vadd.f32 %v1674, %v467
    %v1679 = vadd.f32 %v1675, %v467
    %v1680 = vadd.f32 %v1676, %v467
    %v1681 = vmax.f32 %v1677, 0.0
    %v1682 = vmax.f32 %v1678, 0.0
    %v1683 = vmax.f32 %v1679, 0.0
    %v1684 = vmax.f32 %v1680, 0.0
    %v1685 = vpack.c.bf16 %v1682, %v1681
    %v1686 = vpack.c.bf16 %v1684, %v1683
    %v1688 = vsel %vm485, %v1685, 0
    %v1691 = vsel %vm485, %v1686, 0
    %1693 = vmatprep.subr.bf16.mxu0 0
    %1694 = vmatpush1.bf16.msra.mxu0 %v483
    %1695 = vmatprep.subr.bf16.mxu0 0
    %1696 = vmatpush1.bf16.msra.mxu0 0
    %1697 = vmatprep.subr.bf16.mxu0 0
    %1698 = vmatpush1.bf16.msra.mxu0 0
    %1699 = vmatprep.subr.bf16.mxu0 0
    %1700 = vmatpush1.bf16.msra.mxu0 0
    %1701 = vmatprep.subr.bf16.mxu0 0
    %1702 = vmatpush1.bf16.msra.mxu0 0
    %1703 = vmatprep.subr.bf16.mxu0 0
    %1704 = vmatpush1.bf16.msra.mxu0 0
    %1705 = vmatprep.subr.bf16.mxu0 0
    %1706 = vmatpush1.bf16.msra.mxu0 0
    %1707 = vmatprep.subr.bf16.mxu0 0
    %1708 = vmatpush1.bf16.msra.mxu0 0
    %1709 = vmatprep.subr.bf16.mxu0 0
    %1710 = vmatpush1.bf16.msra.mxu0 0
    %1711 = vmatprep.subr.bf16.mxu0 0
    %1712 = vmatpush1.bf16.msra.mxu0 0
    %1713 = vmatprep.subr.bf16.mxu0 0
    %1714 = vmatpush1.bf16.msra.mxu0 0
    %1715 = vmatprep.subr.bf16.mxu0 0
    %1716 = vmatpush1.bf16.msra.mxu0 0
    %1717 = vmatprep.subr.bf16.mxu0 0
    %1718 = vmatpush1.bf16.msra.mxu0 0
    %1719 = vmatprep.subr.bf16.mxu0 0
    %1720 = vmatpush1.bf16.msra.mxu0 0
    %1721 = vmatprep.subr.bf16.mxu0 0
    %1722 = vmatpush1.bf16.msra.mxu0 0
    %1723 = vmatprep.subr.bf16.mxu0 0
    %1724 = vmatpush1.bf16.msra.mxu0 0
    %1725 = vmatprep.mubr.bf16.mxu0 0
    %1726 = vmatmul.mubr.bf16.gmra.mrb[0].mxu0 %v1688
    %v1727 = vpop.f32.mrb[0].mxu0
    %v1728 = vadd.f32 0.0, %v1727
    %v1729 = vpop.f32.mrb[0].mxu0
    %v1730 = vpop.f32.mrb[0].mxu0
    %v1731 = vadd.f32 0.0, %v1730
    %v1732 = vpop.f32.mrb[0].mxu0
    %1733 = vmatprep.mubr.bf16.mxu0 0
    %1734 = vmatmul.mubr.bf16.gmra.mrb[0].mxu0 %v1691
    %v1735 = vpop.f32.mrb[0].mxu0
    %v1736 = vadd.f32 0.0, %v1735
    %v1737 = vpop.f32.mrb[0].mxu0
    %v1738 = vpop.f32.mrb[0].mxu0
    %v1739 = vadd.f32 0.0, %v1738
    %v1740 = vpop.f32.mrb[0].mxu0
    %1741 = vdwg.mxu0
    %v1742 = vmul.f32 %v1728, %v545
    %v1743 = vmul.f32 %v1731, %v545
    %v1744 = vmul.f32 %v1736, %v545
    %v1745 = vmul.f32 %v1739, %v545
    %v1746 = vadd.f32 %v1742, %v555
    %v1747 = vadd.f32 %v1743, %v555
    %v1748 = vadd.f32 %v1744, %v555
    %v1749 = vadd.f32 %v1745, %v555
    %v1750 = vmax.f32 %v1746, 0.0
    %v1751 = vmax.f32 %v1747, 0.0
    %v1752 = vmax.f32 %v1748, 0.0
    %v1753 = vmax.f32 %v1749, 0.0
    %v1754 = vpack.c.bf16 %v1751, %v1750
    %v1755 = vpack.c.bf16 %v1753, %v1752
    %v1757 = vsel %vm485, %v1754, 0
    %v1760 = vsel %vm485, %v1755, 0
    %1762 = vmatprep.subr.bf16.mxu0 0
    %1763 = vmatpush1.bf16.msra.mxu0 %v571
    %1764 = vmatprep.subr.bf16.mxu0 0
    %1765 = vmatpush1.bf16.msra.mxu0 0
    %1766 = vmatprep.subr.bf16.mxu0 0
    %1767 = vmatpush1.bf16.msra.mxu0 0
    %1768 = vmatprep.subr.bf16.mxu0 0
    %1769 = vmatpush1.bf16.msra.mxu0 0
    %1770 = vmatprep.subr.bf16.mxu0 0
    %1771 = vmatpush1.bf16.msra.mxu0 0
    %1772 = vmatprep.subr.bf16.mxu0 0
    %1773 = vmatpush1.bf16.msra.mxu0 0
    %1774 = vmatprep.subr.bf16.mxu0 0
    %1775 = vmatpush1.bf16.msra.mxu0 0
    %1776 = vmatprep.subr.bf16.mxu0 0
    %1777 = vmatpush1.bf16.msra.mxu0 0
    %1778 = vmatprep.subr.bf16.mxu0 0
    %1779 = vmatpush1.bf16.msra.mxu0 0
    %1780 = vmatprep.subr.bf16.mxu0 0
    %1781 = vmatpush1.bf16.msra.mxu0 0
    %1782 = vmatprep.subr.bf16.mxu0 0
    %1783 = vmatpush1.bf16.msra.mxu0 0
    %1784 = vmatprep.subr.bf16.mxu0 0
    %1785 = vmatpush1.bf16.msra.mxu0 0
    %1786 = vmatprep.subr.bf16.mxu0 0
    %1787 = vmatpush1.bf16.msra.mxu0 0
    %1788 = vmatprep.subr.bf16.mxu0 0
    %1789 = vmatpush1.bf16.msra.mxu0 0
    %1790 = vmatprep.subr.bf16.mxu0 0
    %1791 = vmatpush1.bf16.msra.mxu0 0
    %1792 = vmatprep.subr.bf16.mxu0 0
    %1793 = vmatpush1.bf16.msra.mxu0 0
    %1794 = vmatprep.mubr.bf16.mxu0 0
    %1795 = vmatmul.mubr.bf16.gmra.mrb[0].mxu0 %v1757
    %v1796 = vpop.f32.mrb[0].mxu0
    %v1797 = vadd.f32 0.0, %v1796
    %v1798 = vpop.f32.mrb[0].mxu0
    %v1799 = vpop.f32.mrb[0].mxu0
    %v1800 = vadd.f32 0.0, %v1799
    %v1801 = vpop.f32.mrb[0].mxu0
    %1802 = vmatprep.mubr.bf16.mxu0 0
    %1803 = vmatmul.mubr.bf16.gmra.mrb[0].mxu0 %v1760
    %v1804 = vpop.f32.mrb[0].mxu0
    %v1805 = vadd.f32 0.0, %v1804
    %v1806 = vpop.f32.mrb[0].mxu0
    %v1807 = vpop.f32.mrb[0].mxu0
    %v1808 = vadd.f32 0.0, %v1807
    %v1809 = vpop.f32.mrb[0].mxu0
    %1810 = vdwg.mxu0
    %v1811 = vmul.f32 %v1797, %v632
    %v1812 = vmul.f32 %v1800, %v632
    %v1813 = vmul.f32 %v1805, %v632
    %v1814 = vmul.f32 %v1808, %v632
    %v1815 = vadd.f32 %v1811, %v642
    %v1816 = vadd.f32 %v1812, %v642
    %v1817 = vadd.f32 %v1813, %v642
    %v1818 = vadd.f32 %v1814, %v642
    %v1819 = vmax.f32 %v1815, 0.0
    %v1820 = vmax.f32 %v1816, 0.0
    %v1821 = vmax.f32 %v1817, 0.0
    %v1822 = vmax.f32 %v1818, 0.0
    %v1823 = vmax.f32 %v1588, %v1819
    %v1824 = vmax.f32 %v1589, %v1820
    %v1825 = vmax.f32 %v1590, %v1821
    %v1826 = vmax.f32 %v1591, %v1822
    %1827 = vset.pattern.permute.xlu0 6
    %1828 = vperm.xlu0 %1827, %v365
    %v1829 = vpop.permute.xlu0 %1828
    %1830 = vset.pattern.permute.xlu0 6
    %1831 = vperm.xlu0 %1830, %v366
    %v1832 = vpop.permute.xlu0 %1831
    %1833 = vset.pattern.permute.xlu0 6
    %1834 = vperm.xlu0 %1833, %v367
    %v1835 = vpop.permute.xlu0 %1834
    %1836 = vset.pattern.permute.xlu0 6
    %1837 = vperm.xlu0 %1836, %v368
    %v1838 = vpop.permute.xlu0 %1837
    %vm1839 = vcmp.eq.s32.totalorder %v370, %v1829
    %vm1840 = vcmp.eq.s32.totalorder %v370, %v1832
    %vm1841 = vcmp.eq.s32.totalorder %v370, %v1835
    %vm1842 = vcmp.eq.s32.totalorder %v370, %v1838
    %v1843 = vsel %vm1839, 1, 0
    %v1844 = vsel %vm1840, 1, 0
    %v1845 = vsel %vm1841, 1, 0
    %v1846 = vsel %vm1842, 1, 0
    %v1847 = vcvt.s32.f32 %v1843
    %v1848 = vcvt.s32.f32 %v1844
    %v1849 = vcvt.s32.f32 %v1845
    %v1850 = vcvt.s32.f32 %v1846
    %v1851 = vpack.c.bf16 %v1848, %v1847
    %v1852 = vpack.c.bf16 %v1850, %v1849
    %v1854 = vsel %vm397, %v1851, 0
    %v1857 = vsel %vm397, %v1852, 0
    %1859 = vmatprep.subr.bf16.mxu0 0
    %1860 = vmatpush1.bf16.msra.mxu0 %v353
    %1861 = vmatprep.subr.bf16.mxu0 0
    %1862 = vmatpush1.bf16.msra.mxu0 %v354
    %1863 = vmatprep.subr.bf16.mxu0 0
    %1864 = vmatpush1.bf16.msra.mxu0 0
    %1865 = vmatprep.subr.bf16.mxu0 0
    %1866 = vmatpush1.bf16.msra.mxu0 0
    %1867 = vmatprep.subr.bf16.mxu0 0
    %1868 = vmatpush1.bf16.msra.mxu0 0
    %1869 = vmatprep.subr.bf16.mxu0 0
    %1870 = vmatpush1.bf16.msra.mxu0 0
    %1871 = vmatprep.subr.bf16.mxu0 0
    %1872 = vmatpush1.bf16.msra.mxu0 0
    %1873 = vmatprep.subr.bf16.mxu0 0
    %1874 = vmatpush1.bf16.msra.mxu0 0
    %1875 = vmatprep.subr.bf16.mxu0 0
    %1876 = vmatpush1.bf16.msra.mxu0 0
    %1877 = vmatprep.subr.bf16.mxu0 0
    %1878 = vmatpush1.bf16.msra.mxu0 0
    %1879 = vmatprep.subr.bf16.mxu0 0
    %1880 = vmatpush1.bf16.msra.mxu0 0
    %1881 = vmatprep.subr.bf16.mxu0 0
    %1882 = vmatpush1.bf16.msra.mxu0 0
    %1883 = vmatprep.subr.bf16.mxu0 0
    %1884 = vmatpush1.bf16.msra.mxu0 0
    %1885 = vmatprep.subr.bf16.mxu0 0
    %1886 = vmatpush1.bf16.msra.mxu0 0
    %1887 = vmatprep.subr.bf16.mxu0 0
    %1888 = vmatpush1.bf16.msra.mxu0 0
    %1889 = vmatprep.subr.bf16.mxu0 0
    %1890 = vmatpush1.bf16.msra.mxu0 0
    %1891 = vmatprep.mubr.bf16.mxu0 0
    %1892 = vmatmul.mubr.bf16.gmra.mrb[0].mxu0 %v1854
    %v1893 = vpop.f32.mrb[0].mxu0
    %v1894 = vadd.f32 %v286, %v1893
    %v1895 = vpop.f32.mrb[0].mxu0
    %v1896 = vpop.f32.mrb[0].mxu0
    %v1897 = vadd.f32 %v289, %v1896
    %v1898 = vpop.f32.mrb[0].mxu0
    %1899 = vmatprep.mubr.bf16.mxu0 0
    %1900 = vmatmul.mubr.bf16.gmra.mrb[0].mxu0 %v1857
    %v1901 = vpop.f32.mrb[0].mxu0
    %v1902 = vadd.f32 %v294, %v1901
    %v1903 = vpop.f32.mrb[0].mxu0
    %v1904 = vpop.f32.mrb[0].mxu0
    %v1905 = vadd.f32 %v297, %v1904
    %v1906 = vpop.f32.mrb[0].mxu0
    %1907 = vdwg.mxu0
    %v1908 = vmul.f32 %v1894, %v457
    %v1909 = vmul.f32 %v1897, %v457
    %v1910 = vmul.f32 %v1902, %v457
    %v1911 = vmul.f32 %v1905, %v457
    %v1912 = vadd.f32 %v1908, %v467
    %v1913 = vadd.f32 %v1909, %v467
    %v1914 = vadd.f32 %v1910, %v467
    %v1915 = vadd.f32 %v1911, %v467
    %v1916 = vmax.f32 %v1912, 0.0
    %v1917 = vmax.f32 %v1913, 0.0
    %v1918 = vmax.f32 %v1914, 0.0
    %v1919 = vmax.f32 %v1915, 0.0
    %v1920 = vpack.c.bf16 %v1917, %v1916
    %v1921 = vpack.c.bf16 %v1919, %v1918
    %v1923 = vsel %vm485, %v1920, 0
    %v1926 = vsel %vm485, %v1921, 0
    %1928 = vmatprep.subr.bf16.mxu0 0
    %1929 = vmatpush1.bf16.msra.mxu0 %v483
    %1930 = vmatprep.subr.bf16.mxu0 0
    %1931 = vmatpush1.bf16.msra.mxu0 0
    %1932 = vmatprep.subr.bf16.mxu0 0
    %1933 = vmatpush1.bf16.msra.mxu0 0
    %1934 = vmatprep.subr.bf16.mxu0 0
    %1935 = vmatpush1.bf16.msra.mxu0 0
    %1936 = vmatprep.subr.bf16.mxu0 0
    %1937 = vmatpush1.bf16.msra.mxu0 0
    %1938 = vmatprep.subr.bf16.mxu0 0
    %1939 = vmatpush1.bf16.msra.mxu0 0
    %1940 = vmatprep.subr.bf16.mxu0 0
    %1941 = vmatpush1.bf16.msra.mxu0 0
    %1942 = vmatprep.subr.bf16.mxu0 0
    %1943 = vmatpush1.bf16.msra.mxu0 0
    %1944 = vmatprep.subr.bf16.mxu0 0
    %1945 = vmatpush1.bf16.msra.mxu0 0
    %1946 = vmatprep.subr.bf16.mxu0 0
    %1947 = vmatpush1.bf16.msra.mxu0 0
    %1948 = vmatprep.subr.bf16.mxu0 0
    %1949 = vmatpush1.bf16.msra.mxu0 0
    %1950 = vmatprep.subr.bf16.mxu0 0
    %1951 = vmatpush1.bf16.msra.mxu0 0
    %1952 = vmatprep.subr.bf16.mxu0 0
    %1953 = vmatpush1.bf16.msra.mxu0 0
    %1954 = vmatprep.subr.bf16.mxu0 0
    %1955 = vmatpush1.bf16.msra.mxu0 0
    %1956 = vmatprep.subr.bf16.mxu0 0
    %1957 = vmatpush1.bf16.msra.mxu0 0
    %1958 = vmatprep.subr.bf16.mxu0 0
    %1959 = vmatpush1.bf16.msra.mxu0 0
    %1960 = vmatprep.mubr.bf16.mxu0 0
    %1961 = vmatmul.mubr.bf16.gmra.mrb[0].mxu0 %v1923
    %v1962 = vpop.f32.mrb[0].mxu0
    %v1963 = vadd.f32 0.0, %v1962
    %v1964 = vpop.f32.mrb[0].mxu0
    %v1965 = vpop.f32.mrb[0].mxu0
    %v1966 = vadd.f32 0.0, %v1965
    %v1967 = vpop.f32.mrb[0].mxu0
    %1968 = vmatprep.mubr.bf16.mxu0 0
    %1969 = vmatmul.mubr.bf16.gmra.mrb[0].mxu0 %v1926
    %v1970 = vpop.f32.mrb[0].mxu0
    %v1971 = vadd.f32 0.0, %v1970
    %v1972 = vpop.f32.mrb[0].mxu0
    %v1973 = vpop.f32.mrb[0].mxu0
    %v1974 = vadd.f32 0.0, %v1973
    %v1975 = vpop.f32.mrb[0].mxu0
    %1976 = vdwg.mxu0
    %v1977 = vmul.f32 %v1963, %v545
    %v1978 = vmul.f32 %v1966, %v545
    %v1979 = vmul.f32 %v1971, %v545
    %v1980 = vmul.f32 %v1974, %v545
    %v1981 = vadd.f32 %v1977, %v555
    %v1982 = vadd.f32 %v1978, %v555
    %v1983 = vadd.f32 %v1979, %v555
    %v1984 = vadd.f32 %v1980, %v555
    %v1985 = vmax.f32 %v1981, 0.0
    %v1986 = vmax.f32 %v1982, 0.0
    %v1987 = vmax.f32 %v1983, 0.0
    %v1988 = vmax.f32 %v1984, 0.0
    %v1989 = vpack.c.bf16 %v1986, %v1985
    %v1990 = vpack.c.bf16 %v1988, %v1987
    %v1992 = vsel %vm485, %v1989, 0
    %v1995 = vsel %vm485, %v1990, 0
    %1997 = vmatprep.subr.bf16.mxu0 0
    %1998 = vmatpush1.bf16.msra.mxu0 %v571
    %1999 = vmatprep.subr.bf16.mxu0 0
    %2000 = vmatpush1.bf16.msra.mxu0 0
    %2001 = vmatprep.subr.bf16.mxu0 0
    %2002 = vmatpush1.bf16.msra.mxu0 0
    %2003 = vmatprep.subr.bf16.mxu0 0
    %2004 = vmatpush1.bf16.msra.mxu0 0
    %2005 = vmatprep.subr.bf16.mxu0 0
    %2006 = vmatpush1.bf16.msra.mxu0 0
    %2007 = vmatprep.subr.bf16.mxu0 0
    %2008 = vmatpush1.bf16.msra.mxu0 0
    %2009 = vmatprep.subr.bf16.mxu0 0
    %2010 = vmatpush1.bf16.msra.mxu0 0
    %2011 = vmatprep.subr.bf16.mxu0 0
    %2012 = vmatpush1.bf16.msra.mxu0 0
    %2013 = vmatprep.subr.bf16.mxu0 0
    %2014 = vmatpush1.bf16.msra.mxu0 0
    %2015 = vmatprep.subr.bf16.mxu0 0
    %2016 = vmatpush1.bf16.msra.mxu0 0
    %2017 = vmatprep.subr.bf16.mxu0 0
    %2018 = vmatpush1.bf16.msra.mxu0 0
    %2019 = vmatprep.subr.bf16.mxu0 0
    %2020 = vmatpush1.bf16.msra.mxu0 0
    %2021 = vmatprep.subr.bf16.mxu0 0
    %2022 = vmatpush1.bf16.msra.mxu0 0
    %2023 = vmatprep.subr.bf16.mxu0 0
    %2024 = vmatpush1.bf16.msra.mxu0 0
    %2025 = vmatprep.subr.bf16.mxu0 0
    %2026 = vmatpush1.bf16.msra.mxu0 0
    %2027 = vmatprep.subr.bf16.mxu0 0
    %2028 = vmatpush1.bf16.msra.mxu0 0
    %2029 = vmatprep.mubr.bf16.mxu0 0
    %2030 = vmatmul.mubr.bf16.gmra.mrb[0].mxu0 %v1992
    %v2031 = vpop.f32.mrb[0].mxu0
    %v2032 = vadd.f32 0.0, %v2031
    %v2033 = vpop.f32.mrb[0].mxu0
    %v2034 = vpop.f32.mrb[0].mxu0
    %v2035 = vadd.f32 0.0, %v2034
    %v2036 = vpop.f32.mrb[0].mxu0
    %2037 = vmatprep.mubr.bf16.mxu0 0
    %2038 = vmatmul.mubr.bf16.gmra.mrb[0].mxu0 %v1995
    %v2039 = vpop.f32.mrb[0].mxu0
    %v2040 = vadd.f32 0.0, %v2039
    %v2041 = vpop.f32.mrb[0].mxu0
    %v2042 = vpop.f32.mrb[0].mxu0
    %v2043 = vadd.f32 0.0, %v2042
    %v2044 = vpop.f32.mrb[0].mxu0
    %2045 = vdwg.mxu0
    %v2046 = vmul.f32 %v2032, %v632
    %v2047 = vmul.f32 %v2035, %v632
    %v2048 = vmul.f32 %v2040, %v632
    %v2049 = vmul.f32 %v2043, %v632
    %v2050 = vadd.f32 %v2046, %v642
    %v2051 = vadd.f32 %v2047, %v642
    %v2052 = vadd.f32 %v2048, %v642
    %v2053 = vadd.f32 %v2049, %v642
    %v2054 = vmax.f32 %v2050, 0.0
    %v2055 = vmax.f32 %v2051, 0.0
    %v2056 = vmax.f32 %v2052, 0.0
    %v2057 = vmax.f32 %v2053, 0.0
    %v2058 = vmax.f32 %v1823, %v2054
    %v2059 = vmax.f32 %v1824, %v2055
    %v2060 = vmax.f32 %v1825, %v2056
    %v2061 = vmax.f32 %v1826, %v2057
    %v2062 = vld [vmem:[#allocation22] sm:$0x3]
    %v2064 = vsel %vm247, %v2062, 0
    %2066 = vmatprep.subr.bf16.mxu0 0
    %2067 = vmatpush1.bf16.msra.mxu0 %v2064
    %2068 = vmatprep.subr.bf16.mxu0 0
    %2069 = vmatpush1.bf16.msra.mxu0 0
    %2070 = vmatprep.subr.bf16.mxu0 0
    %2071 = vmatpush1.bf16.msra.mxu0 0
    %2072 = vmatprep.subr.bf16.mxu0 0
    %2073 = vmatpush1.bf16.msra.mxu0 0
    %2074 = vmatprep.subr.bf16.mxu0 0
    %2075 = vmatpush1.bf16.msra.mxu0 0
    %2076 = vmatprep.subr.bf16.mxu0 0
    %2077 = vmatpush1.bf16.msra.mxu0 0
    %2078 = vmatprep.subr.bf16.mxu0 0
    %2079 = vmatpush1.bf16.msra.mxu0 0
    %2080 = vmatprep.subr.bf16.mxu0 0
    %2081 = vmatpush1.bf16.msra.mxu0 0
    %2082 = vmatprep.subr.bf16.mxu0 0
    %2083 = vmatpush1.bf16.msra.mxu0 0
    %2084 = vmatprep.subr.bf16.mxu0 0
    %2085 = vmatpush1.bf16.msra.mxu0 0
    %2086 = vmatprep.subr.bf16.mxu0 0
    %2087 = vmatpush1.bf16.msra.mxu0 0
    %2088 = vmatprep.subr.bf16.mxu0 0
    %2089 = vmatpush1.bf16.msra.mxu0 0
    %2090 = vmatprep.subr.bf16.mxu0 0
    %2091 = vmatpush1.bf16.msra.mxu0 0
    %2092 = vmatprep.subr.bf16.mxu0 0
    %2093 = vmatpush1.bf16.msra.mxu0 0
    %2094 = vmatprep.subr.bf16.mxu0 0
    %2095 = vmatpush1.bf16.msra.mxu0 0
    %2096 = vmatprep.subr.bf16.mxu0 0
    %2097 = vmatpush1.bf16.msra.mxu0 0
    %2098 = vmatprep.mubr.bf16.mxu0 0
    %2099 = vmatmul.mubr.bf16.gmra.mrb[0].mxu0 %v242
    %v2100 = vpop.f32.mrb[0].mxu0
    %v2101 = vadd.f32 0.0, %v2100
    %v2102 = vpop.f32.mrb[0].mxu0
    %v2103 = vpop.f32.mrb[0].mxu0
    %v2104 = vadd.f32 0.0, %v2103
    %v2105 = vpop.f32.mrb[0].mxu0
    %2106 = vmatprep.mubr.bf16.mxu0 0
    %2107 = vmatmul.mubr.bf16.gmra.mrb[0].mxu0 %v245
    %v2108 = vpop.f32.mrb[0].mxu0
    %v2109 = vadd.f32 0.0, %v2108
    %v2110 = vpop.f32.mrb[0].mxu0
    %v2111 = vpop.f32.mrb[0].mxu0
    %v2112 = vadd.f32 0.0, %v2111
    %v2113 = vpop.f32.mrb[0].mxu0
    %2114 = vdwg.mxu0
    %v2115 = vld [vmem:[#allocation23] sm:$0x1]
    %v2117 = vlaneseq
    %v2118 = vshrl.u32 %v2117, 7
    %v2119 = vsub.s32 0, %v2118
    %v2120 = vrot.slane %v2115, %v2119
    %v2122 = vmul.f32 %v2101, %v2120
    %v2123 = vmul.f32 %v2104, %v2120
    %v2124 = vmul.f32 %v2109, %v2120
    %v2125 = vmul.f32 %v2112, %v2120
    %v2126 = vld [vmem:[#allocation25] sm:$0x1]
    %v2128 = vlaneseq
    %v2129 = vshrl.u32 %v2128, 7
    %v2130 = vsub.s32 0, %v2129
    %v2131 = vrot.slane %v2126, %v2130
    %v2133 = vadd.f32 %v2122, %v2131
    %v2134 = vadd.f32 %v2123, %v2131
    %v2135 = vadd.f32 %v2124, %v2131
    %v2136 = vadd.f32 %v2125, %v2131
    %v2137 = vadd.f32 %v2058, %v2133
    %v2138 = vadd.f32 %v2059, %v2134
    %v2139 = vadd.f32 %v2060, %v2135
    %v2140 = vadd.f32 %v2061, %v2136
    %v2141 = vmax.f32 %v2137, 0.0
    %v2142 = vmax.f32 %v2138, 0.0
    %v2143 = vmax.f32 %v2139, 0.0
    %v2144 = vmax.f32 %v2140, 0.0
    %2145 = vst.msk [vmem:[#allocation26] sm:$0xff] %vm485, %v2141
    %2146 = vst.msk [vmem:[#allocation26 + $0x8] sm:$0xff] %vm485, %v2142
    %2147 = vst.msk [vmem:[#allocation26 + $0x10] sm:$0xff] %vm485, %v2143
    %2148 = vst.msk [vmem:[#allocation26 + $0x18] sm:$0xff] %vm485, %v2144
    // Predicated region
    $region122: #{_lambda_.3} parent=1 // pred_check
      _
    $region123: #{_lambda_.3} parent=1 // pred_check_branch
      %2150 = sbr.rel (0) target = $region125
    $region124: #{_lambda_.3} parent=1 // pred_region
      %s2152 = ssub.s32 512, 512
      %2153 = vsyncadd [#allocation4], %s2152
      %s2154 = sshll.u32 [#allocation26], 4
      %s2155 = int_to_ptr.vmem [resolvable:$true] %s2154
      %2160 = dma.vmem_to_hbm [thread:$0]  %s2155, 512, %s15, [#allocation4], 128, 128, 8
    $region125: #{_lambda_.3} parent=1 // pred_fallthru
      _
    // Predicated region
    $region126: #{_lambda_.3} parent=1 // pred_check
      _
    $region127: #{_lambda_.3} parent=1 // pred_check_branch
      %2162 = sbr.rel (0) target = $region129
    $region128: #{_lambda_.3} parent=1 // pred_region
      %2163 = dma.done [#allocation4], 512
    $region129: #{_lambda_.3} parent=1 // pred_fallthru
      _
    %2164 = vsyncpa [#allocation3], 1
    %2165 = vsyncpa [#allocation6], 1
    %2166 = vsyncpa [#allocation9], 1
    %2167 = vsyncpa [#allocation12], 1
    %2168 = vsyncpa [#allocation15], 1
    %2169 = vsyncpa [#allocation18], 1
    %2170 = vsyncpa [#allocation21], 1
    %2171 = vsyncpa [#allocation24], 1
    %2172 = vsyncpa [#allocation4], 1

</llo_original>
